<compile_context>
chip_gen: v5e
topology: v5e:2x2
jax: 0.10.0
libtpu: 0.0.40
codegen_flags: <defaults>
</compile_context>

<pallas_src>
import numpy as np
import jax
import jax.numpy as jnp
from jax.experimental import pallas as pl
from jax.experimental.pallas import tpu as pltpu

# --------------- configuration: EESP(nIn=16, nOut=16, stride=1, k=4, r_lim=7)
N_BATCH = 2
H = W = 16
N_IN = 16
N_OUT = 16
K = 4
N_BR = N_OUT // K            # channels per SPP branch
R_LIM = 7
STRIDE = 1
EPS = 1e-3                   # BatchNorm eps used by ESPNetv2 CBR/CB/BR helpers

_map_receptive_ksize = {3: 1, 5: 2, 7: 3, 9: 4, 11: 5, 13: 6, 15: 7, 17: 8}
_k_sizes = sorted([(3 + 2 * i) if (3 + 2 * i) <= R_LIM else 3 for i in range(K)])
DILATIONS = [_map_receptive_ksize[ks] for ks in _k_sizes]   # [1, 1, 2, 3]
DISTINCT_D = sorted(set(DILATIONS))                          # [1, 2, 3]
ND = len(DISTINCT_D)
HW = H * W                   # 256 -> flattened spatial, lives on the lane axis
NC = N_BATCH * N_OUT         # 32  -> batch*channel, lives on the sublane axis

assert N_IN == N_OUT and STRIDE == 1
# TODO(synk): stride==2 paths (downAvg early-return, spatial downsampling,
#             no residual) are not exercised in this stride=1 configuration.

# Depthwise-dilated-conv tap table.  Term 0 is the centre tap (dy=dx=0),
# merged across dilations at pack time; the remaining 24 terms are
# (dilation-idx, i, j, dy, dx) with flattened-lane shift dy*W + dx.
_NC_TAPS = []
for _di, _d in enumerate(DISTINCT_D):
    for _i in range(3):
        for _j in range(3):
            if _i == 1 and _j == 1:
                continue
            _NC_TAPS.append((_di, _i, _j, _d * (_i - 1), _d * (_j - 1)))
NUM_TERMS = 1 + len(_NC_TAPS)                                # 25


# ------------------------------------------------------------ fused kernel ---
def _eesp_fused_kernel(x_ref, wp_ref, we_ref, wdw_ref, mask_ref, vec_ref, o_ref):
    """Whole EESP forward for all batches in one grid step, (NC, HW) layout.

    x_ref   : (NC, HW)         input (also the residual); row = n*C + c
    wp_ref  : (NC, NC)         proj_1x1 block-diag weight (BN folded, branch-replicated)
    we_ref  : (NC, NC)         conv_1x1_exp block-diag weight (BN folded)
    wdw_ref : (NC, NUM_TERMS)  cumulative depthwise tap weights (HFF + cat-BN
                               scale folded); column 0 = merged centre tap
    mask_ref: (24, HW)         spatial validity mask per non-centre tap
    vec_ref : (NC, 6)          [proj_bias, proj_alpha, cat_bias, cat_alpha,
                                exp_bias, act_alpha] per-channel columns
    o_ref   : (NC, HW)         output
    """
    x = x_ref[...]                                            # (NC, HW), also residual
    hi = jax.lax.Precision.HIGHEST

    # 1) REDUCE: grouped proj_1x1 (block-diag matmul, BN folded) + PReLU.
    o1 = jnp.dot(wp_ref[...], x, precision=hi,
                 preferred_element_type=jnp.float32)          # (NC, HW)
    o1 = o1 + vec_ref[:, 0:1]
    o1 = jnp.where(o1 >= 0.0, o1, vec_ref[:, 1:2] * o1)

    # 2) SPLIT/TRANSFORM/MERGE: K dilated depthwise 3x3 convs + hierarchical
    #    feature fusion + concat as 25 lane-shifted FMAs.  Shifts are static
    #    pltpu.roll along the flattened-spatial lane axis; out-of-image taps
    #    are zeroed with precomputed edge masks (no padded scratch at all).
    acc = o1 * wdw_ref[:, 0:1]                                # merged centre tap
    for t, (_di, _i, _j, dy, dx) in enumerate(_NC_TAPS):
        off = dy * W + dx                                     # flat spatial offset
        shifted = pltpu.roll(o1, shift=(-off) % HW, axis=1)   # shifted[p] = o1[p + off]
        acc = acc + shifted * wdw_ref[:, t + 1:t + 2] * mask_ref[t:t + 1, :]

    z = acc + vec_ref[:, 2:3]                                 # br_after_cat BN shift
    z = jnp.where(z >= 0.0, z, vec_ref[:, 3:4] * z)           # br_after_cat PReLU

    # 3) EXPAND: conv_1x1_exp (block-diag matmul, BN folded) + residual + PReLU.
    y = jnp.dot(we_ref[...], z, precision=hi,
                preferred_element_type=jnp.float32)
    y = y + vec_ref[:, 4:5] + x                               # residual (nIn==nOut, stride==1)
    o_ref[...] = jnp.where(y >= 0.0, y, vec_ref[:, 5:6] * y)  # module_act (unmasked full-lane store)


# ----------------------------------------------------------------- wrapper ---
def _full_spec(shape):
    zeros = (0,) * len(shape)
    return pl.BlockSpec(shape, lambda i: zeros)


def eesp_forward(x_nchw, kp):
    """EESP forward (stride=1, down_method='esp'). Input/Output are NCHW."""
    # NCHW -> (N*C, H*W): a pure (free) reshape; rows = n*C + c, lanes = h*W + w
    x2d = x_nchw.astype(jnp.float32).reshape(NC, HW)

    out2d = pl.pallas_call(
        _eesp_fused_kernel,
        out_shape=jax.ShapeDtypeStruct((NC, HW), jnp.float32),
        grid_spec=pltpu.PrefetchScalarGridSpec(
            num_scalar_prefetch=0,
            grid=(1,),
            in_specs=[
                _full_spec((NC, HW)),                 # x (and residual)
                _full_spec((NC, NC)),                 # proj_1x1 weight
                _full_spec((NC, NC)),                 # conv_1x1_exp weight
                _full_spec((NC, NUM_TERMS)),          # per-tap depthwise weight columns
                _full_spec((len(_NC_TAPS), HW)),      # per-tap spatial edge masks
                _full_spec((NC, 6)),                  # bias / alpha table
            ],
            out_specs=_full_spec((NC, HW)),
        ),
        compiler_params=pltpu.CompilerParams(dimension_semantics=("arbitrary",)),
        # TODO(synk): at real-network sizes, expose a "parallel" grid axis
        #             (batch / H strips) for megacore use and fuse several
        #             EESP blocks per call to amortize launch overhead.
    )(x2d, kp["wp"], kp["we"], kp["wdw"], kp["masks"], kp["vecs"])

    return out2d.reshape(N_BATCH, N_OUT, H, W)                # back to NCHW (free)


# ------------------------------------------------------------- parameters ---
def _block_diag_dense(wg, cin, cout, groups):
    """PyTorch grouped-1x1 weight (cout, cin/groups) -> dense (cin, cout)."""
    cin_g, cout_g = cin // groups, cout // groups
    dense = np.zeros((cin, cout), np.float32)
    wg = np.asarray(wg)
    for g in range(groups):
        blk = wg[g * cout_g:(g + 1) * cout_g, :]             # (cout_g, cin_g)
        dense[g * cin_g:(g + 1) * cin_g, g * cout_g:(g + 1) * cout_g] = blk.T
    return jnp.asarray(dense)


def _bn_scale_shift(key, c):
    k1, k2, k3, k4 = jax.random.split(key, 4)
    gamma = 1.0 + 0.1 * jax.random.normal(k1, (c,), jnp.float32)
    beta = 0.1 * jax.random.normal(k2, (c,), jnp.float32)
    mean = 0.1 * jax.random.normal(k3, (c,), jnp.float32)
    var = jnp.abs(jax.random.normal(k4, (c,), jnp.float32)) + 0.5
    scale = gamma / jnp.sqrt(var + EPS)
    shift = beta - mean * scale
    return scale[None, :], shift[None, :]


def init_params(key):
    """PyTorch-equivalent (unfolded) parameters, used by the JAX reference."""
    ks = jax.random.split(key, 10)
    nrm = lambda k, s: 0.1 * jax.random.normal(k, s, jnp.float32)

    w_proj = _block_diag_dense(nrm(ks[0], (N_BR, N_IN // K)), N_IN, N_BR, K)
    proj_scale, proj_shift = _bn_scale_shift(ks[1], N_BR)
    proj_alpha = (0.25 * jnp.ones((N_BR,), jnp.float32))[None, :]

    w_dw = nrm(ks[2], (K, 3, 3, N_BR))                       # per-branch depthwise 3x3
    cat_scale, cat_shift = _bn_scale_shift(ks[3], N_OUT)
    cat_alpha = (0.25 * jnp.ones((N_OUT,), jnp.float32) +
                 0.05 * jax.random.normal(ks[4], (N_OUT,), jnp.float32))[None, :]

    w_exp = _block_diag_dense(nrm(ks[5], (N_OUT, N_OUT // K)), N_OUT, N_OUT, K)
    exp_scale, exp_shift = _bn_scale_shift(ks[6], N_OUT)
    act_alpha = (0.25 * jnp.ones((N_OUT,), jnp.float32) +
                 0.05 * jax.random.normal(ks[7], (N_OUT,), jnp.float32))[None, :]

    return dict(w_proj=w_proj, proj_scale=proj_scale, proj_shift=proj_shift,
                proj_alpha=proj_alpha, w_dw=w_dw, cat_scale=cat_scale,
                cat_shift=cat_shift, cat_alpha=cat_alpha, w_exp=w_exp,
                exp_scale=exp_scale, exp_shift=exp_shift, act_alpha=act_alpha)


def pack_params(p):
    """One-time packing: fold BN, orient weights for the (NC, HW) layout."""
    def bdiag_batch(w16):                                    # (C_out, C_in) -> (NC, NC)
        z = np.zeros((NC, NC), np.float32)
        for n in range(N_BATCH):
            z[n * N_OUT:(n + 1) * N_OUT, n * N_IN:(n + 1) * N_IN] = w16
        return z

    # proj_1x1 (CBR): dense (cin,cout) -> (cout,cin) rows, fold BN scale,
    # replicate the N_BR outputs onto all K branch slots, block-diag over batch.
    wproj_rows = (np.asarray(p["w_proj"]).T *
                  np.asarray(p["proj_scale"])[0][:, None])    # (N_BR, N_IN)
    wp16 = np.tile(wproj_rows, (K, 1))                        # (N_OUT, N_IN)
    wp = bdiag_batch(wp16)                                    # (NC, NC)
    proj_b = np.tile(np.tile(np.asarray(p["proj_shift"])[0], K), N_BATCH)
    proj_a = np.tile(np.tile(np.asarray(p["proj_alpha"])[0], K), N_BATCH)

    # Depthwise dilated convs + hierarchical feature fusion: HFF is a prefix
    # sum over branches, so fold it into cumulative per-dilation tap weights;
    # also fold the br_after_cat BN scale.  Centre taps merge across dilations.
    w_dw = np.asarray(p["w_dw"])                              # (K, 3, 3, N_BR)
    cat_scale = np.asarray(p["cat_scale"])[0]                 # (N_OUT,)
    cw = np.zeros((ND, 3, 3, N_OUT), np.float32)
    for di, d in enumerate(DISTINCT_D):
        for bi in range(K):
            for bp in range(bi + 1):
                if DILATIONS[bp] == d:
                    cw[di, :, :, bi * N_BR:(bi + 1) * N_BR] += w_dw[bp]
    cw = cw * cat_scale
    wdw16 = np.zeros((N_OUT, NUM_TERMS), np.float32)
    wdw16[:, 0] = cw[:, 1, 1, :].sum(axis=0)                  # merged centre tap
    for t, (di, i, j, _dy, _dx) in enumerate(_NC_TAPS):
        wdw16[:, t + 1] = cw[di, i, j, :]
    wdw = np.tile(wdw16, (N_BATCH, 1))                        # (NC, NUM_TERMS)
    cat_b = np.tile(np.asarray(p["cat_shift"])[0], N_BATCH)
    cat_a = np.tile(np.asarray(p["cat_alpha"])[0], N_BATCH)

    # Spatial edge masks (one lane-row per non-centre tap): zero where the
    # shifted read would fall outside the HxW image.
    hh = np.repeat(np.arange(H), W)
    ww = np.tile(np.arange(W), H)
    masks = np.zeros((len(_NC_TAPS), HW), np.float32)
    for t, (_di, _i, _j, dy, dx) in enumerate(_NC_TAPS):
        valid = (hh + dy >= 0) & (hh + dy < H) & (ww + dx >= 0) & (ww + dx < W)
        masks[t] = valid.astype(np.float32)

    # conv_1x1_exp (CB): dense (cin,cout) -> (cout,cin) rows, fold BN scale.
    we16 = (np.asarray(p["w_exp"]).T *
            np.asarray(p["exp_scale"])[0][:, None])           # (N_OUT, N_OUT)
    we = bdiag_batch(we16)                                    # (NC, NC)
    exp_b = np.tile(np.asarray(p["exp_shift"])[0], N_BATCH)
    act_a = np.tile(np.asarray(p["act_alpha"])[0], N_BATCH)

    vecs = np.stack([proj_b, proj_a, cat_b, cat_a, exp_b, act_a], axis=1)  # (NC, 6)
    return dict(wp=jnp.asarray(wp), we=jnp.asarray(we), wdw=jnp.asarray(wdw),
                masks=jnp.asarray(masks), vecs=jnp.asarray(vecs))


# -------------------------------------------------- pure-JAX reference -------
def eesp_reference(x_nchw, p):
    x = jnp.transpose(x_nchw, (0, 2, 3, 1)).astype(jnp.float32)
    dn = ("NHWC", "HWIO", "NHWC")
    hi = jax.lax.Precision.HIGHEST

    y = jax.lax.conv_general_dilated(x, p["w_proj"].reshape(1, 1, N_IN, N_BR),
                                     (1, 1), "VALID", dimension_numbers=dn,
                                     precision=hi)
    y = y * p["proj_scale"][0] + p["proj_shift"][0]
    y = jnp.where(y >= 0, y, p["proj_alpha"][0] * y)

    outs = []
    for bi, d in enumerate(DILATIONS):
        w_hwio = p["w_dw"][bi][:, :, None, :]                # (3,3,1,N_BR)
        o = jax.lax.conv_general_dilated(y, w_hwio, (1, 1),
                                         [(d, d), (d, d)], rhs_dilation=(d, d),
                                         dimension_numbers=dn,
                                         feature_group_count=N_BR, precision=hi)
        if bi > 0:
            o = o + outs[bi - 1]
        outs.append(o)
    z = jnp.concatenate(outs, axis=-1)
    z = z * p["cat_scale"][0] + p["cat_shift"][0]
    z = jnp.where(z >= 0, z, p["cat_alpha"][0] * z)

    z = jax.lax.conv_general_dilated(z, p["w_exp"].reshape(1, 1, N_OUT, N_OUT),
                                     (1, 1), "VALID", dimension_numbers=dn,
                                     precision=hi)
    z = z * p["exp_scale"][0] + p["exp_shift"][0]
    z = z + x
    z = jnp.where(z >= 0, z, p["act_alpha"][0] * z)
    return jnp.transpose(z, (0, 3, 1, 2))


# ------------------------------------------------------------------- main ---
if __name__ == "__main__":
    key = jax.random.PRNGKey(0)
    kx, kp = jax.random.split(key)
    x = jax.random.normal(kx, (N_BATCH, N_IN, H, W), jnp.float32)   # NCHW input
    params = init_params(kp)
    packed = pack_params(params)       # one-time: BN folding + lane packing

    fwd = jax.jit(eesp_forward)
    out = jax.block_until_ready(fwd(x, packed))
    ref = jax.block_until_ready(eesp_reference(x, params))

    assert out.shape == (N_BATCH, N_OUT, H, W), out.shape
    np.testing.assert_allclose(np.asarray(out), np.asarray(ref), rtol=2e-3, atol=2e-3)
    print("KERNEL_OK")
</pallas_src>

<mosaic_0001>
module attributes {stable_mosaic.version = 11 : i64} {
  func.func @_eesp_fused_kernel(%arg0: i32, %arg1: memref<32x256xf32, #tpu.memory_space<vmem>>, %arg2: memref<32x32xf32, #tpu.memory_space<vmem>>, %arg3: memref<32x32xf32, #tpu.memory_space<vmem>>, %arg4: memref<32x25xf32, #tpu.memory_space<vmem>>, %arg5: memref<24x256xf32, #tpu.memory_space<vmem>>, %arg6: memref<32x6xf32, #tpu.memory_space<vmem>>, %arg7: memref<32x256xf32, #tpu.memory_space<vmem>>) attributes {dimension_semantics = [#tpu.dimension_semantics<arbitrary>], iteration_bounds = array<i64: 1>, scalar_prefetch = 0 : i64, scratch_operands = 0 : i64, tpu.core_type = #tpu.core_type<tc>, window_params = [{pipeline_mode = #tpu.pipeline_mode<synchronous>, transform_indices = @transform_0, window_bounds = array<i64: 32, 256>}, {pipeline_mode = #tpu.pipeline_mode<synchronous>, transform_indices = @transform_1, window_bounds = array<i64: 32, 32>}, {pipeline_mode = #tpu.pipeline_mode<synchronous>, transform_indices = @transform_2, window_bounds = array<i64: 32, 32>}, {pipeline_mode = #tpu.pipeline_mode<synchronous>, transform_indices = @transform_3, window_bounds = array<i64: 32, 25>}, {pipeline_mode = #tpu.pipeline_mode<synchronous>, transform_indices = @transform_4, window_bounds = array<i64: 24, 256>}, {pipeline_mode = #tpu.pipeline_mode<synchronous>, transform_indices = @transform_5, window_bounds = array<i64: 32, 6>}, {pipeline_mode = #tpu.pipeline_mode<synchronous>, transform_indices = @transform_6, window_bounds = array<i64: 32, 256>}]} {
    %c0 = arith.constant 0 : index
    %c0_0 = arith.constant 0 : index
    %0 = vector.load %arg1[%c0, %c0_0] : memref<32x256xf32, #tpu.memory_space<vmem>>, vector<32x256xf32>
    %c0_1 = arith.constant 0 : index
    %c0_2 = arith.constant 0 : index
    %1 = vector.load %arg2[%c0_1, %c0_2] : memref<32x32xf32, #tpu.memory_space<vmem>>, vector<32x32xf32>
    %cst = arith.constant dense<0.000000e+00> : vector<32x256xf32>
    %2 = tpu.matmul %1, %0, %cst {dimension_numbers = #tpu.dot_dimension_numbers<[1], [0], [0], [1], [0, 0, 1, 1], [], []>, precision = #tpu.contract_precision<fp32>} : vector<32x32xf32>, vector<32x256xf32>, vector<32x256xf32> -> vector<32x256xf32>
    %c0_3 = arith.constant 0 : index
    %c0_4 = arith.constant 0 : index
    %3 = vector.load %arg6[%c0_3, %c0_4] : memref<32x6xf32, #tpu.memory_space<vmem>>, vector<32x1xf32>
    %4 = vector.broadcast %3 : vector<32x1xf32> to vector<32x256xf32>
    %5 = arith.addf %2, %4 : vector<32x256xf32>
    %cst_5 = arith.constant 0.000000e+00 : f32
    %6 = vector.broadcast %cst_5 : f32 to vector<32x256xf32>
    %7 = arith.cmpf oge, %5, %6 : vector<32x256xf32>
    %c0_6 = arith.constant 0 : index
    %c1 = arith.constant 1 : index
    %8 = vector.load %arg6[%c0_6, %c1] : memref<32x6xf32, #tpu.memory_space<vmem>>, vector<32x1xf32>
    %9 = vector.broadcast %8 : vector<32x1xf32> to vector<32x256xf32>
    %10 = arith.mulf %9, %5 : vector<32x256xf32>
    %11 = arith.select %7, %5, %10 : vector<32x256xi1>, vector<32x256xf32>
    %c0_7 = arith.constant 0 : index
    %c0_8 = arith.constant 0 : index
    %12 = vector.load %arg4[%c0_7, %c0_8] : memref<32x25xf32, #tpu.memory_space<vmem>>, vector<32x1xf32>
    %13 = vector.broadcast %12 : vector<32x1xf32> to vector<32x256xf32>
    %14 = arith.mulf %11, %13 : vector<32x256xf32>
    %c17_i32 = arith.constant 17 : i32
    %15 = tpu.dynamic_rotate %11 by %c17_i32 dim 1 : vector<32x256xf32>, i32 -> vector<32x256xf32>
    %c0_9 = arith.constant 0 : index
    %c1_10 = arith.constant 1 : index
    %16 = vector.load %arg4[%c0_9, %c1_10] : memref<32x25xf32, #tpu.memory_space<vmem>>, vector<32x1xf32>
    %17 = vector.broadcast %16 : vector<32x1xf32> to vector<32x256xf32>
    %18 = arith.mulf %15, %17 : vector<32x256xf32>
    %c0_11 = arith.constant 0 : index
    %c0_12 = arith.constant 0 : index
    %19 = vector.load %arg5[%c0_11, %c0_12] : memref<24x256xf32, #tpu.memory_space<vmem>>, vector<1x256xf32>
    %20 = vector.broadcast %19 : vector<1x256xf32> to vector<32x256xf32>
    %21 = arith.mulf %18, %20 : vector<32x256xf32>
    %22 = arith.addf %14, %21 : vector<32x256xf32>
    %c16_i32 = arith.constant 16 : i32
    %23 = tpu.dynamic_rotate %11 by %c16_i32 dim 1 : vector<32x256xf32>, i32 -> vector<32x256xf32>
    %c0_13 = arith.constant 0 : index
    %c2 = arith.constant 2 : index
    %24 = vector.load %arg4[%c0_13, %c2] : memref<32x25xf32, #tpu.memory_space<vmem>>, vector<32x1xf32>
    %25 = vector.broadcast %24 : vector<32x1xf32> to vector<32x256xf32>
    %26 = arith.mulf %23, %25 : vector<32x256xf32>
    %c1_14 = arith.constant 1 : index
    %c0_15 = arith.constant 0 : index
    %27 = vector.load %arg5[%c1_14, %c0_15] : memref<24x256xf32, #tpu.memory_space<vmem>>, vector<1x256xf32>
    %28 = vector.broadcast %27 : vector<1x256xf32> to vector<32x256xf32>
    %29 = arith.mulf %26, %28 : vector<32x256xf32>
    %30 = arith.addf %22, %29 : vector<32x256xf32>
    %c15_i32 = arith.constant 15 : i32
    %31 = tpu.dynamic_rotate %11 by %c15_i32 dim 1 : vector<32x256xf32>, i32 -> vector<32x256xf32>
    %c0_16 = arith.constant 0 : index
    %c3 = arith.constant 3 : index
    %32 = vector.load %arg4[%c0_16, %c3] : memref<32x25xf32, #tpu.memory_space<vmem>>, vector<32x1xf32>
    %33 = vector.broadcast %32 : vector<32x1xf32> to vector<32x256xf32>
    %34 = arith.mulf %31, %33 : vector<32x256xf32>
    %c2_17 = arith.constant 2 : index
    %c0_18 = arith.constant 0 : index
    %35 = vector.load %arg5[%c2_17, %c0_18] : memref<24x256xf32, #tpu.memory_space<vmem>>, vector<1x256xf32>
    %36 = vector.broadcast %35 : vector<1x256xf32> to vector<32x256xf32>
    %37 = arith.mulf %34, %36 : vector<32x256xf32>
    %38 = arith.addf %30, %37 : vector<32x256xf32>
    %c1_i32 = arith.constant 1 : i32
    %39 = tpu.dynamic_rotate %11 by %c1_i32 dim 1 : vector<32x256xf32>, i32 -> vector<32x256xf32>
    %c0_19 = arith.constant 0 : index
    %c4 = arith.constant 4 : index
    %40 = vector.load %arg4[%c0_19, %c4] : memref<32x25xf32, #tpu.memory_space<vmem>>, vector<32x1xf32>
    %41 = vector.broadcast %40 : vector<32x1xf32> to vector<32x256xf32>
    %42 = arith.mulf %39, %41 : vector<32x256xf32>
    %c3_20 = arith.constant 3 : index
    %c0_21 = arith.constant 0 : index
    %43 = vector.load %arg5[%c3_20, %c0_21] : memref<24x256xf32, #tpu.memory_space<vmem>>, vector<1x256xf32>
    %44 = vector.broadcast %43 : vector<1x256xf32> to vector<32x256xf32>
    %45 = arith.mulf %42, %44 : vector<32x256xf32>
    %46 = arith.addf %38, %45 : vector<32x256xf32>
    %c255_i32 = arith.constant 255 : i32
    %47 = tpu.dynamic_rotate %11 by %c255_i32 dim 1 : vector<32x256xf32>, i32 -> vector<32x256xf32>
    %c0_22 = arith.constant 0 : index
    %c5 = arith.constant 5 : index
    %48 = vector.load %arg4[%c0_22, %c5] : memref<32x25xf32, #tpu.memory_space<vmem>>, vector<32x1xf32>
    %49 = vector.broadcast %48 : vector<32x1xf32> to vector<32x256xf32>
    %50 = arith.mulf %47, %49 : vector<32x256xf32>
    %c4_23 = arith.constant 4 : index
    %c0_24 = arith.constant 0 : index
    %51 = vector.load %arg5[%c4_23, %c0_24] : memref<24x256xf32, #tpu.memory_space<vmem>>, vector<1x256xf32>
    %52 = vector.broadcast %51 : vector<1x256xf32> to vector<32x256xf32>
    %53 = arith.mulf %50, %52 : vector<32x256xf32>
    %54 = arith.addf %46, %53 : vector<32x256xf32>
    %c241_i32 = arith.constant 241 : i32
    %55 = tpu.dynamic_rotate %11 by %c241_i32 dim 1 : vector<32x256xf32>, i32 -> vector<32x256xf32>
    %c0_25 = arith.constant 0 : index
    %c6 = arith.constant 6 : index
    %56 = vector.load %arg4[%c0_25, %c6] : memref<32x25xf32, #tpu.memory_space<vmem>>, vector<32x1xf32>
    %57 = vector.broadcast %56 : vector<32x1xf32> to vector<32x256xf32>
    %58 = arith.mulf %55, %57 : vector<32x256xf32>
    %c5_26 = arith.constant 5 : index
    %c0_27 = arith.constant 0 : index
    %59 = vector.load %arg5[%c5_26, %c0_27] : memref<24x256xf32, #tpu.memory_space<vmem>>, vector<1x256xf32>
    %60 = vector.broadcast %59 : vector<1x256xf32> to vector<32x256xf32>
    %61 = arith.mulf %58, %60 : vector<32x256xf32>
    %62 = arith.addf %54, %61 : vector<32x256xf32>
    %c240_i32 = arith.constant 240 : i32
    %63 = tpu.dynamic_rotate %11 by %c240_i32 dim 1 : vector<32x256xf32>, i32 -> vector<32x256xf32>
    %c0_28 = arith.constant 0 : index
    %c7 = arith.constant 7 : index
    %64 = vector.load %arg4[%c0_28, %c7] : memref<32x25xf32, #tpu.memory_space<vmem>>, vector<32x1xf32>
    %65 = vector.broadcast %64 : vector<32x1xf32> to vector<32x256xf32>
    %66 = arith.mulf %63, %65 : vector<32x256xf32>
    %c6_29 = arith.constant 6 : index
    %c0_30 = arith.constant 0 : index
    %67 = vector.load %arg5[%c6_29, %c0_30] : memref<24x256xf32, #tpu.memory_space<vmem>>, vector<1x256xf32>
    %68 = vector.broadcast %67 : vector<1x256xf32> to vector<32x256xf32>
    %69 = arith.mulf %66, %68 : vector<32x256xf32>
    %70 = arith.addf %62, %69 : vector<32x256xf32>
    %c239_i32 = arith.constant 239 : i32
    %71 = tpu.dynamic_rotate %11 by %c239_i32 dim 1 : vector<32x256xf32>, i32 -> vector<32x256xf32>
    %c0_31 = arith.constant 0 : index
    %c8 = arith.constant 8 : index
    %72 = vector.load %arg4[%c0_31, %c8] : memref<32x25xf32, #tpu.memory_space<vmem>>, vector<32x1xf32>
    %73 = vector.broadcast %72 : vector<32x1xf32> to vector<32x256xf32>
    %74 = arith.mulf %71, %73 : vector<32x256xf32>
    %c7_32 = arith.constant 7 : index
    %c0_33 = arith.constant 0 : index
    %75 = vector.load %arg5[%c7_32, %c0_33] : memref<24x256xf32, #tpu.memory_space<vmem>>, vector<1x256xf32>
    %76 = vector.broadcast %75 : vector<1x256xf32> to vector<32x256xf32>
    %77 = arith.mulf %74, %76 : vector<32x256xf32>
    %78 = arith.addf %70, %77 : vector<32x256xf32>
    %c34_i32 = arith.constant 34 : i32
    %79 = tpu.dynamic_rotate %11 by %c34_i32 dim 1 : vector<32x256xf32>, i32 -> vector<32x256xf32>
    %c0_34 = arith.constant 0 : index
    %c9 = arith.constant 9 : index
    %80 = vector.load %arg4[%c0_34, %c9] : memref<32x25xf32, #tpu.memory_space<vmem>>, vector<32x1xf32>
    %81 = vector.broadcast %80 : vector<32x1xf32> to vector<32x256xf32>
    %82 = arith.mulf %79, %81 : vector<32x256xf32>
    %c8_35 = arith.constant 8 : index
    %c0_36 = arith.constant 0 : index
    %83 = vector.load %arg5[%c8_35, %c0_36] : memref<24x256xf32, #tpu.memory_space<vmem>>, vector<1x256xf32>
    %84 = vector.broadcast %83 : vector<1x256xf32> to vector<32x256xf32>
    %85 = arith.mulf %82, %84 : vector<32x256xf32>
    %86 = arith.addf %78, %85 : vector<32x256xf32>
    %c32_i32 = arith.constant 32 : i32
    %87 = tpu.dynamic_rotate %11 by %c32_i32 dim 1 : vector<32x256xf32>, i32 -> vector<32x256xf32>
    %c0_37 = arith.constant 0 : index
    %c10 = arith.constant 10 : index
    %88 = vector.load %arg4[%c0_37, %c10] : memref<32x25xf32, #tpu.memory_space<vmem>>, vector<32x1xf32>
    %89 = vector.broadcast %88 : vector<32x1xf32> to vector<32x256xf32>
    %90 = arith.mulf %87, %89 : vector<32x256xf32>
    %c9_38 = arith.constant 9 : index
    %c0_39 = arith.constant 0 : index
    %91 = vector.load %arg5[%c9_38, %c0_39] : memref<24x256xf32, #tpu.memory_space<vmem>>, vector<1x256xf32>
    %92 = vector.broadcast %91 : vector<1x256xf32> to vector<32x256xf32>
    %93 = arith.mulf %90, %92 : vector<32x256xf32>
    %94 = arith.addf %86, %93 : vector<32x256xf32>
    %c30_i32 = arith.constant 30 : i32
    %95 = tpu.dynamic_rotate %11 by %c30_i32 dim 1 : vector<32x256xf32>, i32 -> vector<32x256xf32>
    %c0_40 = arith.constant 0 : index
    %c11 = arith.constant 11 : index
    %96 = vector.load %arg4[%c0_40, %c11] : memref<32x25xf32, #tpu.memory_space<vmem>>, vector<32x1xf32>
    %97 = vector.broadcast %96 : vector<32x1xf32> to vector<32x256xf32>
    %98 = arith.mulf %95, %97 : vector<32x256xf32>
    %c10_41 = arith.constant 10 : index
    %c0_42 = arith.constant 0 : index
    %99 = vector.load %arg5[%c10_41, %c0_42] : memref<24x256xf32, #tpu.memory_space<vmem>>, vector<1x256xf32>
    %100 = vector.broadcast %99 : vector<1x256xf32> to vector<32x256xf32>
    %101 = arith.mulf %98, %100 : vector<32x256xf32>
    %102 = arith.addf %94, %101 : vector<32x256xf32>
    %c2_i32 = arith.constant 2 : i32
    %103 = tpu.dynamic_rotate %11 by %c2_i32 dim 1 : vector<32x256xf32>, i32 -> vector<32x256xf32>
    %c0_43 = arith.constant 0 : index
    %c12 = arith.constant 12 : index
    %104 = vector.load %arg4[%c0_43, %c12] : memref<32x25xf32, #tpu.memory_space<vmem>>, vector<32x1xf32>
    %105 = vector.broadcast %104 : vector<32x1xf32> to vector<32x256xf32>
    %106 = arith.mulf %103, %105 : vector<32x256xf32>
    %c11_44 = arith.constant 11 : index
    %c0_45 = arith.constant 0 : index
    %107 = vector.load %arg5[%c11_44, %c0_45] : memref<24x256xf32, #tpu.memory_space<vmem>>, vector<1x256xf32>
    %108 = vector.broadcast %107 : vector<1x256xf32> to vector<32x256xf32>
    %109 = arith.mulf %106, %108 : vector<32x256xf32>
    %110 = arith.addf %102, %109 : vector<32x256xf32>
    %c254_i32 = arith.constant 254 : i32
    %111 = tpu.dynamic_rotate %11 by %c254_i32 dim 1 : vector<32x256xf32>, i32 -> vector<32x256xf32>
    %c0_46 = arith.constant 0 : index
    %c13 = arith.constant 13 : index
    %112 = vector.load %arg4[%c0_46, %c13] : memref<32x25xf32, #tpu.memory_space<vmem>>, vector<32x1xf32>
    %113 = vector.broadcast %112 : vector<32x1xf32> to vector<32x256xf32>
    %114 = arith.mulf %111, %113 : vector<32x256xf32>
    %c12_47 = arith.constant 12 : index
    %c0_48 = arith.constant 0 : index
    %115 = vector.load %arg5[%c12_47, %c0_48] : memref<24x256xf32, #tpu.memory_space<vmem>>, vector<1x256xf32>
    %116 = vector.broadcast %115 : vector<1x256xf32> to vector<32x256xf32>
    %117 = arith.mulf %114, %116 : vector<32x256xf32>
    %118 = arith.addf %110, %117 : vector<32x256xf32>
    %c226_i32 = arith.constant 226 : i32
    %119 = tpu.dynamic_rotate %11 by %c226_i32 dim 1 : vector<32x256xf32>, i32 -> vector<32x256xf32>
    %c0_49 = arith.constant 0 : index
    %c14 = arith.constant 14 : index
    %120 = vector.load %arg4[%c0_49, %c14] : memref<32x25xf32, #tpu.memory_space<vmem>>, vector<32x1xf32>
    %121 = vector.broadcast %120 : vector<32x1xf32> to vector<32x256xf32>
    %122 = arith.mulf %119, %121 : vector<32x256xf32>
    %c13_50 = arith.constant 13 : index
    %c0_51 = arith.constant 0 : index
    %123 = vector.load %arg5[%c13_50, %c0_51] : memref<24x256xf32, #tpu.memory_space<vmem>>, vector<1x256xf32>
    %124 = vector.broadcast %123 : vector<1x256xf32> to vector<32x256xf32>
    %125 = arith.mulf %122, %124 : vector<32x256xf32>
    %126 = arith.addf %118, %125 : vector<32x256xf32>
    %c224_i32 = arith.constant 224 : i32
    %127 = tpu.dynamic_rotate %11 by %c224_i32 dim 1 : vector<32x256xf32>, i32 -> vector<32x256xf32>
    %c0_52 = arith.constant 0 : index
    %c15 = arith.constant 15 : index
    %128 = vector.load %arg4[%c0_52, %c15] : memref<32x25xf32, #tpu.memory_space<vmem>>, vector<32x1xf32>
    %129 = vector.broadcast %128 : vector<32x1xf32> to vector<32x256xf32>
    %130 = arith.mulf %127, %129 : vector<32x256xf32>
    %c14_53 = arith.constant 14 : index
    %c0_54 = arith.constant 0 : index
    %131 = vector.load %arg5[%c14_53, %c0_54] : memref<24x256xf32, #tpu.memory_space<vmem>>, vector<1x256xf32>
    %132 = vector.broadcast %131 : vector<1x256xf32> to vector<32x256xf32>
    %133 = arith.mulf %130, %132 : vector<32x256xf32>
    %134 = arith.addf %126, %133 : vector<32x256xf32>
    %c222_i32 = arith.constant 222 : i32
    %135 = tpu.dynamic_rotate %11 by %c222_i32 dim 1 : vector<32x256xf32>, i32 -> vector<32x256xf32>
    %c0_55 = arith.constant 0 : index
    %c16 = arith.constant 16 : index
    %136 = vector.load %arg4[%c0_55, %c16] : memref<32x25xf32, #tpu.memory_space<vmem>>, vector<32x1xf32>
    %137 = vector.broadcast %136 : vector<32x1xf32> to vector<32x256xf32>
    %138 = arith.mulf %135, %137 : vector<32x256xf32>
    %c15_56 = arith.constant 15 : index
    %c0_57 = arith.constant 0 : index
    %139 = vector.load %arg5[%c15_56, %c0_57] : memref<24x256xf32, #tpu.memory_space<vmem>>, vector<1x256xf32>
    %140 = vector.broadcast %139 : vector<1x256xf32> to vector<32x256xf32>
    %141 = arith.mulf %138, %140 : vector<32x256xf32>
    %142 = arith.addf %134, %141 : vector<32x256xf32>
    %c51_i32 = arith.constant 51 : i32
    %143 = tpu.dynamic_rotate %11 by %c51_i32 dim 1 : vector<32x256xf32>, i32 -> vector<32x256xf32>
    %c0_58 = arith.constant 0 : index
    %c17 = arith.constant 17 : index
    %144 = vector.load %arg4[%c0_58, %c17] : memref<32x25xf32, #tpu.memory_space<vmem>>, vector<32x1xf32>
    %145 = vector.broadcast %144 : vector<32x1xf32> to vector<32x256xf32>
    %146 = arith.mulf %143, %145 : vector<32x256xf32>
    %c16_59 = arith.constant 16 : index
    %c0_60 = arith.constant 0 : index
    %147 = vector.load %arg5[%c16_59, %c0_60] : memref<24x256xf32, #tpu.memory_space<vmem>>, vector<1x256xf32>
    %148 = vector.broadcast %147 : vector<1x256xf32> to vector<32x256xf32>
    %149 = arith.mulf %146, %148 : vector<32x256xf32>
    %150 = arith.addf %142, %149 : vector<32x256xf32>
    %c48_i32 = arith.constant 48 : i32
    %151 = tpu.dynamic_rotate %11 by %c48_i32 dim 1 : vector<32x256xf32>, i32 -> vector<32x256xf32>
    %c0_61 = arith.constant 0 : index
    %c18 = arith.constant 18 : index
    %152 = vector.load %arg4[%c0_61, %c18] : memref<32x25xf32, #tpu.memory_space<vmem>>, vector<32x1xf32>
    %153 = vector.broadcast %152 : vector<32x1xf32> to vector<32x256xf32>
    %154 = arith.mulf %151, %153 : vector<32x256xf32>
    %c17_62 = arith.constant 17 : index
    %c0_63 = arith.constant 0 : index
    %155 = vector.load %arg5[%c17_62, %c0_63] : memref<24x256xf32, #tpu.memory_space<vmem>>, vector<1x256xf32>
    %156 = vector.broadcast %155 : vector<1x256xf32> to vector<32x256xf32>
    %157 = arith.mulf %154, %156 : vector<32x256xf32>
    %158 = arith.addf %150, %157 : vector<32x256xf32>
    %c45_i32 = arith.constant 45 : i32
    %159 = tpu.dynamic_rotate %11 by %c45_i32 dim 1 : vector<32x256xf32>, i32 -> vector<32x256xf32>
    %c0_64 = arith.constant 0 : index
    %c19 = arith.constant 19 : index
    %160 = vector.load %arg4[%c0_64, %c19] : memref<32x25xf32, #tpu.memory_space<vmem>>, vector<32x1xf32>
    %161 = vector.broadcast %160 : vector<32x1xf32> to vector<32x256xf32>
    %162 = arith.mulf %159, %161 : vector<32x256xf32>
    %c18_65 = arith.constant 18 : index
    %c0_66 = arith.constant 0 : index
    %163 = vector.load %arg5[%c18_65, %c0_66] : memref<24x256xf32, #tpu.memory_space<vmem>>, vector<1x256xf32>
    %164 = vector.broadcast %163 : vector<1x256xf32> to vector<32x256xf32>
    %165 = arith.mulf %162, %164 : vector<32x256xf32>
    %166 = arith.addf %158, %165 : vector<32x256xf32>
    %c3_i32 = arith.constant 3 : i32
    %167 = tpu.dynamic_rotate %11 by %c3_i32 dim 1 : vector<32x256xf32>, i32 -> vector<32x256xf32>
    %c0_67 = arith.constant 0 : index
    %c20 = arith.constant 20 : index
    %168 = vector.load %arg4[%c0_67, %c20] : memref<32x25xf32, #tpu.memory_space<vmem>>, vector<32x1xf32>
    %169 = vector.broadcast %168 : vector<32x1xf32> to vector<32x256xf32>
    %170 = arith.mulf %167, %169 : vector<32x256xf32>
    %c19_68 = arith.constant 19 : index
    %c0_69 = arith.constant 0 : index
    %171 = vector.load %arg5[%c19_68, %c0_69] : memref<24x256xf32, #tpu.memory_space<vmem>>, vector<1x256xf32>
    %172 = vector.broadcast %171 : vector<1x256xf32> to vector<32x256xf32>
    %173 = arith.mulf %170, %172 : vector<32x256xf32>
    %174 = arith.addf %166, %173 : vector<32x256xf32>
    %c253_i32 = arith.constant 253 : i32
    %175 = tpu.dynamic_rotate %11 by %c253_i32 dim 1 : vector<32x256xf32>, i32 -> vector<32x256xf32>
    %c0_70 = arith.constant 0 : index
    %c21 = arith.constant 21 : index
    %176 = vector.load %arg4[%c0_70, %c21] : memref<32x25xf32, #tpu.memory_space<vmem>>, vector<32x1xf32>
    %177 = vector.broadcast %176 : vector<32x1xf32> to vector<32x256xf32>
    %178 = arith.mulf %175, %177 : vector<32x256xf32>
    %c20_71 = arith.constant 20 : index
    %c0_72 = arith.constant 0 : index
    %179 = vector.load %arg5[%c20_71, %c0_72] : memref<24x256xf32, #tpu.memory_space<vmem>>, vector<1x256xf32>
    %180 = vector.broadcast %179 : vector<1x256xf32> to vector<32x256xf32>
    %181 = arith.mulf %178, %180 : vector<32x256xf32>
    %182 = arith.addf %174, %181 : vector<32x256xf32>
    %c211_i32 = arith.constant 211 : i32
    %183 = tpu.dynamic_rotate %11 by %c211_i32 dim 1 : vector<32x256xf32>, i32 -> vector<32x256xf32>
    %c0_73 = arith.constant 0 : index
    %c22 = arith.constant 22 : index
    %184 = vector.load %arg4[%c0_73, %c22] : memref<32x25xf32, #tpu.memory_space<vmem>>, vector<32x1xf32>
    %185 = vector.broadcast %184 : vector<32x1xf32> to vector<32x256xf32>
    %186 = arith.mulf %183, %185 : vector<32x256xf32>
    %c21_74 = arith.constant 21 : index
    %c0_75 = arith.constant 0 : index
    %187 = vector.load %arg5[%c21_74, %c0_75] : memref<24x256xf32, #tpu.memory_space<vmem>>, vector<1x256xf32>
    %188 = vector.broadcast %187 : vector<1x256xf32> to vector<32x256xf32>
    %189 = arith.mulf %186, %188 : vector<32x256xf32>
    %190 = arith.addf %182, %189 : vector<32x256xf32>
    %c208_i32 = arith.constant 208 : i32
    %191 = tpu.dynamic_rotate %11 by %c208_i32 dim 1 : vector<32x256xf32>, i32 -> vector<32x256xf32>
    %c0_76 = arith.constant 0 : index
    %c23 = arith.constant 23 : index
    %192 = vector.load %arg4[%c0_76, %c23] : memref<32x25xf32, #tpu.memory_space<vmem>>, vector<32x1xf32>
    %193 = vector.broadcast %192 : vector<32x1xf32> to vector<32x256xf32>
    %194 = arith.mulf %191, %193 : vector<32x256xf32>
    %c22_77 = arith.constant 22 : index
    %c0_78 = arith.constant 0 : index
    %195 = vector.load %arg5[%c22_77, %c0_78] : memref<24x256xf32, #tpu.memory_space<vmem>>, vector<1x256xf32>
    %196 = vector.broadcast %195 : vector<1x256xf32> to vector<32x256xf32>
    %197 = arith.mulf %194, %196 : vector<32x256xf32>
    %198 = arith.addf %190, %197 : vector<32x256xf32>
    %c205_i32 = arith.constant 205 : i32
    %199 = tpu.dynamic_rotate %11 by %c205_i32 dim 1 : vector<32x256xf32>, i32 -> vector<32x256xf32>
    %c0_79 = arith.constant 0 : index
    %c24 = arith.constant 24 : index
    %200 = vector.load %arg4[%c0_79, %c24] : memref<32x25xf32, #tpu.memory_space<vmem>>, vector<32x1xf32>
    %201 = vector.broadcast %200 : vector<32x1xf32> to vector<32x256xf32>
    %202 = arith.mulf %199, %201 : vector<32x256xf32>
    %c23_80 = arith.constant 23 : index
    %c0_81 = arith.constant 0 : index
    %203 = vector.load %arg5[%c23_80, %c0_81] : memref<24x256xf32, #tpu.memory_space<vmem>>, vector<1x256xf32>
    %204 = vector.broadcast %203 : vector<1x256xf32> to vector<32x256xf32>
    %205 = arith.mulf %202, %204 : vector<32x256xf32>
    %206 = arith.addf %198, %205 : vector<32x256xf32>
    %c0_82 = arith.constant 0 : index
    %c2_83 = arith.constant 2 : index
    %207 = vector.load %arg6[%c0_82, %c2_83] : memref<32x6xf32, #tpu.memory_space<vmem>>, vector<32x1xf32>
    %208 = vector.broadcast %207 : vector<32x1xf32> to vector<32x256xf32>
    %209 = arith.addf %206, %208 : vector<32x256xf32>
    %cst_84 = arith.constant 0.000000e+00 : f32
    %210 = vector.broadcast %cst_84 : f32 to vector<32x256xf32>
    %211 = arith.cmpf oge, %209, %210 : vector<32x256xf32>
    %c0_85 = arith.constant 0 : index
    %c3_86 = arith.constant 3 : index
    %212 = vector.load %arg6[%c0_85, %c3_86] : memref<32x6xf32, #tpu.memory_space<vmem>>, vector<32x1xf32>
    %213 = vector.broadcast %212 : vector<32x1xf32> to vector<32x256xf32>
    %214 = arith.mulf %213, %209 : vector<32x256xf32>
    %215 = arith.select %211, %209, %214 : vector<32x256xi1>, vector<32x256xf32>
    %c0_87 = arith.constant 0 : index
    %c0_88 = arith.constant 0 : index
    %216 = vector.load %arg3[%c0_87, %c0_88] : memref<32x32xf32, #tpu.memory_space<vmem>>, vector<32x32xf32>
    %cst_89 = arith.constant dense<0.000000e+00> : vector<32x256xf32>
    %217 = tpu.matmul %216, %215, %cst_89 {dimension_numbers = #tpu.dot_dimension_numbers<[1], [0], [0], [1], [0, 0, 1, 1], [], []>, precision = #tpu.contract_precision<fp32>} : vector<32x32xf32>, vector<32x256xf32>, vector<32x256xf32> -> vector<32x256xf32>
    %c0_90 = arith.constant 0 : index
    %c4_91 = arith.constant 4 : index
    %218 = vector.load %arg6[%c0_90, %c4_91] : memref<32x6xf32, #tpu.memory_space<vmem>>, vector<32x1xf32>
    %219 = vector.broadcast %218 : vector<32x1xf32> to vector<32x256xf32>
    %220 = arith.addf %217, %219 : vector<32x256xf32>
    %221 = arith.addf %220, %0 : vector<32x256xf32>
    %cst_92 = arith.constant 0.000000e+00 : f32
    %222 = vector.broadcast %cst_92 : f32 to vector<32x256xf32>
    %223 = arith.cmpf oge, %221, %222 : vector<32x256xf32>
    %c0_93 = arith.constant 0 : index
    %c5_94 = arith.constant 5 : index
    %224 = vector.load %arg6[%c0_93, %c5_94] : memref<32x6xf32, #tpu.memory_space<vmem>>, vector<32x1xf32>
    %225 = vector.broadcast %224 : vector<32x1xf32> to vector<32x256xf32>
    %226 = arith.mulf %225, %221 : vector<32x256xf32>
    %227 = arith.select %223, %221, %226 : vector<32x256xi1>, vector<32x256xf32>
    %c0_95 = arith.constant 0 : index
    %c0_96 = arith.constant 0 : index
    %228 = vector.load %arg7[%c0_95, %c0_96] : memref<32x256xf32, #tpu.memory_space<vmem>>, vector<32x256xf32>
    tpu.vector_store %arg7[%c0_95, %c0_96], %227 {strides = array<i32>} : memref<32x256xf32, #tpu.memory_space<vmem>>, vector<32x256xf32>,
    return
  }
  func.func @transform_0(%arg0: i32) -> (i32, i32) {
    %c0_i32 = arith.constant 0 : i32
    %c0_i32_0 = arith.constant 0 : i32
    %c0_i32_1 = arith.constant 0 : i32
    return %c0_i32, %c0_i32_0 : i32, i32
  }
  func.func @transform_1(%arg0: i32) -> (i32, i32) {
    %c0_i32 = arith.constant 0 : i32
    %c0_i32_0 = arith.constant 0 : i32
    %c0_i32_1 = arith.constant 0 : i32
    return %c0_i32, %c0_i32_0 : i32, i32
  }
  func.func @transform_2(%arg0: i32) -> (i32, i32) {
    %c0_i32 = arith.constant 0 : i32
    %c0_i32_0 = arith.constant 0 : i32
    %c0_i32_1 = arith.constant 0 : i32
    return %c0_i32, %c0_i32_0 : i32, i32
  }
  func.func @transform_3(%arg0: i32) -> (i32, i32) {
    %c0_i32 = arith.constant 0 : i32
    %c0_i32_0 = arith.constant 0 : i32
    %c0_i32_1 = arith.constant 0 : i32
    return %c0_i32, %c0_i32_0 : i32, i32
  }
  func.func @transform_4(%arg0: i32) -> (i32, i32) {
    %c0_i32 = arith.constant 0 : i32
    %c0_i32_0 = arith.constant 0 : i32
    %c0_i32_1 = arith.constant 0 : i32
    return %c0_i32, %c0_i32_0 : i32, i32
  }
  func.func @transform_5(%arg0: i32) -> (i32, i32) {
    %c0_i32 = arith.constant 0 : i32
    %c0_i32_0 = arith.constant 0 : i32
    %c0_i32_1 = arith.constant 0 : i32
    return %c0_i32, %c0_i32_0 : i32, i32
  }
  func.func @transform_6(%arg0: i32) -> (i32, i32) {
    %c0_i32 = arith.constant 0 : i32
    %c0_i32_0 = arith.constant 0 : i32
    %c0_i32_1 = arith.constant 0 : i32
    return %c0_i32, %c0_i32_0 : i32, i32
  }
}

</mosaic_0001>

<llo_original>
// kernel: eesp_forward.1
$region0: #{eesp_forward.1}
  #allocation0 [shape = 'u32[]', space=smem, size = 0x4, offset = 0x4, fixed_abs, tag = 'smem constant byte address 0x4 - core index']
  #allocation1 [shape = 'u32[72,128]{1,0:T(1,128)}', space=vmem, size = 0x9000, scoped, tag = 'internal scratch']
  %s0 = inlined_call_operand.vmem [shape: f32[32,256], index: 0, kind: input, shape index: {}]
  %s1 = inlined_call_operand.vmem [shape: f32[32,32], index: 1, kind: input, shape index: {}]
  %s2 = inlined_call_operand.vmem [shape: f32[32,32], index: 2, kind: input, shape index: {}]
  %s3 = inlined_call_operand.vmem [shape: f32[32,25], index: 3, kind: input, shape index: {}]
  %s4 = inlined_call_operand.vmem [shape: f32[24,256], index: 4, kind: input, shape index: {}]
  %s5 = inlined_call_operand.vmem [shape: f32[32,6], index: 5, kind: input, shape index: {}]
  %s6 = inlined_call_operand.vmem [shape: f32[32,256], index: 6, kind: output, shape index: {}]
  %s7 = sld [smem:[#allocation0]]
  $region34: #{eesp_forward.1} parent=0
    _
  %s9 = ssub.s32 1, %s7
  %s10 = scalar_select 0, %s9, %s7
  // Predicated region
  $region2: #{eesp_forward.1} parent=0 // pred_check
    _
  $region3: #{eesp_forward.1} parent=0 // pred_check_branch
    %12 = sbr.rel (0) target = $region5
  $region4: #{eesp_forward.1} parent=0 // pred_region
    _
  $region5: #{eesp_forward.1} parent=0 // pred_fallthru
    _
  // Predicated region
  $region6: #{eesp_forward.1} parent=0 // pred_check
    _
  $region7: #{eesp_forward.1} parent=0 // pred_check_branch
    %14 = sbr.rel (0) target = $region9
  $region8: #{eesp_forward.1} parent=0 // pred_region
    _
  $region9: #{eesp_forward.1} parent=0 // pred_fallthru
    _
  // Predicated region
  $region10: #{eesp_forward.1} parent=0 // pred_check
    _
  $region11: #{eesp_forward.1} parent=0 // pred_check_branch
    %16 = sbr.rel (0) target = $region13
  $region12: #{eesp_forward.1} parent=0 // pred_region
    _
  $region13: #{eesp_forward.1} parent=0 // pred_fallthru
    _
  // Predicated region
  $region14: #{eesp_forward.1} parent=0 // pred_check
    _
  $region15: #{eesp_forward.1} parent=0 // pred_check_branch
    %18 = sbr.rel (0) target = $region17
  $region16: #{eesp_forward.1} parent=0 // pred_region
    _
  $region17: #{eesp_forward.1} parent=0 // pred_fallthru
    _
  // Predicated region
  $region18: #{eesp_forward.1} parent=0 // pred_check
    _
  $region19: #{eesp_forward.1} parent=0 // pred_check_branch
    %20 = sbr.rel (0) target = $region21
  $region20: #{eesp_forward.1} parent=0 // pred_region
    _
  $region21: #{eesp_forward.1} parent=0 // pred_fallthru
    _
  // Predicated region
  $region22: #{eesp_forward.1} parent=0 // pred_check
    _
  $region23: #{eesp_forward.1} parent=0 // pred_check_branch
    %22 = sbr.rel (0) target = $region25
  $region24: #{eesp_forward.1} parent=0 // pred_region
    _
  $region25: #{eesp_forward.1} parent=0 // pred_fallthru
    _
  %v23 = vld [vmem:[%s0] sm:$0xff]
  %v24 = vld [vmem:[%s0 + $0x8] sm:$0xff]
  %v25 = vld [vmem:[%s0 + $0x10] sm:$0xff]
  %v26 = vld [vmem:[%s0 + $0x18] sm:$0xff]
  %v27 = vld [vmem:[%s0 + $0x20] sm:$0xff]
  %v28 = vld [vmem:[%s0 + $0x28] sm:$0xff]
  %v29 = vld [vmem:[%s0 + $0x30] sm:$0xff]
  %v30 = vld [vmem:[%s0 + $0x38] sm:$0xff]
  %v31 = vld [vmem:[%s1] sm:$0xff]
  %v32 = vld [vmem:[%s1 + $0x8] sm:$0xff]
  %v33 = vld [vmem:[%s1 + $0x10] sm:$0xff]
  %v34 = vld [vmem:[%s1 + $0x18] sm:$0xff]
  %v35 = vld [vmem:[%s5] sm:$0xff]
  %v36 = vld [vmem:[%s5 + $0x8] sm:$0xff]
  %v37 = vld [vmem:[%s5 + $0x10] sm:$0xff]
  %v38 = vld [vmem:[%s5 + $0x18] sm:$0xff]
  %40 = vset.pattern.permute.xlu0 0
  %41 = vperm.xlu0 %40, %v35
  %v42 = vpop.permute.xlu0 %41
  %45 = vset.pattern.permute.xlu0 0
  %46 = vperm.xlu0 %45, %v36
  %v47 = vpop.permute.xlu0 %46
  %50 = vset.pattern.permute.xlu0 0
  %51 = vperm.xlu0 %50, %v37
  %v52 = vpop.permute.xlu0 %51
  %55 = vset.pattern.permute.xlu0 0
  %56 = vperm.xlu0 %55, %v38
  %v57 = vpop.permute.xlu0 %56
  %vm59 = vcmask 261120
  %v61 = vsel %vm59, %v31, 0
  %v64 = vsel %vm59, %v32, 0
  %v67 = vsel %vm59, %v33, 0
  %v70 = vsel %vm59, %v34, 0
  %72 = vmatpush.msra.mxu0 0.0
  %73 = vmatpush.msra.mxu0 0.0
  %74 = vmatpush.msra.mxu0 0.0
  %75 = vmatpush.msra.mxu0 0.0
  %76 = vmatpush.msra.mxu0 0.0
  %77 = vmatpush.msra.mxu0 0.0
  %78 = vmatpush.msra.mxu0 0.0
  %79 = vmatpush.msra.mxu0 0.0
  %80 = vmatpush.msra.mxu0 0.0
  %81 = vmatpush.msra.mxu0 0.0
  %82 = vmatpush.msra.mxu0 0.0
  %83 = vmatpush.msra.mxu0 0.0
  %v84 = vand.u32 %v29, 4294901760
  %85 = vmatpush.msra.mxu0 %v84
  %v86 = vand.u32 %v27, 4294901760
  %87 = vmatpush.msra.mxu0 %v86
  %v88 = vand.u32 %v25, 4294901760
  %89 = vmatpush.msra.mxu0 %v88
  %v90 = vand.u32 %v23, 4294901760
  %91 = vmatpush.msra.mxu0 %v90
  %v92 = vand.u32 %v61, 4294901760
  %v93 = vsub.f32 %v61, %v92
  %v94 = vand.u32 %v93, 4294901760
  %v95 = vsub.f32 %v93, %v94
  %v96 = vand.u32 %v95, 4294901760
  %97 = vmatmul.f32.gmra.mxu0 %v96
  %v98 = vpop.f32.mrf.mxu0
  %v99 = vadd.f32 %v42, %v98
  %v100 = vand.u32 %v64, 4294901760
  %v101 = vsub.f32 %v64, %v100
  %v102 = vand.u32 %v101, 4294901760
  %v103 = vsub.f32 %v101, %v102
  %v104 = vand.u32 %v103, 4294901760
  %105 = vmatmul.f32.gmra.mxu0 %v104
  %v106 = vpop.f32.mrf.mxu0
  %v107 = vadd.f32 %v47, %v106
  %v108 = vand.u32 %v67, 4294901760
  %v109 = vsub.f32 %v67, %v108
  %v110 = vand.u32 %v109, 4294901760
  %v111 = vsub.f32 %v109, %v110
  %v112 = vand.u32 %v111, 4294901760
  %113 = vmatmul.f32.gmra.mxu0 %v112
  %v114 = vpop.f32.mrf.mxu0
  %v115 = vadd.f32 %v52, %v114
  %v116 = vand.u32 %v70, 4294901760
  %v117 = vsub.f32 %v70, %v116
  %v118 = vand.u32 %v117, 4294901760
  %v119 = vsub.f32 %v117, %v118
  %v120 = vand.u32 %v119, 4294901760
  %121 = vmatmul.f32.gmra.mxu0 %v120
  %v122 = vpop.f32.mrf.mxu0
  %v123 = vadd.f32 %v57, %v122
  %124 = vdwg.mxu0
  %125 = vmatpush.msra.mxu0 0.0
  %126 = vmatpush.msra.mxu0 0.0
  %127 = vmatpush.msra.mxu0 0.0
  %128 = vmatpush.msra.mxu0 0.0
  %129 = vmatpush.msra.mxu0 0.0
  %130 = vmatpush.msra.mxu0 0.0
  %131 = vmatpush.msra.mxu0 0.0
  %132 = vmatpush.msra.mxu0 0.0
  %133 = vmatpush.msra.mxu0 0.0
  %134 = vmatpush.msra.mxu0 0.0
  %135 = vmatpush.msra.mxu0 0.0
  %136 = vmatpush.msra.mxu0 0.0
  %v137 = vand.u32 %v29, 4294901760
  %v138 = vsub.f32 %v29, %v137
  %v139 = vand.u32 %v138, 4294901760
  %v140 = vsub.f32 %v138, %v139
  %v141 = vand.u32 %v140, 4294901760
  %142 = vmatpush.msra.mxu0 %v141
  %v143 = vand.u32 %v27, 4294901760
  %v144 = vsub.f32 %v27, %v143
  %v145 = vand.u32 %v144, 4294901760
  %v146 = vsub.f32 %v144, %v145
  %v147 = vand.u32 %v146, 4294901760
  %148 = vmatpush.msra.mxu0 %v147
  %v149 = vand.u32 %v25, 4294901760
  %v150 = vsub.f32 %v25, %v149
  %v151 = vand.u32 %v150, 4294901760
  %v152 = vsub.f32 %v150, %v151
  %v153 = vand.u32 %v152, 4294901760
  %154 = vmatpush.msra.mxu0 %v153
  %v155 = vand.u32 %v23, 4294901760
  %v156 = vsub.f32 %v23, %v155
  %v157 = vand.u32 %v156, 4294901760
  %v158 = vsub.f32 %v156, %v157
  %v159 = vand.u32 %v158, 4294901760
  %160 = vmatpush.msra.mxu0 %v159
  %v161 = vand.u32 %v61, 4294901760
  %162 = vmatmul.f32.gmra.mxu0 %v161
  %v163 = vpop.f32.mrf.mxu0
  %v164 = vadd.f32 %v99, %v163
  %v165 = vand.u32 %v64, 4294901760
  %166 = vmatmul.f32.gmra.mxu0 %v165
  %v167 = vpop.f32.mrf.mxu0
  %v168 = vadd.f32 %v107, %v167
  %v169 = vand.u32 %v67, 4294901760
  %170 = vmatmul.f32.gmra.mxu0 %v169
  %v171 = vpop.f32.mrf.mxu0
  %v172 = vadd.f32 %v115, %v171
  %v173 = vand.u32 %v70, 4294901760
  %174 = vmatmul.f32.gmra.mxu0 %v173
  %v175 = vpop.f32.mrf.mxu0
  %v176 = vadd.f32 %v123, %v175
  %177 = vdwg.mxu0
  %178 = vmatpush.msra.mxu0 0.0
  %179 = vmatpush.msra.mxu0 0.0
  %180 = vmatpush.msra.mxu0 0.0
  %181 = vmatpush.msra.mxu0 0.0
  %182 = vmatpush.msra.mxu0 0.0
  %183 = vmatpush.msra.mxu0 0.0
  %184 = vmatpush.msra.mxu0 0.0
  %185 = vmatpush.msra.mxu0 0.0
  %186 = vmatpush.msra.mxu0 0.0
  %187 = vmatpush.msra.mxu0 0.0
  %188 = vmatpush.msra.mxu0 0.0
  %189 = vmatpush.msra.mxu0 0.0
  %v190 = vand.u32 %v29, 4294901760
  %v191 = vsub.f32 %v29, %v190
  %192 = vmatpush.msra.mxu0 %v191
  %v193 = vand.u32 %v27, 4294901760
  %v194 = vsub.f32 %v27, %v193
  %195 = vmatpush.msra.mxu0 %v194
  %v196 = vand.u32 %v25, 4294901760
  %v197 = vsub.f32 %v25, %v196
  %198 = vmatpush.msra.mxu0 %v197
  %v199 = vand.u32 %v23, 4294901760
  %v200 = vsub.f32 %v23, %v199
  %201 = vmatpush.msra.mxu0 %v200
  %v202 = vand.u32 %v61, 4294901760
  %v203 = vsub.f32 %v61, %v202
  %204 = vmatmul.f32.gmra.mxu0 %v203
  %v205 = vpop.f32.mrf.mxu0
  %v206 = vadd.f32 %v164, %v205
  %v207 = vand.u32 %v64, 4294901760
  %v208 = vsub.f32 %v64, %v207
  %209 = vmatmul.f32.gmra.mxu0 %v208
  %v210 = vpop.f32.mrf.mxu0
  %v211 = vadd.f32 %v168, %v210
  %v212 = vand.u32 %v67, 4294901760
  %v213 = vsub.f32 %v67, %v212
  %214 = vmatmul.f32.gmra.mxu0 %v213
  %v215 = vpop.f32.mrf.mxu0
  %v216 = vadd.f32 %v172, %v215
  %v217 = vand.u32 %v70, 4294901760
  %v218 = vsub.f32 %v70, %v217
  %219 = vmatmul.f32.gmra.mxu0 %v218
  %v220 = vpop.f32.mrf.mxu0
  %v221 = vadd.f32 %v176, %v220
  %222 = vdwg.mxu0
  %223 = vmatpush.msra.mxu0 0.0
  %224 = vmatpush.msra.mxu0 0.0
  %225 = vmatpush.msra.mxu0 0.0
  %226 = vmatpush.msra.mxu0 0.0
  %227 = vmatpush.msra.mxu0 0.0
  %228 = vmatpush.msra.mxu0 0.0
  %229 = vmatpush.msra.mxu0 0.0
  %230 = vmatpush.msra.mxu0 0.0
  %231 = vmatpush.msra.mxu0 0.0
  %232 = vmatpush.msra.mxu0 0.0
  %233 = vmatpush.msra.mxu0 0.0
  %234 = vmatpush.msra.mxu0 0.0
  %v235 = vand.u32 %v29, 4294901760
  %236 = vmatpush.msra.mxu0 %v235
  %v237 = vand.u32 %v27, 4294901760
  %238 = vmatpush.msra.mxu0 %v237
  %v239 = vand.u32 %v25, 4294901760
  %240 = vmatpush.msra.mxu0 %v239
  %v241 = vand.u32 %v23, 4294901760
  %242 = vmatpush.msra.mxu0 %v241
  %v243 = vand.u32 %v61, 4294901760
  %v244 = vsub.f32 %v61, %v243
  %v245 = vand.u32 %v244, 4294901760
  %246 = vmatmul.f32.gmra.mxu0 %v245
  %v247 = vpop.f32.mrf.mxu0
  %v248 = vadd.f32 %v206, %v247
  %v249 = vand.u32 %v64, 4294901760
  %v250 = vsub.f32 %v64, %v249
  %v251 = vand.u32 %v250, 4294901760
  %252 = vmatmul.f32.gmra.mxu0 %v251
  %v253 = vpop.f32.mrf.mxu0
  %v254 = vadd.f32 %v211, %v253
  %v255 = vand.u32 %v67, 4294901760
  %v256 = vsub.f32 %v67, %v255
  %v257 = vand.u32 %v256, 4294901760
  %258 = vmatmul.f32.gmra.mxu0 %v257
  %v259 = vpop.f32.mrf.mxu0
  %v260 = vadd.f32 %v216, %v259
  %v261 = vand.u32 %v70, 4294901760
  %v262 = vsub.f32 %v70, %v261
  %v263 = vand.u32 %v262, 4294901760
  %264 = vmatmul.f32.gmra.mxu0 %v263
  %v265 = vpop.f32.mrf.mxu0
  %v266 = vadd.f32 %v221, %v265
  %267 = vdwg.mxu0
  %268 = vmatpush.msra.mxu0 0.0
  %269 = vmatpush.msra.mxu0 0.0
  %270 = vmatpush.msra.mxu0 0.0
  %271 = vmatpush.msra.mxu0 0.0
  %272 = vmatpush.msra.mxu0 0.0
  %273 = vmatpush.msra.mxu0 0.0
  %274 = vmatpush.msra.mxu0 0.0
  %275 = vmatpush.msra.mxu0 0.0
  %276 = vmatpush.msra.mxu0 0.0
  %277 = vmatpush.msra.mxu0 0.0
  %278 = vmatpush.msra.mxu0 0.0
  %279 = vmatpush.msra.mxu0 0.0
  %v280 = vand.u32 %v29, 4294901760
  %v281 = vsub.f32 %v29, %v280
  %v282 = vand.u32 %v281, 4294901760
  %283 = vmatpush.msra.mxu0 %v282
  %v284 = vand.u32 %v27, 4294901760
  %v285 = vsub.f32 %v27, %v284
  %v286 = vand.u32 %v285, 4294901760
  %287 = vmatpush.msra.mxu0 %v286
  %v288 = vand.u32 %v25, 4294901760
  %v289 = vsub.f32 %v25, %v288
  %v290 = vand.u32 %v289, 4294901760
  %291 = vmatpush.msra.mxu0 %v290
  %v292 = vand.u32 %v23, 4294901760
  %v293 = vsub.f32 %v23, %v292
  %v294 = vand.u32 %v293, 4294901760
  %295 = vmatpush.msra.mxu0 %v294
  %v296 = vand.u32 %v61, 4294901760
  %297 = vmatmul.f32.gmra.mxu0 %v296
  %v298 = vpop.f32.mrf.mxu0
  %v299 = vadd.f32 %v248, %v298
  %v300 = vand.u32 %v64, 4294901760
  %301 = vmatmul.f32.gmra.mxu0 %v300
  %v302 = vpop.f32.mrf.mxu0
  %v303 = vadd.f32 %v254, %v302
  %v304 = vand.u32 %v67, 4294901760
  %305 = vmatmul.f32.gmra.mxu0 %v304
  %v306 = vpop.f32.mrf.mxu0
  %v307 = vadd.f32 %v260, %v306
  %v308 = vand.u32 %v70, 4294901760
  %309 = vmatmul.f32.gmra.mxu0 %v308
  %v310 = vpop.f32.mrf.mxu0
  %v311 = vadd.f32 %v266, %v310
  %312 = vdwg.mxu0
  %313 = vmatpush.msra.mxu0 0.0
  %314 = vmatpush.msra.mxu0 0.0
  %315 = vmatpush.msra.mxu0 0.0
  %316 = vmatpush.msra.mxu0 0.0
  %317 = vmatpush.msra.mxu0 0.0
  %318 = vmatpush.msra.mxu0 0.0
  %319 = vmatpush.msra.mxu0 0.0
  %320 = vmatpush.msra.mxu0 0.0
  %321 = vmatpush.msra.mxu0 0.0
  %322 = vmatpush.msra.mxu0 0.0
  %323 = vmatpush.msra.mxu0 0.0
  %324 = vmatpush.msra.mxu0 0.0
  %v325 = vand.u32 %v29, 4294901760
  %326 = vmatpush.msra.mxu0 %v325
  %v327 = vand.u32 %v27, 4294901760
  %328 = vmatpush.msra.mxu0 %v327
  %v329 = vand.u32 %v25, 4294901760
  %330 = vmatpush.msra.mxu0 %v329
  %v331 = vand.u32 %v23, 4294901760
  %332 = vmatpush.msra.mxu0 %v331
  %v333 = vand.u32 %v61, 4294901760
  %334 = vmatmul.f32.gmra.mxu0 %v333
  %v335 = vpop.f32.mrf.mxu0
  %v336 = vadd.f32 %v299, %v335
  %v337 = vand.u32 %v64, 4294901760
  %338 = vmatmul.f32.gmra.mxu0 %v337
  %v339 = vpop.f32.mrf.mxu0
  %v340 = vadd.f32 %v303, %v339
  %v341 = vand.u32 %v67, 4294901760
  %342 = vmatmul.f32.gmra.mxu0 %v341
  %v343 = vpop.f32.mrf.mxu0
  %v344 = vadd.f32 %v307, %v343
  %v345 = vand.u32 %v70, 4294901760
  %346 = vmatmul.f32.gmra.mxu0 %v345
  %v347 = vpop.f32.mrf.mxu0
  %v348 = vadd.f32 %v311, %v347
  %349 = vdwg.mxu0
  %350 = vmatpush.msra.mxu0 0.0
  %351 = vmatpush.msra.mxu0 0.0
  %352 = vmatpush.msra.mxu0 0.0
  %353 = vmatpush.msra.mxu0 0.0
  %354 = vmatpush.msra.mxu0 0.0
  %355 = vmatpush.msra.mxu0 0.0
  %356 = vmatpush.msra.mxu0 0.0
  %357 = vmatpush.msra.mxu0 0.0
  %358 = vmatpush.msra.mxu0 0.0
  %359 = vmatpush.msra.mxu0 0.0
  %360 = vmatpush.msra.mxu0 0.0
  %361 = vmatpush.msra.mxu0 0.0
  %v362 = vand.u32 %v30, 4294901760
  %363 = vmatpush.msra.mxu0 %v362
  %v364 = vand.u32 %v28, 4294901760
  %365 = vmatpush.msra.mxu0 %v364
  %v366 = vand.u32 %v26, 4294901760
  %367 = vmatpush.msra.mxu0 %v366
  %v368 = vand.u32 %v24, 4294901760
  %369 = vmatpush.msra.mxu0 %v368
  %v370 = vand.u32 %v61, 4294901760
  %v371 = vsub.f32 %v61, %v370
  %v372 = vand.u32 %v371, 4294901760
  %v373 = vsub.f32 %v371, %v372
  %v374 = vand.u32 %v373, 4294901760
  %375 = vmatmul.f32.gmra.mxu0 %v374
  %v376 = vpop.f32.mrf.mxu0
  %v377 = vadd.f32 %v42, %v376
  %v378 = vand.u32 %v64, 4294901760
  %v379 = vsub.f32 %v64, %v378
  %v380 = vand.u32 %v379, 4294901760
  %v381 = vsub.f32 %v379, %v380
  %v382 = vand.u32 %v381, 4294901760
  %383 = vmatmul.f32.gmra.mxu0 %v382
  %v384 = vpop.f32.mrf.mxu0
  %v385 = vadd.f32 %v47, %v384
  %v386 = vand.u32 %v67, 4294901760
  %v387 = vsub.f32 %v67, %v386
  %v388 = vand.u32 %v387, 4294901760
  %v389 = vsub.f32 %v387, %v388
  %v390 = vand.u32 %v389, 4294901760
  %391 = vmatmul.f32.gmra.mxu0 %v390
  %v392 = vpop.f32.mrf.mxu0
  %v393 = vadd.f32 %v52, %v392
  %v394 = vand.u32 %v70, 4294901760
  %v395 = vsub.f32 %v70, %v394
  %v396 = vand.u32 %v395, 4294901760
  %v397 = vsub.f32 %v395, %v396
  %v398 = vand.u32 %v397, 4294901760
  %399 = vmatmul.f32.gmra.mxu0 %v398
  %v400 = vpop.f32.mrf.mxu0
  %v401 = vadd.f32 %v57, %v400
  %402 = vdwg.mxu0
  %403 = vmatpush.msra.mxu0 0.0
  %404 = vmatpush.msra.mxu0 0.0
  %405 = vmatpush.msra.mxu0 0.0
  %406 = vmatpush.msra.mxu0 0.0
  %407 = vmatpush.msra.mxu0 0.0
  %408 = vmatpush.msra.mxu0 0.0
  %409 = vmatpush.msra.mxu0 0.0
  %410 = vmatpush.msra.mxu0 0.0
  %411 = vmatpush.msra.mxu0 0.0
  %412 = vmatpush.msra.mxu0 0.0
  %413 = vmatpush.msra.mxu0 0.0
  %414 = vmatpush.msra.mxu0 0.0
  %v415 = vand.u32 %v30, 4294901760
  %v416 = vsub.f32 %v30, %v415
  %v417 = vand.u32 %v416, 4294901760
  %v418 = vsub.f32 %v416, %v417
  %v419 = vand.u32 %v418, 4294901760
  %420 = vmatpush.msra.mxu0 %v419
  %v421 = vand.u32 %v28, 4294901760
  %v422 = vsub.f32 %v28, %v421
  %v423 = vand.u32 %v422, 4294901760
  %v424 = vsub.f32 %v422, %v423
  %v425 = vand.u32 %v424, 4294901760
  %426 = vmatpush.msra.mxu0 %v425
  %v427 = vand.u32 %v26, 4294901760
  %v428 = vsub.f32 %v26, %v427
  %v429 = vand.u32 %v428, 4294901760
  %v430 = vsub.f32 %v428, %v429
  %v431 = vand.u32 %v430, 4294901760
  %432 = vmatpush.msra.mxu0 %v431
  %v433 = vand.u32 %v24, 4294901760
  %v434 = vsub.f32 %v24, %v433
  %v435 = vand.u32 %v434, 4294901760
  %v436 = vsub.f32 %v434, %v435
  %v437 = vand.u32 %v436, 4294901760
  %438 = vmatpush.msra.mxu0 %v437
  %v439 = vand.u32 %v61, 4294901760
  %440 = vmatmul.f32.gmra.mxu0 %v439
  %v441 = vpop.f32.mrf.mxu0
  %v442 = vadd.f32 %v377, %v441
  %v443 = vand.u32 %v64, 4294901760
  %444 = vmatmul.f32.gmra.mxu0 %v443
  %v445 = vpop.f32.mrf.mxu0
  %v446 = vadd.f32 %v385, %v445
  %v447 = vand.u32 %v67, 4294901760
  %448 = vmatmul.f32.gmra.mxu0 %v447
  %v449 = vpop.f32.mrf.mxu0
  %v450 = vadd.f32 %v393, %v449
  %v451 = vand.u32 %v70, 4294901760
  %452 = vmatmul.f32.gmra.mxu0 %v451
  %v453 = vpop.f32.mrf.mxu0
  %v454 = vadd.f32 %v401, %v453
  %455 = vdwg.mxu0
  %456 = vmatpush.msra.mxu0 0.0
  %457 = vmatpush.msra.mxu0 0.0
  %458 = vmatpush.msra.mxu0 0.0
  %459 = vmatpush.msra.mxu0 0.0
  %460 = vmatpush.msra.mxu0 0.0
  %461 = vmatpush.msra.mxu0 0.0
  %462 = vmatpush.msra.mxu0 0.0
  %463 = vmatpush.msra.mxu0 0.0
  %464 = vmatpush.msra.mxu0 0.0
  %465 = vmatpush.msra.mxu0 0.0
  %466 = vmatpush.msra.mxu0 0.0
  %467 = vmatpush.msra.mxu0 0.0
  %v468 = vand.u32 %v30, 4294901760
  %v469 = vsub.f32 %v30, %v468
  %470 = vmatpush.msra.mxu0 %v469
  %v471 = vand.u32 %v28, 4294901760
  %v472 = vsub.f32 %v28, %v471
  %473 = vmatpush.msra.mxu0 %v472
  %v474 = vand.u32 %v26, 4294901760
  %v475 = vsub.f32 %v26, %v474
  %476 = vmatpush.msra.mxu0 %v475
  %v477 = vand.u32 %v24, 4294901760
  %v478 = vsub.f32 %v24, %v477
  %479 = vmatpush.msra.mxu0 %v478
  %v480 = vand.u32 %v61, 4294901760
  %v481 = vsub.f32 %v61, %v480
  %482 = vmatmul.f32.gmra.mxu0 %v481
  %v483 = vpop.f32.mrf.mxu0
  %v484 = vadd.f32 %v442, %v483
  %v485 = vand.u32 %v64, 4294901760
  %v486 = vsub.f32 %v64, %v485
  %487 = vmatmul.f32.gmra.mxu0 %v486
  %v488 = vpop.f32.mrf.mxu0
  %v489 = vadd.f32 %v446, %v488
  %v490 = vand.u32 %v67, 4294901760
  %v491 = vsub.f32 %v67, %v490
  %492 = vmatmul.f32.gmra.mxu0 %v491
  %v493 = vpop.f32.mrf.mxu0
  %v494 = vadd.f32 %v450, %v493
  %v495 = vand.u32 %v70, 4294901760
  %v496 = vsub.f32 %v70, %v495
  %497 = vmatmul.f32.gmra.mxu0 %v496
  %v498 = vpop.f32.mrf.mxu0
  %v499 = vadd.f32 %v454, %v498
  %500 = vdwg.mxu0
  %501 = vmatpush.msra.mxu0 0.0
  %502 = vmatpush.msra.mxu0 0.0
  %503 = vmatpush.msra.mxu0 0.0
  %504 = vmatpush.msra.mxu0 0.0
  %505 = vmatpush.msra.mxu0 0.0
  %506 = vmatpush.msra.mxu0 0.0
  %507 = vmatpush.msra.mxu0 0.0
  %508 = vmatpush.msra.mxu0 0.0
  %509 = vmatpush.msra.mxu0 0.0
  %510 = vmatpush.msra.mxu0 0.0
  %511 = vmatpush.msra.mxu0 0.0
  %512 = vmatpush.msra.mxu0 0.0
  %v513 = vand.u32 %v30, 4294901760
  %514 = vmatpush.msra.mxu0 %v513
  %v515 = vand.u32 %v28, 4294901760
  %516 = vmatpush.msra.mxu0 %v515
  %v517 = vand.u32 %v26, 4294901760
  %518 = vmatpush.msra.mxu0 %v517
  %v519 = vand.u32 %v24, 4294901760
  %520 = vmatpush.msra.mxu0 %v519
  %v521 = vand.u32 %v61, 4294901760
  %v522 = vsub.f32 %v61, %v521
  %v523 = vand.u32 %v522, 4294901760
  %524 = vmatmul.f32.gmra.mxu0 %v523
  %v525 = vpop.f32.mrf.mxu0
  %v526 = vadd.f32 %v484, %v525
  %v527 = vand.u32 %v64, 4294901760
  %v528 = vsub.f32 %v64, %v527
  %v529 = vand.u32 %v528, 4294901760
  %530 = vmatmul.f32.gmra.mxu0 %v529
  %v531 = vpop.f32.mrf.mxu0
  %v532 = vadd.f32 %v489, %v531
  %v533 = vand.u32 %v67, 4294901760
  %v534 = vsub.f32 %v67, %v533
  %v535 = vand.u32 %v534, 4294901760
  %536 = vmatmul.f32.gmra.mxu0 %v535
  %v537 = vpop.f32.mrf.mxu0
  %v538 = vadd.f32 %v494, %v537
  %v539 = vand.u32 %v70, 4294901760
  %v540 = vsub.f32 %v70, %v539
  %v541 = vand.u32 %v540, 4294901760
  %542 = vmatmul.f32.gmra.mxu0 %v541
  %v543 = vpop.f32.mrf.mxu0
  %v544 = vadd.f32 %v499, %v543
  %545 = vdwg.mxu0
  %546 = vmatpush.msra.mxu0 0.0
  %547 = vmatpush.msra.mxu0 0.0
  %548 = vmatpush.msra.mxu0 0.0
  %549 = vmatpush.msra.mxu0 0.0
  %550 = vmatpush.msra.mxu0 0.0
  %551 = vmatpush.msra.mxu0 0.0
  %552 = vmatpush.msra.mxu0 0.0
  %553 = vmatpush.msra.mxu0 0.0
  %554 = vmatpush.msra.mxu0 0.0
  %555 = vmatpush.msra.mxu0 0.0
  %556 = vmatpush.msra.mxu0 0.0
  %557 = vmatpush.msra.mxu0 0.0
  %v558 = vand.u32 %v30, 4294901760
  %v559 = vsub.f32 %v30, %v558
  %v560 = vand.u32 %v559, 4294901760
  %561 = vmatpush.msra.mxu0 %v560
  %v562 = vand.u32 %v28, 4294901760
  %v563 = vsub.f32 %v28, %v562
  %v564 = vand.u32 %v563, 4294901760
  %565 = vmatpush.msra.mxu0 %v564
  %v566 = vand.u32 %v26, 4294901760
  %v567 = vsub.f32 %v26, %v566
  %v568 = vand.u32 %v567, 4294901760
  %569 = vmatpush.msra.mxu0 %v568
  %v570 = vand.u32 %v24, 4294901760
  %v571 = vsub.f32 %v24, %v570
  %v572 = vand.u32 %v571, 4294901760
  %573 = vmatpush.msra.mxu0 %v572
  %v574 = vand.u32 %v61, 4294901760
  %575 = vmatmul.f32.gmra.mxu0 %v574
  %v576 = vpop.f32.mrf.mxu0
  %v577 = vadd.f32 %v526, %v576
  %v578 = vand.u32 %v64, 4294901760
  %579 = vmatmul.f32.gmra.mxu0 %v578
  %v580 = vpop.f32.mrf.mxu0
  %v581 = vadd.f32 %v532, %v580
  %v582 = vand.u32 %v67, 4294901760
  %583 = vmatmul.f32.gmra.mxu0 %v582
  %v584 = vpop.f32.mrf.mxu0
  %v585 = vadd.f32 %v538, %v584
  %v586 = vand.u32 %v70, 4294901760
  %587 = vmatmul.f32.gmra.mxu0 %v586
  %v588 = vpop.f32.mrf.mxu0
  %v589 = vadd.f32 %v544, %v588
  %590 = vdwg.mxu0
  %591 = vmatpush.msra.mxu0 0.0
  %592 = vmatpush.msra.mxu0 0.0
  %593 = vmatpush.msra.mxu0 0.0
  %594 = vmatpush.msra.mxu0 0.0
  %595 = vmatpush.msra.mxu0 0.0
  %596 = vmatpush.msra.mxu0 0.0
  %597 = vmatpush.msra.mxu0 0.0
  %598 = vmatpush.msra.mxu0 0.0
  %599 = vmatpush.msra.mxu0 0.0
  %600 = vmatpush.msra.mxu0 0.0
  %601 = vmatpush.msra.mxu0 0.0
  %602 = vmatpush.msra.mxu0 0.0
  %v603 = vand.u32 %v30, 4294901760
  %604 = vmatpush.msra.mxu0 %v603
  %v605 = vand.u32 %v28, 4294901760
  %606 = vmatpush.msra.mxu0 %v605
  %v607 = vand.u32 %v26, 4294901760
  %608 = vmatpush.msra.mxu0 %v607
  %v609 = vand.u32 %v24, 4294901760
  %610 = vmatpush.msra.mxu0 %v609
  %v611 = vand.u32 %v61, 4294901760
  %612 = vmatmul.f32.gmra.mxu0 %v611
  %v613 = vpop.f32.mrf.mxu0
  %v614 = vadd.f32 %v577, %v613
  %v615 = vand.u32 %v64, 4294901760
  %616 = vmatmul.f32.gmra.mxu0 %v615
  %v617 = vpop.f32.mrf.mxu0
  %v618 = vadd.f32 %v581, %v617
  %v619 = vand.u32 %v67, 4294901760
  %620 = vmatmul.f32.gmra.mxu0 %v619
  %v621 = vpop.f32.mrf.mxu0
  %v622 = vadd.f32 %v585, %v621
  %v623 = vand.u32 %v70, 4294901760
  %624 = vmatmul.f32.gmra.mxu0 %v623
  %v625 = vpop.f32.mrf.mxu0
  %v626 = vadd.f32 %v589, %v625
  %627 = vdwg.mxu0
  %vm628 = vcmp.ge.f32.partialorder %v336, 0.0
  %vm629 = vcmp.ge.f32.partialorder %v614, 0.0
  %vm630 = vcmp.ge.f32.partialorder %v340, 0.0
  %vm631 = vcmp.ge.f32.partialorder %v618, 0.0
  %vm632 = vcmp.ge.f32.partialorder %v344, 0.0
  %vm633 = vcmp.ge.f32.partialorder %v622, 0.0
  %vm634 = vcmp.ge.f32.partialorder %v348, 0.0
  %vm635 = vcmp.ge.f32.partialorder %v626, 0.0
  %636 = vset.pattern.permute.xlu0 1
  %637 = vperm.xlu0 %636, %v35
  %v638 = vpop.permute.xlu0 %637
  %640 = vset.pattern.permute.xlu0 1
  %641 = vperm.xlu0 %640, %v36
  %v642 = vpop.permute.xlu0 %641
  %644 = vset.pattern.permute.xlu0 1
  %645 = vperm.xlu0 %644, %v37
  %v646 = vpop.permute.xlu0 %645
  %648 = vset.pattern.permute.xlu0 1
  %649 = vperm.xlu0 %648, %v38
  %v650 = vpop.permute.xlu0 %649
  %v652 = vmul.f32 %v638, %v336
  %v653 = vmul.f32 %v638, %v614
  %v654 = vmul.f32 %v642, %v340
  %v655 = vmul.f32 %v642, %v618
  %v656 = vmul.f32 %v646, %v344
  %v657 = vmul.f32 %v646, %v622
  %v658 = vmul.f32 %v650, %v348
  %v659 = vmul.f32 %v650, %v626
  %v660 = vsel %vm628, %v336, %v652
  %v661 = vsel %vm629, %v614, %v653
  %v662 = vsel %vm630, %v340, %v654
  %v663 = vsel %vm631, %v618, %v655
  %v664 = vsel %vm632, %v344, %v656
  %v665 = vsel %vm633, %v622, %v657
  %v666 = vsel %vm634, %v348, %v658
  %v667 = vsel %vm635, %v626, %v659
  %v668 = vld [vmem:[%s3] sm:$0xff]
  %v669 = vld [vmem:[%s3 + $0x8] sm:$0xff]
  %v670 = vld [vmem:[%s3 + $0x10] sm:$0xff]
  %v671 = vld [vmem:[%s3 + $0x18] sm:$0xff]
  %673 = vset.pattern.permute.xlu0 0
  %674 = vperm.xlu0 %673, %v668
  %v675 = vpop.permute.xlu0 %674
  %678 = vset.pattern.permute.xlu0 0
  %679 = vperm.xlu0 %678, %v669
  %v680 = vpop.permute.xlu0 %679
  %683 = vset.pattern.permute.xlu0 0
  %684 = vperm.xlu0 %683, %v670
  %v685 = vpop.permute.xlu0 %684
  %688 = vset.pattern.permute.xlu0 0
  %689 = vperm.xlu0 %688, %v671
  %v690 = vpop.permute.xlu0 %689
  %v692 = vmul.f32 %v660, %v675
  %v693 = vmul.f32 %v661, %v675
  %v694 = vmul.f32 %v662, %v680
  %v695 = vmul.f32 %v663, %v680
  %v696 = vmul.f32 %v664, %v685
  %v697 = vmul.f32 %v665, %v685
  %v698 = vmul.f32 %v666, %v690
  %v699 = vmul.f32 %v667, %v690
  %700 = vrot.lane.b32.xlu0 %v660, 17
  %v701 = vpop.permute.xlu0 %700
  %702 = vrot.lane.b32.xlu0 %v662, 17
  %v703 = vpop.permute.xlu0 %702
  %704 = vrot.lane.b32.xlu0 %v664, 17
  %v705 = vpop.permute.xlu0 %704
  %706 = vrot.lane.b32.xlu0 %v666, 17
  %v707 = vpop.permute.xlu0 %706
  %708 = vrot.lane.b32.xlu0 %v661, 17
  %v709 = vpop.permute.xlu0 %708
  %710 = vrot.lane.b32.xlu0 %v663, 17
  %v711 = vpop.permute.xlu0 %710
  %712 = vrot.lane.b32.xlu0 %v665, 17
  %v713 = vpop.permute.xlu0 %712
  %714 = vrot.lane.b32.xlu0 %v667, 17
  %v715 = vpop.permute.xlu0 %714
  %v716 = vlaneseq
  %v717 = vand.u32 %v716, 127
  %vm718 = vcmp.lt.s32.totalorder %v717, 17
  %v719 = vsel %vm718, %v701, %v709
  %v720 = vsel %vm718, %v703, %v711
  %v721 = vsel %vm718, %v705, %v713
  %v722 = vsel %vm718, %v707, %v715
  %v723 = vsel %vm718, %v709, %v701
  %v724 = vsel %vm718, %v711, %v703
  %v725 = vsel %vm718, %v713, %v705
  %v726 = vsel %vm718, %v715, %v707
  %727 = vset.pattern.permute.xlu0 1
  %728 = vperm.xlu0 %727, %v668
  %v729 = vpop.permute.xlu0 %728
  %731 = vset.pattern.permute.xlu0 1
  %732 = vperm.xlu0 %731, %v669
  %v733 = vpop.permute.xlu0 %732
  %735 = vset.pattern.permute.xlu0 1
  %736 = vperm.xlu0 %735, %v670
  %v737 = vpop.permute.xlu0 %736
  %739 = vset.pattern.permute.xlu0 1
  %740 = vperm.xlu0 %739, %v671
  %v741 = vpop.permute.xlu0 %740
  %v743 = vmul.f32 %v723, %v729
  %v744 = vmul.f32 %v719, %v729
  %v745 = vmul.f32 %v724, %v733
  %v746 = vmul.f32 %v720, %v733
  %v747 = vmul.f32 %v725, %v737
  %v748 = vmul.f32 %v721, %v737
  %v749 = vmul.f32 %v726, %v741
  %v750 = vmul.f32 %v722, %v741
  %v751 = vld [vmem:[%s4] ss:$8 sm:$0x3]
  %v753 = vperm.slane %v751, 0
  %v754 = vperm.slane %v751, 1
  %v757 = vmul.f32 %v743, %v753
  %v758 = vmul.f32 %v744, %v754
  %v759 = vmul.f32 %v745, %v753
  %v760 = vmul.f32 %v746, %v754
  %v761 = vmul.f32 %v747, %v753
  %v762 = vmul.f32 %v748, %v754
  %v763 = vmul.f32 %v749, %v753
  %v764 = vmul.f32 %v750, %v754
  %v765 = vadd.f32 %v692, %v757
  %v766 = vadd.f32 %v693, %v758
  %v767 = vadd.f32 %v694, %v759
  %v768 = vadd.f32 %v695, %v760
  %v769 = vadd.f32 %v696, %v761
  %v770 = vadd.f32 %v697, %v762
  %v771 = vadd.f32 %v698, %v763
  %v772 = vadd.f32 %v699, %v764
  %773 = vrot.lane.b32.xlu0 %v660, 16
  %v774 = vpop.permute.xlu0 %773
  %775 = vrot.lane.b32.xlu0 %v662, 16
  %v776 = vpop.permute.xlu0 %775
  %777 = vrot.lane.b32.xlu0 %v664, 16
  %v778 = vpop.permute.xlu0 %777
  %779 = vrot.lane.b32.xlu0 %v666, 16
  %v780 = vpop.permute.xlu0 %779
  %781 = vrot.lane.b32.xlu0 %v661, 16
  %v782 = vpop.permute.xlu0 %781
  %783 = vrot.lane.b32.xlu0 %v663, 16
  %v784 = vpop.permute.xlu0 %783
  %785 = vrot.lane.b32.xlu0 %v665, 16
  %v786 = vpop.permute.xlu0 %785
  %787 = vrot.lane.b32.xlu0 %v667, 16
  %v788 = vpop.permute.xlu0 %787
  %vm789 = vcmp.lt.s32.totalorder %v717, 16
  %v790 = vsel %vm789, %v774, %v782
  %v791 = vsel %vm789, %v776, %v784
  %v792 = vsel %vm789, %v778, %v786
  %v793 = vsel %vm789, %v780, %v788
  %v794 = vsel %vm789, %v782, %v774
  %v795 = vsel %vm789, %v784, %v776
  %v796 = vsel %vm789, %v786, %v778
  %v797 = vsel %vm789, %v788, %v780
  %798 = vset.pattern.permute.xlu0 2
  %799 = vperm.xlu0 %798, %v668
  %v800 = vpop.permute.xlu0 %799
  %802 = vset.pattern.permute.xlu0 2
  %803 = vperm.xlu0 %802, %v669
  %v804 = vpop.permute.xlu0 %803
  %806 = vset.pattern.permute.xlu0 2
  %807 = vperm.xlu0 %806, %v670
  %v808 = vpop.permute.xlu0 %807
  %810 = vset.pattern.permute.xlu0 2
  %811 = vperm.xlu0 %810, %v671
  %v812 = vpop.permute.xlu0 %811
  %v814 = vmul.f32 %v794, %v800
  %v815 = vmul.f32 %v790, %v800
  %v816 = vmul.f32 %v795, %v804
  %v817 = vmul.f32 %v791, %v804
  %v818 = vmul.f32 %v796, %v808
  %v819 = vmul.f32 %v792, %v808
  %v820 = vmul.f32 %v797, %v812
  %v821 = vmul.f32 %v793, %v812
  %s822 = scalar_lea.vmem %s4, 1
  %v823 = vld [vmem:[%s822] ss:$8 sm:$0x3]
  %v825 = vperm.slane %v823, 0
  %v826 = vperm.slane %v823, 1
  %v829 = vmul.f32 %v814, %v825
  %v830 = vmul.f32 %v815, %v826
  %v831 = vmul.f32 %v816, %v825
  %v832 = vmul.f32 %v817, %v826
  %v833 = vmul.f32 %v818, %v825
  %v834 = vmul.f32 %v819, %v826
  %v835 = vmul.f32 %v820, %v825
  %v836 = vmul.f32 %v821, %v826
  %v837 = vadd.f32 %v765, %v829
  %v838 = vadd.f32 %v766, %v830
  %v839 = vadd.f32 %v767, %v831
  %v840 = vadd.f32 %v768, %v832
  %v841 = vadd.f32 %v769, %v833
  %v842 = vadd.f32 %v770, %v834
  %v843 = vadd.f32 %v771, %v835
  %v844 = vadd.f32 %v772, %v836
  %845 = vrot.lane.b32.xlu0 %v660, 15
  %v846 = vpop.permute.xlu0 %845
  %847 = vrot.lane.b32.xlu0 %v662, 15
  %v848 = vpop.permute.xlu0 %847
  %849 = vrot.lane.b32.xlu0 %v664, 15
  %v850 = vpop.permute.xlu0 %849
  %851 = vrot.lane.b32.xlu0 %v666, 15
  %v852 = vpop.permute.xlu0 %851
  %853 = vrot.lane.b32.xlu0 %v661, 15
  %v854 = vpop.permute.xlu0 %853
  %855 = vrot.lane.b32.xlu0 %v663, 15
  %v856 = vpop.permute.xlu0 %855
  %857 = vrot.lane.b32.xlu0 %v665, 15
  %v858 = vpop.permute.xlu0 %857
  %859 = vrot.lane.b32.xlu0 %v667, 15
  %v860 = vpop.permute.xlu0 %859
  %vm861 = vcmp.lt.s32.totalorder %v717, 15
  %v862 = vsel %vm861, %v846, %v854
  %v863 = vsel %vm861, %v848, %v856
  %v864 = vsel %vm861, %v850, %v858
  %v865 = vsel %vm861, %v852, %v860
  %v866 = vsel %vm861, %v854, %v846
  %v867 = vsel %vm861, %v856, %v848
  %v868 = vsel %vm861, %v858, %v850
  %v869 = vsel %vm861, %v860, %v852
  %870 = vset.pattern.permute.xlu0 3
  %871 = vperm.xlu0 %870, %v668
  %v872 = vpop.permute.xlu0 %871
  %874 = vset.pattern.permute.xlu0 3
  %875 = vperm.xlu0 %874, %v669
  %v876 = vpop.permute.xlu0 %875
  %878 = vset.pattern.permute.xlu0 3
  %879 = vperm.xlu0 %878, %v670
  %v880 = vpop.permute.xlu0 %879
  %882 = vset.pattern.permute.xlu0 3
  %883 = vperm.xlu0 %882, %v671
  %v884 = vpop.permute.xlu0 %883
  %v886 = vmul.f32 %v866, %v872
  %v887 = vmul.f32 %v862, %v872
  %v888 = vmul.f32 %v867, %v876
  %v889 = vmul.f32 %v863, %v876
  %v890 = vmul.f32 %v868, %v880
  %v891 = vmul.f32 %v864, %v880
  %v892 = vmul.f32 %v869, %v884
  %v893 = vmul.f32 %v865, %v884
  %s894 = scalar_lea.vmem %s4, 2
  %v895 = vld [vmem:[%s894] ss:$8 sm:$0x3]
  %v897 = vperm.slane %v895, 0
  %v898 = vperm.slane %v895, 1
  %v901 = vmul.f32 %v886, %v897
  %v902 = vmul.f32 %v887, %v898
  %v903 = vmul.f32 %v888, %v897
  %v904 = vmul.f32 %v889, %v898
  %v905 = vmul.f32 %v890, %v897
  %v906 = vmul.f32 %v891, %v898
  %v907 = vmul.f32 %v892, %v897
  %v908 = vmul.f32 %v893, %v898
  %v909 = vadd.f32 %v837, %v901
  %v910 = vadd.f32 %v838, %v902
  %v911 = vadd.f32 %v839, %v903
  %v912 = vadd.f32 %v840, %v904
  %v913 = vadd.f32 %v841, %v905
  %v914 = vadd.f32 %v842, %v906
  %v915 = vadd.f32 %v843, %v907
  %v916 = vadd.f32 %v844, %v908
  %917 = vrot.lane.b32.xlu0 %v660, 1
  %v918 = vpop.permute.xlu0 %917
  %919 = vrot.lane.b32.xlu0 %v662, 1
  %v920 = vpop.permute.xlu0 %919
  %921 = vrot.lane.b32.xlu0 %v664, 1
  %v922 = vpop.permute.xlu0 %921
  %923 = vrot.lane.b32.xlu0 %v666, 1
  %v924 = vpop.permute.xlu0 %923
  %925 = vrot.lane.b32.xlu0 %v661, 1
  %v926 = vpop.permute.xlu0 %925
  %927 = vrot.lane.b32.xlu0 %v663, 1
  %v928 = vpop.permute.xlu0 %927
  %929 = vrot.lane.b32.xlu0 %v665, 1
  %v930 = vpop.permute.xlu0 %929
  %931 = vrot.lane.b32.xlu0 %v667, 1
  %v932 = vpop.permute.xlu0 %931
  %vm933 = vcmp.lt.s32.totalorder %v717, 1
  %v934 = vsel %vm933, %v918, %v926
  %v935 = vsel %vm933, %v920, %v928
  %v936 = vsel %vm933, %v922, %v930
  %v937 = vsel %vm933, %v924, %v932
  %v938 = vsel %vm933, %v926, %v918
  %v939 = vsel %vm933, %v928, %v920
  %v940 = vsel %vm933, %v930, %v922
  %v941 = vsel %vm933, %v932, %v924
  %942 = vset.pattern.permute.xlu0 4
  %943 = vperm.xlu0 %942, %v668
  %v944 = vpop.permute.xlu0 %943
  %946 = vset.pattern.permute.xlu0 4
  %947 = vperm.xlu0 %946, %v669
  %v948 = vpop.permute.xlu0 %947
  %950 = vset.pattern.permute.xlu0 4
  %951 = vperm.xlu0 %950, %v670
  %v952 = vpop.permute.xlu0 %951
  %954 = vset.pattern.permute.xlu0 4
  %955 = vperm.xlu0 %954, %v671
  %v956 = vpop.permute.xlu0 %955
  %v958 = vmul.f32 %v938, %v944
  %v959 = vmul.f32 %v934, %v944
  %v960 = vmul.f32 %v939, %v948
  %v961 = vmul.f32 %v935, %v948
  %v962 = vmul.f32 %v940, %v952
  %v963 = vmul.f32 %v936, %v952
  %v964 = vmul.f32 %v941, %v956
  %v965 = vmul.f32 %v937, %v956
  %s966 = scalar_lea.vmem %s4, 3
  %v967 = vld [vmem:[%s966] ss:$8 sm:$0x3]
  %v969 = vperm.slane %v967, 0
  %v970 = vperm.slane %v967, 1
  %v973 = vmul.f32 %v958, %v969
  %v974 = vmul.f32 %v959, %v970
  %v975 = vmul.f32 %v960, %v969
  %v976 = vmul.f32 %v961, %v970
  %v977 = vmul.f32 %v962, %v969
  %v978 = vmul.f32 %v963, %v970
  %v979 = vmul.f32 %v964, %v969
  %v980 = vmul.f32 %v965, %v970
  %v981 = vadd.f32 %v909, %v973
  %v982 = vadd.f32 %v910, %v974
  %v983 = vadd.f32 %v911, %v975
  %v984 = vadd.f32 %v912, %v976
  %v985 = vadd.f32 %v913, %v977
  %v986 = vadd.f32 %v914, %v978
  %v987 = vadd.f32 %v915, %v979
  %v988 = vadd.f32 %v916, %v980
  %989 = vrot.lane.b32.xlu0 %v660, 127
  %v990 = vpop.permute.xlu0 %989
  %991 = vrot.lane.b32.xlu0 %v662, 127
  %v992 = vpop.permute.xlu0 %991
  %993 = vrot.lane.b32.xlu0 %v664, 127
  %v994 = vpop.permute.xlu0 %993
  %995 = vrot.lane.b32.xlu0 %v666, 127
  %v996 = vpop.permute.xlu0 %995
  %997 = vrot.lane.b32.xlu0 %v661, 127
  %v998 = vpop.permute.xlu0 %997
  %999 = vrot.lane.b32.xlu0 %v663, 127
  %v1000 = vpop.permute.xlu0 %999
  %1001 = vrot.lane.b32.xlu0 %v665, 127
  %v1002 = vpop.permute.xlu0 %1001
  %1003 = vrot.lane.b32.xlu0 %v667, 127
  %v1004 = vpop.permute.xlu0 %1003
  %vm1005 = vcmp.lt.s32.totalorder %v717, 127
  %v1006 = vsel %vm1005, %v990, %v998
  %v1007 = vsel %vm1005, %v992, %v1000
  %v1008 = vsel %vm1005, %v994, %v1002
  %v1009 = vsel %vm1005, %v996, %v1004
  %v1010 = vsel %vm1005, %v998, %v990
  %v1011 = vsel %vm1005, %v1000, %v992
  %v1012 = vsel %vm1005, %v1002, %v994
  %v1013 = vsel %vm1005, %v1004, %v996
  %1014 = vset.pattern.permute.xlu0 5
  %1015 = vperm.xlu0 %1014, %v668
  %v1016 = vpop.permute.xlu0 %1015
  %1018 = vset.pattern.permute.xlu0 5
  %1019 = vperm.xlu0 %1018, %v669
  %v1020 = vpop.permute.xlu0 %1019
  %1022 = vset.pattern.permute.xlu0 5
  %1023 = vperm.xlu0 %1022, %v670
  %v1024 = vpop.permute.xlu0 %1023
  %1026 = vset.pattern.permute.xlu0 5
  %1027 = vperm.xlu0 %1026, %v671
  %v1028 = vpop.permute.xlu0 %1027
  %v1030 = vmul.f32 %v1006, %v1016
  %v1031 = vmul.f32 %v1010, %v1016
  %v1032 = vmul.f32 %v1007, %v1020
  %v1033 = vmul.f32 %v1011, %v1020
  %v1034 = vmul.f32 %v1008, %v1024
  %v1035 = vmul.f32 %v1012, %v1024
  %v1036 = vmul.f32 %v1009, %v1028
  %v1037 = vmul.f32 %v1013, %v1028
  %s1038 = scalar_lea.vmem %s4, 4
  %v1039 = vld [vmem:[%s1038] ss:$8 sm:$0x3]
  %v1041 = vperm.slane %v1039, 0
  %v1042 = vperm.slane %v1039, 1
  %v1045 = vmul.f32 %v1030, %v1041
  %v1046 = vmul.f32 %v1031, %v1042
  %v1047 = vmul.f32 %v1032, %v1041
  %v1048 = vmul.f32 %v1033, %v1042
  %v1049 = vmul.f32 %v1034, %v1041
  %v1050 = vmul.f32 %v1035, %v1042
  %v1051 = vmul.f32 %v1036, %v1041
  %v1052 = vmul.f32 %v1037, %v1042
  %v1053 = vadd.f32 %v981, %v1045
  %v1054 = vadd.f32 %v982, %v1046
  %v1055 = vadd.f32 %v983, %v1047
  %v1056 = vadd.f32 %v984, %v1048
  %v1057 = vadd.f32 %v985, %v1049
  %v1058 = vadd.f32 %v986, %v1050
  %v1059 = vadd.f32 %v987, %v1051
  %v1060 = vadd.f32 %v988, %v1052
  %1061 = vrot.lane.b32.xlu0 %v660, 113
  %v1062 = vpop.permute.xlu0 %1061
  %1063 = vrot.lane.b32.xlu0 %v662, 113
  %v1064 = vpop.permute.xlu0 %1063
  %1065 = vrot.lane.b32.xlu0 %v664, 113
  %v1066 = vpop.permute.xlu0 %1065
  %1067 = vrot.lane.b32.xlu0 %v666, 113
  %v1068 = vpop.permute.xlu0 %1067
  %1069 = vrot.lane.b32.xlu0 %v661, 113
  %v1070 = vpop.permute.xlu0 %1069
  %1071 = vrot.lane.b32.xlu0 %v663, 113
  %v1072 = vpop.permute.xlu0 %1071
  %1073 = vrot.lane.b32.xlu0 %v665, 113
  %v1074 = vpop.permute.xlu0 %1073
  %1075 = vrot.lane.b32.xlu0 %v667, 113
  %v1076 = vpop.permute.xlu0 %1075
  %vm1077 = vcmp.lt.s32.totalorder %v717, 113
  %v1078 = vsel %vm1077, %v1062, %v1070
  %v1079 = vsel %vm1077, %v1064, %v1072
  %v1080 = vsel %vm1077, %v1066, %v1074
  %v1081 = vsel %vm1077, %v1068, %v1076
  %v1082 = vsel %vm1077, %v1070, %v1062
  %v1083 = vsel %vm1077, %v1072, %v1064
  %v1084 = vsel %vm1077, %v1074, %v1066
  %v1085 = vsel %vm1077, %v1076, %v1068
  %1086 = vset.pattern.permute.xlu0 6
  %1087 = vperm.xlu0 %1086, %v668
  %v1088 = vpop.permute.xlu0 %1087
  %1090 = vset.pattern.permute.xlu0 6
  %1091 = vperm.xlu0 %1090, %v669
  %v1092 = vpop.permute.xlu0 %1091
  %1094 = vset.pattern.permute.xlu0 6
  %1095 = vperm.xlu0 %1094, %v670
  %v1096 = vpop.permute.xlu0 %1095
  %1098 = vset.pattern.permute.xlu0 6
  %1099 = vperm.xlu0 %1098, %v671
  %v1100 = vpop.permute.xlu0 %1099
  %v1102 = vmul.f32 %v1078, %v1088
  %v1103 = vmul.f32 %v1082, %v1088
  %v1104 = vmul.f32 %v1079, %v1092
  %v1105 = vmul.f32 %v1083, %v1092
  %v1106 = vmul.f32 %v1080, %v1096
  %v1107 = vmul.f32 %v1084, %v1096
  %v1108 = vmul.f32 %v1081, %v1100
  %v1109 = vmul.f32 %v1085, %v1100
  %s1110 = scalar_lea.vmem %s4, 5
  %v1111 = vld [vmem:[%s1110] ss:$8 sm:$0x3]
  %v1113 = vperm.slane %v1111, 0
  %v1114 = vperm.slane %v1111, 1
  %v1117 = vmul.f32 %v1102, %v1113
  %v1118 = vmul.f32 %v1103, %v1114
  %v1119 = vmul.f32 %v1104, %v1113
  %v1120 = vmul.f32 %v1105, %v1114
  %v1121 = vmul.f32 %v1106, %v1113
  %v1122 = vmul.f32 %v1107, %v1114
  %v1123 = vmul.f32 %v1108, %v1113
  %v1124 = vmul.f32 %v1109, %v1114
  %v1125 = vadd.f32 %v1053, %v1117
  %v1126 = vadd.f32 %v1054, %v1118
  %v1127 = vadd.f32 %v1055, %v1119
  %v1128 = vadd.f32 %v1056, %v1120
  %v1129 = vadd.f32 %v1057, %v1121
  %v1130 = vadd.f32 %v1058, %v1122
  %v1131 = vadd.f32 %v1059, %v1123
  %v1132 = vadd.f32 %v1060, %v1124
  %1133 = vrot.lane.b32.xlu0 %v660, 112
  %v1134 = vpop.permute.xlu0 %1133
  %1135 = vrot.lane.b32.xlu0 %v662, 112
  %v1136 = vpop.permute.xlu0 %1135
  %1137 = vrot.lane.b32.xlu0 %v664, 112
  %v1138 = vpop.permute.xlu0 %1137
  %1139 = vrot.lane.b32.xlu0 %v666, 112
  %v1140 = vpop.permute.xlu0 %1139
  %1141 = vrot.lane.b32.xlu0 %v661, 112
  %v1142 = vpop.permute.xlu0 %1141
  %1143 = vrot.lane.b32.xlu0 %v663, 112
  %v1144 = vpop.permute.xlu0 %1143
  %1145 = vrot.lane.b32.xlu0 %v665, 112
  %v1146 = vpop.permute.xlu0 %1145
  %1147 = vrot.lane.b32.xlu0 %v667, 112
  %v1148 = vpop.permute.xlu0 %1147
  %vm1149 = vcmp.lt.s32.totalorder %v717, 112
  %v1150 = vsel %vm1149, %v1134, %v1142
  %v1151 = vsel %vm1149, %v1136, %v1144
  %v1152 = vsel %vm1149, %v1138, %v1146
  %v1153 = vsel %vm1149, %v1140, %v1148
  %v1154 = vsel %vm1149, %v1142, %v1134
  %v1155 = vsel %vm1149, %v1144, %v1136
  %v1156 = vsel %vm1149, %v1146, %v1138
  %v1157 = vsel %vm1149, %v1148, %v1140
  %1158 = vset.pattern.permute.xlu0 7
  %1159 = vperm.xlu0 %1158, %v668
  %v1160 = vpop.permute.xlu0 %1159
  %1162 = vset.pattern.permute.xlu0 7
  %1163 = vperm.xlu0 %1162, %v669
  %v1164 = vpop.permute.xlu0 %1163
  %1166 = vset.pattern.permute.xlu0 7
  %1167 = vperm.xlu0 %1166, %v670
  %v1168 = vpop.permute.xlu0 %1167
  %1170 = vset.pattern.permute.xlu0 7
  %1171 = vperm.xlu0 %1170, %v671
  %v1172 = vpop.permute.xlu0 %1171
  %v1174 = vmul.f32 %v1150, %v1160
  %v1175 = vmul.f32 %v1154, %v1160
  %v1176 = vmul.f32 %v1151, %v1164
  %v1177 = vmul.f32 %v1155, %v1164
  %v1178 = vmul.f32 %v1152, %v1168
  %v1179 = vmul.f32 %v1156, %v1168
  %v1180 = vmul.f32 %v1153, %v1172
  %v1181 = vmul.f32 %v1157, %v1172
  %s1182 = scalar_lea.vmem %s4, 6
  %v1183 = vld [vmem:[%s1182] ss:$8 sm:$0x3]
  %v1185 = vperm.slane %v1183, 0
  %v1186 = vperm.slane %v1183, 1
  %v1189 = vmul.f32 %v1174, %v1185
  %v1190 = vmul.f32 %v1175, %v1186
  %v1191 = vmul.f32 %v1176, %v1185
  %v1192 = vmul.f32 %v1177, %v1186
  %v1193 = vmul.f32 %v1178, %v1185
  %v1194 = vmul.f32 %v1179, %v1186
  %v1195 = vmul.f32 %v1180, %v1185
  %v1196 = vmul.f32 %v1181, %v1186
  %v1197 = vadd.f32 %v1125, %v1189
  %v1198 = vadd.f32 %v1126, %v1190
  %v1199 = vadd.f32 %v1127, %v1191
  %v1200 = vadd.f32 %v1128, %v1192
  %v1201 = vadd.f32 %v1129, %v1193
  %v1202 = vadd.f32 %v1130, %v1194
  %v1203 = vadd.f32 %v1131, %v1195
  %v1204 = vadd.f32 %v1132, %v1196
  %1205 = vrot.lane.b32.xlu0 %v660, 111
  %v1206 = vpop.permute.xlu0 %1205
  %1207 = vrot.lane.b32.xlu0 %v662, 111
  %v1208 = vpop.permute.xlu0 %1207
  %1209 = vrot.lane.b32.xlu0 %v664, 111
  %v1210 = vpop.permute.xlu0 %1209
  %1211 = vrot.lane.b32.xlu0 %v666, 111
  %v1212 = vpop.permute.xlu0 %1211
  %1213 = vrot.lane.b32.xlu0 %v661, 111
  %v1214 = vpop.permute.xlu0 %1213
  %1215 = vrot.lane.b32.xlu0 %v663, 111
  %v1216 = vpop.permute.xlu0 %1215
  %1217 = vrot.lane.b32.xlu0 %v665, 111
  %v1218 = vpop.permute.xlu0 %1217
  %1219 = vrot.lane.b32.xlu0 %v667, 111
  %v1220 = vpop.permute.xlu0 %1219
  %vm1221 = vcmp.lt.s32.totalorder %v717, 111
  %v1222 = vsel %vm1221, %v1206, %v1214
  %v1223 = vsel %vm1221, %v1208, %v1216
  %v1224 = vsel %vm1221, %v1210, %v1218
  %v1225 = vsel %vm1221, %v1212, %v1220
  %v1226 = vsel %vm1221, %v1214, %v1206
  %v1227 = vsel %vm1221, %v1216, %v1208
  %v1228 = vsel %vm1221, %v1218, %v1210
  %v1229 = vsel %vm1221, %v1220, %v1212
  %1230 = vset.pattern.permute.xlu0 8
  %1231 = vperm.xlu0 %1230, %v668
  %v1232 = vpop.permute.xlu0 %1231
  %1234 = vset.pattern.permute.xlu0 8
  %1235 = vperm.xlu0 %1234, %v669
  %v1236 = vpop.permute.xlu0 %1235
  %1238 = vset.pattern.permute.xlu0 8
  %1239 = vperm.xlu0 %1238, %v670
  %v1240 = vpop.permute.xlu0 %1239
  %1242 = vset.pattern.permute.xlu0 8
  %1243 = vperm.xlu0 %1242, %v671
  %v1244 = vpop.permute.xlu0 %1243
  %v1246 = vmul.f32 %v1222, %v1232
  %v1247 = vmul.f32 %v1226, %v1232
  %v1248 = vmul.f32 %v1223, %v1236
  %v1249 = vmul.f32 %v1227, %v1236
  %v1250 = vmul.f32 %v1224, %v1240
  %v1251 = vmul.f32 %v1228, %v1240
  %v1252 = vmul.f32 %v1225, %v1244
  %v1253 = vmul.f32 %v1229, %v1244
  %s1254 = scalar_lea.vmem %s4, 7
  %v1255 = vld [vmem:[%s1254] ss:$8 sm:$0x3]
  %v1257 = vperm.slane %v1255, 0
  %v1258 = vperm.slane %v1255, 1
  %v1261 = vmul.f32 %v1246, %v1257
  %v1262 = vmul.f32 %v1247, %v1258
  %v1263 = vmul.f32 %v1248, %v1257
  %v1264 = vmul.f32 %v1249, %v1258
  %v1265 = vmul.f32 %v1250, %v1257
  %v1266 = vmul.f32 %v1251, %v1258
  %v1267 = vmul.f32 %v1252, %v1257
  %v1268 = vmul.f32 %v1253, %v1258
  %v1269 = vadd.f32 %v1197, %v1261
  %v1270 = vadd.f32 %v1198, %v1262
  %v1271 = vadd.f32 %v1199, %v1263
  %v1272 = vadd.f32 %v1200, %v1264
  %v1273 = vadd.f32 %v1201, %v1265
  %v1274 = vadd.f32 %v1202, %v1266
  %v1275 = vadd.f32 %v1203, %v1267
  %v1276 = vadd.f32 %v1204, %v1268
  %1277 = vrot.lane.b32.xlu0 %v660, 34
  %v1278 = vpop.permute.xlu0 %1277
  %1279 = vrot.lane.b32.xlu0 %v662, 34
  %v1280 = vpop.permute.xlu0 %1279
  %1281 = vrot.lane.b32.xlu0 %v664, 34
  %v1282 = vpop.permute.xlu0 %1281
  %1283 = vrot.lane.b32.xlu0 %v666, 34
  %v1284 = vpop.permute.xlu0 %1283
  %1285 = vrot.lane.b32.xlu0 %v661, 34
  %v1286 = vpop.permute.xlu0 %1285
  %1287 = vrot.lane.b32.xlu0 %v663, 34
  %v1288 = vpop.permute.xlu0 %1287
  %1289 = vrot.lane.b32.xlu0 %v665, 34
  %v1290 = vpop.permute.xlu0 %1289
  %1291 = vrot.lane.b32.xlu0 %v667, 34
  %v1292 = vpop.permute.xlu0 %1291
  %vm1293 = vcmp.lt.s32.totalorder %v717, 34
  %v1294 = vsel %vm1293, %v1278, %v1286
  %v1295 = vsel %vm1293, %v1280, %v1288
  %v1296 = vsel %vm1293, %v1282, %v1290
  %v1297 = vsel %vm1293, %v1284, %v1292
  %v1298 = vsel %vm1293, %v1286, %v1278
  %v1299 = vsel %vm1293, %v1288, %v1280
  %v1300 = vsel %vm1293, %v1290, %v1282
  %v1301 = vsel %vm1293, %v1292, %v1284
  %1302 = vset.pattern.permute.xlu0 9
  %1303 = vperm.xlu0 %1302, %v668
  %v1304 = vpop.permute.xlu0 %1303
  %1306 = vset.pattern.permute.xlu0 9
  %1307 = vperm.xlu0 %1306, %v669
  %v1308 = vpop.permute.xlu0 %1307
  %1310 = vset.pattern.permute.xlu0 9
  %1311 = vperm.xlu0 %1310, %v670
  %v1312 = vpop.permute.xlu0 %1311
  %1314 = vset.pattern.permute.xlu0 9
  %1315 = vperm.xlu0 %1314, %v671
  %v1316 = vpop.permute.xlu0 %1315
  %v1318 = vmul.f32 %v1298, %v1304
  %v1319 = vmul.f32 %v1294, %v1304
  %v1320 = vmul.f32 %v1299, %v1308
  %v1321 = vmul.f32 %v1295, %v1308
  %v1322 = vmul.f32 %v1300, %v1312
  %v1323 = vmul.f32 %v1296, %v1312
  %v1324 = vmul.f32 %v1301, %v1316
  %v1325 = vmul.f32 %v1297, %v1316
  %s1326 = scalar_lea.vmem %s4, 16
  %v1327 = vld [vmem:[%s1326] ss:$8 sm:$0x3]
  %v1329 = vperm.slane %v1327, 0
  %v1330 = vperm.slane %v1327, 1
  %v1333 = vmul.f32 %v1318, %v1329
  %v1334 = vmul.f32 %v1319, %v1330
  %v1335 = vmul.f32 %v1320, %v1329
  %v1336 = vmul.f32 %v1321, %v1330
  %v1337 = vmul.f32 %v1322, %v1329
  %v1338 = vmul.f32 %v1323, %v1330
  %v1339 = vmul.f32 %v1324, %v1329
  %v1340 = vmul.f32 %v1325, %v1330
  %v1341 = vadd.f32 %v1269, %v1333
  %v1342 = vadd.f32 %v1270, %v1334
  %v1343 = vadd.f32 %v1271, %v1335
  %v1344 = vadd.f32 %v1272, %v1336
  %v1345 = vadd.f32 %v1273, %v1337
  %v1346 = vadd.f32 %v1274, %v1338
  %v1347 = vadd.f32 %v1275, %v1339
  %v1348 = vadd.f32 %v1276, %v1340
  %1349 = vrot.lane.b32.xlu0 %v660, 32
  %v1350 = vpop.permute.xlu0 %1349
  %1351 = vrot.lane.b32.xlu0 %v662, 32
  %v1352 = vpop.permute.xlu0 %1351
  %1353 = vrot.lane.b32.xlu0 %v664, 32
  %v1354 = vpop.permute.xlu0 %1353
  %1355 = vrot.lane.b32.xlu0 %v666, 32
  %v1356 = vpop.permute.xlu0 %1355
  %1357 = vrot.lane.b32.xlu0 %v661, 32
  %v1358 = vpop.permute.xlu0 %1357
  %1359 = vrot.lane.b32.xlu0 %v663, 32
  %v1360 = vpop.permute.xlu0 %1359
  %1361 = vrot.lane.b32.xlu0 %v665, 32
  %v1362 = vpop.permute.xlu0 %1361
  %1363 = vrot.lane.b32.xlu0 %v667, 32
  %v1364 = vpop.permute.xlu0 %1363
  %vm1365 = vcmp.lt.s32.totalorder %v717, 32
  %v1366 = vsel %vm1365, %v1350, %v1358
  %v1367 = vsel %vm1365, %v1352, %v1360
  %v1368 = vsel %vm1365, %v1354, %v1362
  %v1369 = vsel %vm1365, %v1356, %v1364
  %v1370 = vsel %vm1365, %v1358, %v1350
  %v1371 = vsel %vm1365, %v1360, %v1352
  %v1372 = vsel %vm1365, %v1362, %v1354
  %v1373 = vsel %vm1365, %v1364, %v1356
  %1374 = vset.pattern.permute.xlu0 10
  %1375 = vperm.xlu0 %1374, %v668
  %v1376 = vpop.permute.xlu0 %1375
  %1378 = vset.pattern.permute.xlu0 10
  %1379 = vperm.xlu0 %1378, %v669
  %v1380 = vpop.permute.xlu0 %1379
  %1382 = vset.pattern.permute.xlu0 10
  %1383 = vperm.xlu0 %1382, %v670
  %v1384 = vpop.permute.xlu0 %1383
  %1386 = vset.pattern.permute.xlu0 10
  %1387 = vperm.xlu0 %1386, %v671
  %v1388 = vpop.permute.xlu0 %1387
  %v1390 = vmul.f32 %v1370, %v1376
  %v1391 = vmul.f32 %v1366, %v1376
  %v1392 = vmul.f32 %v1371, %v1380
  %v1393 = vmul.f32 %v1367, %v1380
  %v1394 = vmul.f32 %v1372, %v1384
  %v1395 = vmul.f32 %v1368, %v1384
  %v1396 = vmul.f32 %v1373, %v1388
  %v1397 = vmul.f32 %v1369, %v1388
  %s1398 = scalar_lea.vmem %s4, 17
  %v1399 = vld [vmem:[%s1398] ss:$8 sm:$0x3]
  %v1401 = vperm.slane %v1399, 0
  %v1402 = vperm.slane %v1399, 1
  %v1405 = vmul.f32 %v1390, %v1401
  %v1406 = vmul.f32 %v1391, %v1402
  %v1407 = vmul.f32 %v1392, %v1401
  %v1408 = vmul.f32 %v1393, %v1402
  %v1409 = vmul.f32 %v1394, %v1401
  %v1410 = vmul.f32 %v1395, %v1402
  %v1411 = vmul.f32 %v1396, %v1401
  %v1412 = vmul.f32 %v1397, %v1402
  %v1413 = vadd.f32 %v1341, %v1405
  %v1414 = vadd.f32 %v1342, %v1406
  %v1415 = vadd.f32 %v1343, %v1407
  %v1416 = vadd.f32 %v1344, %v1408
  %v1417 = vadd.f32 %v1345, %v1409
  %v1418 = vadd.f32 %v1346, %v1410
  %v1419 = vadd.f32 %v1347, %v1411
  %v1420 = vadd.f32 %v1348, %v1412
  %1421 = vrot.lane.b32.xlu0 %v660, 30
  %v1422 = vpop.permute.xlu0 %1421
  %1423 = vrot.lane.b32.xlu0 %v662, 30
  %v1424 = vpop.permute.xlu0 %1423
  %1425 = vrot.lane.b32.xlu0 %v664, 30
  %v1426 = vpop.permute.xlu0 %1425
  %1427 = vrot.lane.b32.xlu0 %v666, 30
  %v1428 = vpop.permute.xlu0 %1427
  %1429 = vrot.lane.b32.xlu0 %v661, 30
  %v1430 = vpop.permute.xlu0 %1429
  %1431 = vrot.lane.b32.xlu0 %v663, 30
  %v1432 = vpop.permute.xlu0 %1431
  %1433 = vrot.lane.b32.xlu0 %v665, 30
  %v1434 = vpop.permute.xlu0 %1433
  %1435 = vrot.lane.b32.xlu0 %v667, 30
  %v1436 = vpop.permute.xlu0 %1435
  %vm1437 = vcmp.lt.s32.totalorder %v717, 30
  %v1438 = vsel %vm1437, %v1422, %v1430
  %v1439 = vsel %vm1437, %v1424, %v1432
  %v1440 = vsel %vm1437, %v1426, %v1434
  %v1441 = vsel %vm1437, %v1428, %v1436
  %v1442 = vsel %vm1437, %v1430, %v1422
  %v1443 = vsel %vm1437, %v1432, %v1424
  %v1444 = vsel %vm1437, %v1434, %v1426
  %v1445 = vsel %vm1437, %v1436, %v1428
  %1446 = vset.pattern.permute.xlu0 11
  %1447 = vperm.xlu0 %1446, %v668
  %v1448 = vpop.permute.xlu0 %1447
  %1450 = vset.pattern.permute.xlu0 11
  %1451 = vperm.xlu0 %1450, %v669
  %v1452 = vpop.permute.xlu0 %1451
  %1454 = vset.pattern.permute.xlu0 11
  %1455 = vperm.xlu0 %1454, %v670
  %v1456 = vpop.permute.xlu0 %1455
  %1458 = vset.pattern.permute.xlu0 11
  %1459 = vperm.xlu0 %1458, %v671
  %v1460 = vpop.permute.xlu0 %1459
  %v1462 = vmul.f32 %v1442, %v1448
  %v1463 = vmul.f32 %v1438, %v1448
  %v1464 = vmul.f32 %v1443, %v1452
  %v1465 = vmul.f32 %v1439, %v1452
  %v1466 = vmul.f32 %v1444, %v1456
  %v1467 = vmul.f32 %v1440, %v1456
  %v1468 = vmul.f32 %v1445, %v1460
  %v1469 = vmul.f32 %v1441, %v1460
  %s1470 = scalar_lea.vmem %s4, 18
  %v1471 = vld [vmem:[%s1470] ss:$8 sm:$0x3]
  %v1473 = vperm.slane %v1471, 0
  %v1474 = vperm.slane %v1471, 1
  %v1477 = vmul.f32 %v1462, %v1473
  %v1478 = vmul.f32 %v1463, %v1474
  %v1479 = vmul.f32 %v1464, %v1473
  %v1480 = vmul.f32 %v1465, %v1474
  %v1481 = vmul.f32 %v1466, %v1473
  %v1482 = vmul.f32 %v1467, %v1474
  %v1483 = vmul.f32 %v1468, %v1473
  %v1484 = vmul.f32 %v1469, %v1474
  %v1485 = vadd.f32 %v1413, %v1477
  %v1486 = vadd.f32 %v1414, %v1478
  %v1487 = vadd.f32 %v1415, %v1479
  %v1488 = vadd.f32 %v1416, %v1480
  %v1489 = vadd.f32 %v1417, %v1481
  %v1490 = vadd.f32 %v1418, %v1482
  %v1491 = vadd.f32 %v1419, %v1483
  %v1492 = vadd.f32 %v1420, %v1484
  %1493 = vrot.lane.b32.xlu0 %v660, 2
  %v1494 = vpop.permute.xlu0 %1493
  %1495 = vrot.lane.b32.xlu0 %v662, 2
  %v1496 = vpop.permute.xlu0 %1495
  %1497 = vrot.lane.b32.xlu0 %v664, 2
  %v1498 = vpop.permute.xlu0 %1497
  %1499 = vrot.lane.b32.xlu0 %v666, 2
  %v1500 = vpop.permute.xlu0 %1499
  %1501 = vrot.lane.b32.xlu0 %v661, 2
  %v1502 = vpop.permute.xlu0 %1501
  %1503 = vrot.lane.b32.xlu0 %v663, 2
  %v1504 = vpop.permute.xlu0 %1503
  %1505 = vrot.lane.b32.xlu0 %v665, 2
  %v1506 = vpop.permute.xlu0 %1505
  %1507 = vrot.lane.b32.xlu0 %v667, 2
  %v1508 = vpop.permute.xlu0 %1507
  %vm1509 = vcmp.lt.s32.totalorder %v717, 2
  %v1510 = vsel %vm1509, %v1494, %v1502
  %v1511 = vsel %vm1509, %v1496, %v1504
  %v1512 = vsel %vm1509, %v1498, %v1506
  %v1513 = vsel %vm1509, %v1500, %v1508
  %v1514 = vsel %vm1509, %v1502, %v1494
  %v1515 = vsel %vm1509, %v1504, %v1496
  %v1516 = vsel %vm1509, %v1506, %v1498
  %v1517 = vsel %vm1509, %v1508, %v1500
  %1518 = vset.pattern.permute.xlu0 12
  %1519 = vperm.xlu0 %1518, %v668
  %v1520 = vpop.permute.xlu0 %1519
  %1522 = vset.pattern.permute.xlu0 12
  %1523 = vperm.xlu0 %1522, %v669
  %v1524 = vpop.permute.xlu0 %1523
  %1526 = vset.pattern.permute.xlu0 12
  %1527 = vperm.xlu0 %1526, %v670
  %v1528 = vpop.permute.xlu0 %1527
  %1530 = vset.pattern.permute.xlu0 12
  %1531 = vperm.xlu0 %1530, %v671
  %v1532 = vpop.permute.xlu0 %1531
  %v1534 = vmul.f32 %v1514, %v1520
  %v1535 = vmul.f32 %v1510, %v1520
  %v1536 = vmul.f32 %v1515, %v1524
  %v1537 = vmul.f32 %v1511, %v1524
  %v1538 = vmul.f32 %v1516, %v1528
  %v1539 = vmul.f32 %v1512, %v1528
  %v1540 = vmul.f32 %v1517, %v1532
  %v1541 = vmul.f32 %v1513, %v1532
  %s1542 = scalar_lea.vmem %s4, 19
  %v1543 = vld [vmem:[%s1542] ss:$8 sm:$0x3]
  %v1545 = vperm.slane %v1543, 0
  %v1546 = vperm.slane %v1543, 1
  %v1549 = vmul.f32 %v1534, %v1545
  %v1550 = vmul.f32 %v1535, %v1546
  %v1551 = vmul.f32 %v1536, %v1545
  %v1552 = vmul.f32 %v1537, %v1546
  %v1553 = vmul.f32 %v1538, %v1545
  %v1554 = vmul.f32 %v1539, %v1546
  %v1555 = vmul.f32 %v1540, %v1545
  %v1556 = vmul.f32 %v1541, %v1546
  %v1557 = vadd.f32 %v1485, %v1549
  %v1558 = vadd.f32 %v1486, %v1550
  %v1559 = vadd.f32 %v1487, %v1551
  %v1560 = vadd.f32 %v1488, %v1552
  %v1561 = vadd.f32 %v1489, %v1553
  %v1562 = vadd.f32 %v1490, %v1554
  %v1563 = vadd.f32 %v1491, %v1555
  %v1564 = vadd.f32 %v1492, %v1556
  %1565 = vrot.lane.b32.xlu0 %v660, 126
  %v1566 = vpop.permute.xlu0 %1565
  %1567 = vrot.lane.b32.xlu0 %v662, 126
  %v1568 = vpop.permute.xlu0 %1567
  %1569 = vrot.lane.b32.xlu0 %v664, 126
  %v1570 = vpop.permute.xlu0 %1569
  %1571 = vrot.lane.b32.xlu0 %v666, 126
  %v1572 = vpop.permute.xlu0 %1571
  %1573 = vrot.lane.b32.xlu0 %v661, 126
  %v1574 = vpop.permute.xlu0 %1573
  %1575 = vrot.lane.b32.xlu0 %v663, 126
  %v1576 = vpop.permute.xlu0 %1575
  %1577 = vrot.lane.b32.xlu0 %v665, 126
  %v1578 = vpop.permute.xlu0 %1577
  %1579 = vrot.lane.b32.xlu0 %v667, 126
  %v1580 = vpop.permute.xlu0 %1579
  %vm1581 = vcmp.lt.s32.totalorder %v717, 126
  %v1582 = vsel %vm1581, %v1566, %v1574
  %v1583 = vsel %vm1581, %v1568, %v1576
  %v1584 = vsel %vm1581, %v1570, %v1578
  %v1585 = vsel %vm1581, %v1572, %v1580
  %v1586 = vsel %vm1581, %v1574, %v1566
  %v1587 = vsel %vm1581, %v1576, %v1568
  %v1588 = vsel %vm1581, %v1578, %v1570
  %v1589 = vsel %vm1581, %v1580, %v1572
  %1590 = vset.pattern.permute.xlu0 13
  %1591 = vperm.xlu0 %1590, %v668
  %v1592 = vpop.permute.xlu0 %1591
  %1594 = vset.pattern.permute.xlu0 13
  %1595 = vperm.xlu0 %1594, %v669
  %v1596 = vpop.permute.xlu0 %1595
  %1598 = vset.pattern.permute.xlu0 13
  %1599 = vperm.xlu0 %1598, %v670
  %v1600 = vpop.permute.xlu0 %1599
  %1602 = vset.pattern.permute.xlu0 13
  %1603 = vperm.xlu0 %1602, %v671
  %v1604 = vpop.permute.xlu0 %1603
  %v1606 = vmul.f32 %v1582, %v1592
  %v1607 = vmul.f32 %v1586, %v1592
  %v1608 = vmul.f32 %v1583, %v1596
  %v1609 = vmul.f32 %v1587, %v1596
  %v1610 = vmul.f32 %v1584, %v1600
  %v1611 = vmul.f32 %v1588, %v1600
  %v1612 = vmul.f32 %v1585, %v1604
  %v1613 = vmul.f32 %v1589, %v1604
  %s1614 = scalar_lea.vmem %s4, 20
  %v1615 = vld [vmem:[%s1614] ss:$8 sm:$0x3]
  %v1617 = vperm.slane %v1615, 0
  %v1618 = vperm.slane %v1615, 1
  %v1621 = vmul.f32 %v1606, %v1617
  %v1622 = vmul.f32 %v1607, %v1618
  %v1623 = vmul.f32 %v1608, %v1617
  %v1624 = vmul.f32 %v1609, %v1618
  %v1625 = vmul.f32 %v1610, %v1617
  %v1626 = vmul.f32 %v1611, %v1618
  %v1627 = vmul.f32 %v1612, %v1617
  %v1628 = vmul.f32 %v1613, %v1618
  %v1629 = vadd.f32 %v1557, %v1621
  %v1630 = vadd.f32 %v1558, %v1622
  %v1631 = vadd.f32 %v1559, %v1623
  %v1632 = vadd.f32 %v1560, %v1624
  %v1633 = vadd.f32 %v1561, %v1625
  %v1634 = vadd.f32 %v1562, %v1626
  %v1635 = vadd.f32 %v1563, %v1627
  %v1636 = vadd.f32 %v1564, %v1628
  %1637 = vrot.lane.b32.xlu0 %v660, 98
  %v1638 = vpop.permute.xlu0 %1637
  %1639 = vrot.lane.b32.xlu0 %v662, 98
  %v1640 = vpop.permute.xlu0 %1639
  %1641 = vrot.lane.b32.xlu0 %v664, 98
  %v1642 = vpop.permute.xlu0 %1641
  %1643 = vrot.lane.b32.xlu0 %v666, 98
  %v1644 = vpop.permute.xlu0 %1643
  %1645 = vrot.lane.b32.xlu0 %v661, 98
  %v1646 = vpop.permute.xlu0 %1645
  %1647 = vrot.lane.b32.xlu0 %v663, 98
  %v1648 = vpop.permute.xlu0 %1647
  %1649 = vrot.lane.b32.xlu0 %v665, 98
  %v1650 = vpop.permute.xlu0 %1649
  %1651 = vrot.lane.b32.xlu0 %v667, 98
  %v1652 = vpop.permute.xlu0 %1651
  %vm1653 = vcmp.lt.s32.totalorder %v717, 98
  %v1654 = vsel %vm1653, %v1638, %v1646
  %v1655 = vsel %vm1653, %v1640, %v1648
  %v1656 = vsel %vm1653, %v1642, %v1650
  %v1657 = vsel %vm1653, %v1644, %v1652
  %v1658 = vsel %vm1653, %v1646, %v1638
  %v1659 = vsel %vm1653, %v1648, %v1640
  %v1660 = vsel %vm1653, %v1650, %v1642
  %v1661 = vsel %vm1653, %v1652, %v1644
  %1662 = vset.pattern.permute.xlu0 14
  %1663 = vperm.xlu0 %1662, %v668
  %v1664 = vpop.permute.xlu0 %1663
  %1666 = vset.pattern.permute.xlu0 14
  %1667 = vperm.xlu0 %1666, %v669
  %v1668 = vpop.permute.xlu0 %1667
  %1670 = vset.pattern.permute.xlu0 14
  %1671 = vperm.xlu0 %1670, %v670
  %v1672 = vpop.permute.xlu0 %1671
  %1674 = vset.pattern.permute.xlu0 14
  %1675 = vperm.xlu0 %1674, %v671
  %v1676 = vpop.permute.xlu0 %1675
  %v1678 = vmul.f32 %v1654, %v1664
  %v1679 = vmul.f32 %v1658, %v1664
  %v1680 = vmul.f32 %v1655, %v1668
  %v1681 = vmul.f32 %v1659, %v1668
  %v1682 = vmul.f32 %v1656, %v1672
  %v1683 = vmul.f32 %v1660, %v1672
  %v1684 = vmul.f32 %v1657, %v1676
  %v1685 = vmul.f32 %v1661, %v1676
  %s1686 = scalar_lea.vmem %s4, 21
  %v1687 = vld [vmem:[%s1686] ss:$8 sm:$0x3]
  %v1689 = vperm.slane %v1687, 0
  %v1690 = vperm.slane %v1687, 1
  %v1693 = vmul.f32 %v1678, %v1689
  %v1694 = vmul.f32 %v1679, %v1690
  %v1695 = vmul.f32 %v1680, %v1689
  %v1696 = vmul.f32 %v1681, %v1690
  %v1697 = vmul.f32 %v1682, %v1689
  %v1698 = vmul.f32 %v1683, %v1690
  %v1699 = vmul.f32 %v1684, %v1689
  %v1700 = vmul.f32 %v1685, %v1690
  %v1701 = vadd.f32 %v1629, %v1693
  %v1702 = vadd.f32 %v1630, %v1694
  %v1703 = vadd.f32 %v1631, %v1695
  %v1704 = vadd.f32 %v1632, %v1696
  %v1705 = vadd.f32 %v1633, %v1697
  %v1706 = vadd.f32 %v1634, %v1698
  %v1707 = vadd.f32 %v1635, %v1699
  %v1708 = vadd.f32 %v1636, %v1700
  %1709 = vrot.lane.b32.xlu0 %v660, 96
  %v1710 = vpop.permute.xlu0 %1709
  %1711 = vrot.lane.b32.xlu0 %v662, 96
  %v1712 = vpop.permute.xlu0 %1711
  %1713 = vrot.lane.b32.xlu0 %v664, 96
  %v1714 = vpop.permute.xlu0 %1713
  %1715 = vrot.lane.b32.xlu0 %v666, 96
  %v1716 = vpop.permute.xlu0 %1715
  %1717 = vrot.lane.b32.xlu0 %v661, 96
  %v1718 = vpop.permute.xlu0 %1717
  %1719 = vrot.lane.b32.xlu0 %v663, 96
  %v1720 = vpop.permute.xlu0 %1719
  %1721 = vrot.lane.b32.xlu0 %v665, 96
  %v1722 = vpop.permute.xlu0 %1721
  %1723 = vrot.lane.b32.xlu0 %v667, 96
  %v1724 = vpop.permute.xlu0 %1723
  %vm1725 = vcmp.lt.s32.totalorder %v717, 96
  %v1726 = vsel %vm1725, %v1710, %v1718
  %v1727 = vsel %vm1725, %v1712, %v1720
  %v1728 = vsel %vm1725, %v1714, %v1722
  %v1729 = vsel %vm1725, %v1716, %v1724
  %v1730 = vsel %vm1725, %v1718, %v1710
  %v1731 = vsel %vm1725, %v1720, %v1712
  %v1732 = vsel %vm1725, %v1722, %v1714
  %v1733 = vsel %vm1725, %v1724, %v1716
  %1734 = vset.pattern.permute.xlu0 15
  %1735 = vperm.xlu0 %1734, %v668
  %v1736 = vpop.permute.xlu0 %1735
  %1738 = vset.pattern.permute.xlu0 15
  %1739 = vperm.xlu0 %1738, %v669
  %v1740 = vpop.permute.xlu0 %1739
  %1742 = vset.pattern.permute.xlu0 15
  %1743 = vperm.xlu0 %1742, %v670
  %v1744 = vpop.permute.xlu0 %1743
  %1746 = vset.pattern.permute.xlu0 15
  %1747 = vperm.xlu0 %1746, %v671
  %v1748 = vpop.permute.xlu0 %1747
  %v1750 = vmul.f32 %v1726, %v1736
  %v1751 = vmul.f32 %v1730, %v1736
  %v1752 = vmul.f32 %v1727, %v1740
  %v1753 = vmul.f32 %v1731, %v1740
  %v1754 = vmul.f32 %v1728, %v1744
  %v1755 = vmul.f32 %v1732, %v1744
  %v1756 = vmul.f32 %v1729, %v1748
  %v1757 = vmul.f32 %v1733, %v1748
  %s1758 = scalar_lea.vmem %s4, 22
  %v1759 = vld [vmem:[%s1758] ss:$8 sm:$0x3]
  %v1761 = vperm.slane %v1759, 0
  %v1762 = vperm.slane %v1759, 1
  %v1765 = vmul.f32 %v1750, %v1761
  %v1766 = vmul.f32 %v1751, %v1762
  %v1767 = vmul.f32 %v1752, %v1761
  %v1768 = vmul.f32 %v1753, %v1762
  %v1769 = vmul.f32 %v1754, %v1761
  %v1770 = vmul.f32 %v1755, %v1762
  %v1771 = vmul.f32 %v1756, %v1761
  %v1772 = vmul.f32 %v1757, %v1762
  %v1773 = vadd.f32 %v1701, %v1765
  %v1774 = vadd.f32 %v1702, %v1766
  %v1775 = vadd.f32 %v1703, %v1767
  %v1776 = vadd.f32 %v1704, %v1768
  %v1777 = vadd.f32 %v1705, %v1769
  %v1778 = vadd.f32 %v1706, %v1770
  %v1779 = vadd.f32 %v1707, %v1771
  %v1780 = vadd.f32 %v1708, %v1772
  %1781 = vrot.lane.b32.xlu0 %v660, 94
  %v1782 = vpop.permute.xlu0 %1781
  %1783 = vrot.lane.b32.xlu0 %v662, 94
  %v1784 = vpop.permute.xlu0 %1783
  %1785 = vrot.lane.b32.xlu0 %v664, 94
  %v1786 = vpop.permute.xlu0 %1785
  %1787 = vrot.lane.b32.xlu0 %v666, 94
  %v1788 = vpop.permute.xlu0 %1787
  %1789 = vrot.lane.b32.xlu0 %v661, 94
  %v1790 = vpop.permute.xlu0 %1789
  %1791 = vrot.lane.b32.xlu0 %v663, 94
  %v1792 = vpop.permute.xlu0 %1791
  %1793 = vrot.lane.b32.xlu0 %v665, 94
  %v1794 = vpop.permute.xlu0 %1793
  %1795 = vrot.lane.b32.xlu0 %v667, 94
  %v1796 = vpop.permute.xlu0 %1795
  %vm1797 = vcmp.lt.s32.totalorder %v717, 94
  %v1798 = vsel %vm1797, %v1782, %v1790
  %v1799 = vsel %vm1797, %v1784, %v1792
  %v1800 = vsel %vm1797, %v1786, %v1794
  %v1801 = vsel %vm1797, %v1788, %v1796
  %v1802 = vsel %vm1797, %v1790, %v1782
  %v1803 = vsel %vm1797, %v1792, %v1784
  %v1804 = vsel %vm1797, %v1794, %v1786
  %v1805 = vsel %vm1797, %v1796, %v1788
  %1806 = vset.pattern.permute.xlu0 16
  %1807 = vperm.xlu0 %1806, %v668
  %v1808 = vpop.permute.xlu0 %1807
  %1810 = vset.pattern.permute.xlu0 16
  %1811 = vperm.xlu0 %1810, %v669
  %v1812 = vpop.permute.xlu0 %1811
  %1814 = vset.pattern.permute.xlu0 16
  %1815 = vperm.xlu0 %1814, %v670
  %v1816 = vpop.permute.xlu0 %1815
  %1818 = vset.pattern.permute.xlu0 16
  %1819 = vperm.xlu0 %1818, %v671
  %v1820 = vpop.permute.xlu0 %1819
  %v1822 = vmul.f32 %v1798, %v1808
  %v1823 = vmul.f32 %v1802, %v1808
  %v1824 = vmul.f32 %v1799, %v1812
  %v1825 = vmul.f32 %v1803, %v1812
  %v1826 = vmul.f32 %v1800, %v1816
  %v1827 = vmul.f32 %v1804, %v1816
  %v1828 = vmul.f32 %v1801, %v1820
  %v1829 = vmul.f32 %v1805, %v1820
  %s1830 = scalar_lea.vmem %s4, 23
  %v1831 = vld [vmem:[%s1830] ss:$8 sm:$0x3]
  %v1833 = vperm.slane %v1831, 0
  %v1834 = vperm.slane %v1831, 1
  %v1837 = vmul.f32 %v1822, %v1833
  %v1838 = vmul.f32 %v1823, %v1834
  %v1839 = vmul.f32 %v1824, %v1833
  %v1840 = vmul.f32 %v1825, %v1834
  %v1841 = vmul.f32 %v1826, %v1833
  %v1842 = vmul.f32 %v1827, %v1834
  %v1843 = vmul.f32 %v1828, %v1833
  %v1844 = vmul.f32 %v1829, %v1834
  %v1845 = vadd.f32 %v1773, %v1837
  %v1846 = vadd.f32 %v1774, %v1838
  %v1847 = vadd.f32 %v1775, %v1839
  %v1848 = vadd.f32 %v1776, %v1840
  %v1849 = vadd.f32 %v1777, %v1841
  %v1850 = vadd.f32 %v1778, %v1842
  %v1851 = vadd.f32 %v1779, %v1843
  %v1852 = vadd.f32 %v1780, %v1844
  %1853 = vrot.lane.b32.xlu0 %v660, 51
  %v1854 = vpop.permute.xlu0 %1853
  %1855 = vrot.lane.b32.xlu0 %v662, 51
  %v1856 = vpop.permute.xlu0 %1855
  %1857 = vrot.lane.b32.xlu0 %v664, 51
  %v1858 = vpop.permute.xlu0 %1857
  %1859 = vrot.lane.b32.xlu0 %v666, 51
  %v1860 = vpop.permute.xlu0 %1859
  %1861 = vrot.lane.b32.xlu0 %v661, 51
  %v1862 = vpop.permute.xlu0 %1861
  %1863 = vrot.lane.b32.xlu0 %v663, 51
  %v1864 = vpop.permute.xlu0 %1863
  %1865 = vrot.lane.b32.xlu0 %v665, 51
  %v1866 = vpop.permute.xlu0 %1865
  %1867 = vrot.lane.b32.xlu0 %v667, 51
  %v1868 = vpop.permute.xlu0 %1867
  %vm1869 = vcmp.lt.s32.totalorder %v717, 51
  %v1870 = vsel %vm1869, %v1854, %v1862
  %v1871 = vsel %vm1869, %v1856, %v1864
  %v1872 = vsel %vm1869, %v1858, %v1866
  %v1873 = vsel %vm1869, %v1860, %v1868
  %v1874 = vsel %vm1869, %v1862, %v1854
  %v1875 = vsel %vm1869, %v1864, %v1856
  %v1876 = vsel %vm1869, %v1866, %v1858
  %v1877 = vsel %vm1869, %v1868, %v1860
  %1878 = vset.pattern.permute.xlu0 17
  %1879 = vperm.xlu0 %1878, %v668
  %v1880 = vpop.permute.xlu0 %1879
  %1882 = vset.pattern.permute.xlu0 17
  %1883 = vperm.xlu0 %1882, %v669
  %v1884 = vpop.permute.xlu0 %1883
  %1886 = vset.pattern.permute.xlu0 17
  %1887 = vperm.xlu0 %1886, %v670
  %v1888 = vpop.permute.xlu0 %1887
  %1890 = vset.pattern.permute.xlu0 17
  %1891 = vperm.xlu0 %1890, %v671
  %v1892 = vpop.permute.xlu0 %1891
  %v1894 = vmul.f32 %v1874, %v1880
  %v1895 = vmul.f32 %v1870, %v1880
  %v1896 = vmul.f32 %v1875, %v1884
  %v1897 = vmul.f32 %v1871, %v1884
  %v1898 = vmul.f32 %v1876, %v1888
  %v1899 = vmul.f32 %v1872, %v1888
  %v1900 = vmul.f32 %v1877, %v1892
  %v1901 = vmul.f32 %v1873, %v1892
  %s1902 = scalar_lea.vmem %s4, 32
  %v1903 = vld [vmem:[%s1902] ss:$8 sm:$0x3]
  %v1905 = vperm.slane %v1903, 0
  %v1906 = vperm.slane %v1903, 1
  %v1909 = vmul.f32 %v1894, %v1905
  %v1910 = vmul.f32 %v1895, %v1906
  %v1911 = vmul.f32 %v1896, %v1905
  %v1912 = vmul.f32 %v1897, %v1906
  %v1913 = vmul.f32 %v1898, %v1905
  %v1914 = vmul.f32 %v1899, %v1906
  %v1915 = vmul.f32 %v1900, %v1905
  %v1916 = vmul.f32 %v1901, %v1906
  %v1917 = vadd.f32 %v1845, %v1909
  %v1918 = vadd.f32 %v1846, %v1910
  %v1919 = vadd.f32 %v1847, %v1911
  %v1920 = vadd.f32 %v1848, %v1912
  %v1921 = vadd.f32 %v1849, %v1913
  %v1922 = vadd.f32 %v1850, %v1914
  %v1923 = vadd.f32 %v1851, %v1915
  %v1924 = vadd.f32 %v1852, %v1916
  %1925 = vrot.lane.b32.xlu0 %v660, 48
  %v1926 = vpop.permute.xlu0 %1925
  %1927 = vrot.lane.b32.xlu0 %v662, 48
  %v1928 = vpop.permute.xlu0 %1927
  %1929 = vrot.lane.b32.xlu0 %v664, 48
  %v1930 = vpop.permute.xlu0 %1929
  %1931 = vrot.lane.b32.xlu0 %v666, 48
  %v1932 = vpop.permute.xlu0 %1931
  %1933 = vrot.lane.b32.xlu0 %v661, 48
  %v1934 = vpop.permute.xlu0 %1933
  %1935 = vrot.lane.b32.xlu0 %v663, 48
  %v1936 = vpop.permute.xlu0 %1935
  %1937 = vrot.lane.b32.xlu0 %v665, 48
  %v1938 = vpop.permute.xlu0 %1937
  %1939 = vrot.lane.b32.xlu0 %v667, 48
  %v1940 = vpop.permute.xlu0 %1939
  %vm1941 = vcmp.lt.s32.totalorder %v717, 48
  %v1942 = vsel %vm1941, %v1926, %v1934
  %v1943 = vsel %vm1941, %v1928, %v1936
  %v1944 = vsel %vm1941, %v1930, %v1938
  %v1945 = vsel %vm1941, %v1932, %v1940
  %v1946 = vsel %vm1941, %v1934, %v1926
  %v1947 = vsel %vm1941, %v1936, %v1928
  %v1948 = vsel %vm1941, %v1938, %v1930
  %v1949 = vsel %vm1941, %v1940, %v1932
  %1950 = vset.pattern.permute.xlu0 18
  %1951 = vperm.xlu0 %1950, %v668
  %v1952 = vpop.permute.xlu0 %1951
  %1954 = vset.pattern.permute.xlu0 18
  %1955 = vperm.xlu0 %1954, %v669
  %v1956 = vpop.permute.xlu0 %1955
  %1958 = vset.pattern.permute.xlu0 18
  %1959 = vperm.xlu0 %1958, %v670
  %v1960 = vpop.permute.xlu0 %1959
  %1962 = vset.pattern.permute.xlu0 18
  %1963 = vperm.xlu0 %1962, %v671
  %v1964 = vpop.permute.xlu0 %1963
  %v1966 = vmul.f32 %v1946, %v1952
  %v1967 = vmul.f32 %v1942, %v1952
  %v1968 = vmul.f32 %v1947, %v1956
  %v1969 = vmul.f32 %v1943, %v1956
  %v1970 = vmul.f32 %v1948, %v1960
  %v1971 = vmul.f32 %v1944, %v1960
  %v1972 = vmul.f32 %v1949, %v1964
  %v1973 = vmul.f32 %v1945, %v1964
  %s1974 = scalar_lea.vmem %s4, 33
  %v1975 = vld [vmem:[%s1974] ss:$8 sm:$0x3]
  %v1977 = vperm.slane %v1975, 0
  %v1978 = vperm.slane %v1975, 1
  %v1981 = vmul.f32 %v1966, %v1977
  %v1982 = vmul.f32 %v1967, %v1978
  %v1983 = vmul.f32 %v1968, %v1977
  %v1984 = vmul.f32 %v1969, %v1978
  %v1985 = vmul.f32 %v1970, %v1977
  %v1986 = vmul.f32 %v1971, %v1978
  %v1987 = vmul.f32 %v1972, %v1977
  %v1988 = vmul.f32 %v1973, %v1978
  %v1989 = vadd.f32 %v1917, %v1981
  %v1990 = vadd.f32 %v1918, %v1982
  %v1991 = vadd.f32 %v1919, %v1983
  %v1992 = vadd.f32 %v1920, %v1984
  %v1993 = vadd.f32 %v1921, %v1985
  %v1994 = vadd.f32 %v1922, %v1986
  %v1995 = vadd.f32 %v1923, %v1987
  %v1996 = vadd.f32 %v1924, %v1988
  %1997 = vrot.lane.b32.xlu0 %v660, 45
  %v1998 = vpop.permute.xlu0 %1997
  %1999 = vrot.lane.b32.xlu0 %v662, 45
  %v2000 = vpop.permute.xlu0 %1999
  %2001 = vrot.lane.b32.xlu0 %v664, 45
  %v2002 = vpop.permute.xlu0 %2001
  %2003 = vrot.lane.b32.xlu0 %v666, 45
  %v2004 = vpop.permute.xlu0 %2003
  %2005 = vrot.lane.b32.xlu0 %v661, 45
  %v2006 = vpop.permute.xlu0 %2005
  %2007 = vrot.lane.b32.xlu0 %v663, 45
  %v2008 = vpop.permute.xlu0 %2007
  %2009 = vrot.lane.b32.xlu0 %v665, 45
  %v2010 = vpop.permute.xlu0 %2009
  %2011 = vrot.lane.b32.xlu0 %v667, 45
  %v2012 = vpop.permute.xlu0 %2011
  %vm2013 = vcmp.lt.s32.totalorder %v717, 45
  %v2014 = vsel %vm2013, %v1998, %v2006
  %v2015 = vsel %vm2013, %v2000, %v2008
  %v2016 = vsel %vm2013, %v2002, %v2010
  %v2017 = vsel %vm2013, %v2004, %v2012
  %v2018 = vsel %vm2013, %v2006, %v1998
  %v2019 = vsel %vm2013, %v2008, %v2000
  %v2020 = vsel %vm2013, %v2010, %v2002
  %v2021 = vsel %vm2013, %v2012, %v2004
  %2022 = vset.pattern.permute.xlu0 19
  %2023 = vperm.xlu0 %2022, %v668
  %v2024 = vpop.permute.xlu0 %2023
  %2026 = vset.pattern.permute.xlu0 19
  %2027 = vperm.xlu0 %2026, %v669
  %v2028 = vpop.permute.xlu0 %2027
  %2030 = vset.pattern.permute.xlu0 19
  %2031 = vperm.xlu0 %2030, %v670
  %v2032 = vpop.permute.xlu0 %2031
  %2034 = vset.pattern.permute.xlu0 19
  %2035 = vperm.xlu0 %2034, %v671
  %v2036 = vpop.permute.xlu0 %2035
  %v2038 = vmul.f32 %v2018, %v2024
  %v2039 = vmul.f32 %v2014, %v2024
  %v2040 = vmul.f32 %v2019, %v2028
  %v2041 = vmul.f32 %v2015, %v2028
  %v2042 = vmul.f32 %v2020, %v2032
  %v2043 = vmul.f32 %v2016, %v2032
  %v2044 = vmul.f32 %v2021, %v2036
  %v2045 = vmul.f32 %v2017, %v2036
  %s2046 = scalar_lea.vmem %s4, 34
  %v2047 = vld [vmem:[%s2046] ss:$8 sm:$0x3]
  %v2049 = vperm.slane %v2047, 0
  %v2050 = vperm.slane %v2047, 1
  %v2053 = vmul.f32 %v2038, %v2049
  %v2054 = vmul.f32 %v2039, %v2050
  %v2055 = vmul.f32 %v2040, %v2049
  %v2056 = vmul.f32 %v2041, %v2050
  %v2057 = vmul.f32 %v2042, %v2049
  %v2058 = vmul.f32 %v2043, %v2050
  %v2059 = vmul.f32 %v2044, %v2049
  %v2060 = vmul.f32 %v2045, %v2050
  %v2061 = vadd.f32 %v1989, %v2053
  %v2062 = vadd.f32 %v1990, %v2054
  %v2063 = vadd.f32 %v1991, %v2055
  %v2064 = vadd.f32 %v1992, %v2056
  %v2065 = vadd.f32 %v1993, %v2057
  %v2066 = vadd.f32 %v1994, %v2058
  %v2067 = vadd.f32 %v1995, %v2059
  %v2068 = vadd.f32 %v1996, %v2060
  %2069 = vrot.lane.b32.xlu0 %v660, 3
  %v2070 = vpop.permute.xlu0 %2069
  %2071 = vrot.lane.b32.xlu0 %v662, 3
  %v2072 = vpop.permute.xlu0 %2071
  %2073 = vrot.lane.b32.xlu0 %v664, 3
  %v2074 = vpop.permute.xlu0 %2073
  %2075 = vrot.lane.b32.xlu0 %v666, 3
  %v2076 = vpop.permute.xlu0 %2075
  %2077 = vrot.lane.b32.xlu0 %v661, 3
  %v2078 = vpop.permute.xlu0 %2077
  %2079 = vrot.lane.b32.xlu0 %v663, 3
  %v2080 = vpop.permute.xlu0 %2079
  %2081 = vrot.lane.b32.xlu0 %v665, 3
  %v2082 = vpop.permute.xlu0 %2081
  %2083 = vrot.lane.b32.xlu0 %v667, 3
  %v2084 = vpop.permute.xlu0 %2083
  %vm2085 = vcmp.lt.s32.totalorder %v717, 3
  %v2086 = vsel %vm2085, %v2070, %v2078
  %v2087 = vsel %vm2085, %v2072, %v2080
  %v2088 = vsel %vm2085, %v2074, %v2082
  %v2089 = vsel %vm2085, %v2076, %v2084
  %v2090 = vsel %vm2085, %v2078, %v2070
  %v2091 = vsel %vm2085, %v2080, %v2072
  %v2092 = vsel %vm2085, %v2082, %v2074
  %v2093 = vsel %vm2085, %v2084, %v2076
  %2094 = vset.pattern.permute.xlu0 20
  %2095 = vperm.xlu0 %2094, %v668
  %v2096 = vpop.permute.xlu0 %2095
  %2098 = vset.pattern.permute.xlu0 20
  %2099 = vperm.xlu0 %2098, %v669
  %v2100 = vpop.permute.xlu0 %2099
  %2102 = vset.pattern.permute.xlu0 20
  %2103 = vperm.xlu0 %2102, %v670
  %v2104 = vpop.permute.xlu0 %2103
  %2106 = vset.pattern.permute.xlu0 20
  %2107 = vperm.xlu0 %2106, %v671
  %v2108 = vpop.permute.xlu0 %2107
  %v2110 = vmul.f32 %v2090, %v2096
  %v2111 = vmul.f32 %v2086, %v2096
  %v2112 = vmul.f32 %v2091, %v2100
  %v2113 = vmul.f32 %v2087, %v2100
  %v2114 = vmul.f32 %v2092, %v2104
  %v2115 = vmul.f32 %v2088, %v2104
  %v2116 = vmul.f32 %v2093, %v2108
  %v2117 = vmul.f32 %v2089, %v2108
  %s2118 = scalar_lea.vmem %s4, 35
  %v2119 = vld [vmem:[%s2118] ss:$8 sm:$0x3]
  %v2121 = vperm.slane %v2119, 0
  %v2122 = vperm.slane %v2119, 1
  %v2125 = vmul.f32 %v2110, %v2121
  %v2126 = vmul.f32 %v2111, %v2122
  %v2127 = vmul.f32 %v2112, %v2121
  %v2128 = vmul.f32 %v2113, %v2122
  %v2129 = vmul.f32 %v2114, %v2121
  %v2130 = vmul.f32 %v2115, %v2122
  %v2131 = vmul.f32 %v2116, %v2121
  %v2132 = vmul.f32 %v2117, %v2122
  %v2133 = vadd.f32 %v2061, %v2125
  %v2134 = vadd.f32 %v2062, %v2126
  %v2135 = vadd.f32 %v2063, %v2127
  %v2136 = vadd.f32 %v2064, %v2128
  %v2137 = vadd.f32 %v2065, %v2129
  %v2138 = vadd.f32 %v2066, %v2130
  %v2139 = vadd.f32 %v2067, %v2131
  %v2140 = vadd.f32 %v2068, %v2132
  %2141 = vrot.lane.b32.xlu0 %v660, 125
  %v2142 = vpop.permute.xlu0 %2141
  %2143 = vrot.lane.b32.xlu0 %v662, 125
  %v2144 = vpop.permute.xlu0 %2143
  %2145 = vrot.lane.b32.xlu0 %v664, 125
  %v2146 = vpop.permute.xlu0 %2145
  %2147 = vrot.lane.b32.xlu0 %v666, 125
  %v2148 = vpop.permute.xlu0 %2147
  %2149 = vrot.lane.b32.xlu0 %v661, 125
  %v2150 = vpop.permute.xlu0 %2149
  %2151 = vrot.lane.b32.xlu0 %v663, 125
  %v2152 = vpop.permute.xlu0 %2151
  %2153 = vrot.lane.b32.xlu0 %v665, 125
  %v2154 = vpop.permute.xlu0 %2153
  %2155 = vrot.lane.b32.xlu0 %v667, 125
  %v2156 = vpop.permute.xlu0 %2155
  %vm2157 = vcmp.lt.s32.totalorder %v717, 125
  %v2158 = vsel %vm2157, %v2142, %v2150
  %v2159 = vsel %vm2157, %v2144, %v2152
  %v2160 = vsel %vm2157, %v2146, %v2154
  %v2161 = vsel %vm2157, %v2148, %v2156
  %v2162 = vsel %vm2157, %v2150, %v2142
  %v2163 = vsel %vm2157, %v2152, %v2144
  %v2164 = vsel %vm2157, %v2154, %v2146
  %v2165 = vsel %vm2157, %v2156, %v2148
  %2166 = vset.pattern.permute.xlu0 21
  %2167 = vperm.xlu0 %2166, %v668
  %v2168 = vpop.permute.xlu0 %2167
  %2170 = vset.pattern.permute.xlu0 21
  %2171 = vperm.xlu0 %2170, %v669
  %v2172 = vpop.permute.xlu0 %2171
  %2174 = vset.pattern.permute.xlu0 21
  %2175 = vperm.xlu0 %2174, %v670
  %v2176 = vpop.permute.xlu0 %2175
  %2178 = vset.pattern.permute.xlu0 21
  %2179 = vperm.xlu0 %2178, %v671
  %v2180 = vpop.permute.xlu0 %2179
  %v2182 = vmul.f32 %v2158, %v2168
  %v2183 = vmul.f32 %v2162, %v2168
  %v2184 = vmul.f32 %v2159, %v2172
  %v2185 = vmul.f32 %v2163, %v2172
  %v2186 = vmul.f32 %v2160, %v2176
  %v2187 = vmul.f32 %v2164, %v2176
  %v2188 = vmul.f32 %v2161, %v2180
  %v2189 = vmul.f32 %v2165, %v2180
  %s2190 = scalar_lea.vmem %s4, 36
  %v2191 = vld [vmem:[%s2190] ss:$8 sm:$0x3]
  %v2193 = vperm.slane %v2191, 0
  %v2194 = vperm.slane %v2191, 1
  %v2197 = vmul.f32 %v2182, %v2193
  %v2198 = vmul.f32 %v2183, %v2194
  %v2199 = vmul.f32 %v2184, %v2193
  %v2200 = vmul.f32 %v2185, %v2194
  %v2201 = vmul.f32 %v2186, %v2193
  %v2202 = vmul.f32 %v2187, %v2194
  %v2203 = vmul.f32 %v2188, %v2193
  %v2204 = vmul.f32 %v2189, %v2194
  %v2205 = vadd.f32 %v2133, %v2197
  %v2206 = vadd.f32 %v2134, %v2198
  %v2207 = vadd.f32 %v2135, %v2199
  %v2208 = vadd.f32 %v2136, %v2200
  %v2209 = vadd.f32 %v2137, %v2201
  %v2210 = vadd.f32 %v2138, %v2202
  %v2211 = vadd.f32 %v2139, %v2203
  %v2212 = vadd.f32 %v2140, %v2204
  %2213 = vrot.lane.b32.xlu0 %v660, 83
  %v2214 = vpop.permute.xlu0 %2213
  %2215 = vrot.lane.b32.xlu0 %v662, 83
  %v2216 = vpop.permute.xlu0 %2215
  %2217 = vrot.lane.b32.xlu0 %v664, 83
  %v2218 = vpop.permute.xlu0 %2217
  %2219 = vrot.lane.b32.xlu0 %v666, 83
  %v2220 = vpop.permute.xlu0 %2219
  %2221 = vrot.lane.b32.xlu0 %v661, 83
  %v2222 = vpop.permute.xlu0 %2221
  %2223 = vrot.lane.b32.xlu0 %v663, 83
  %v2224 = vpop.permute.xlu0 %2223
  %2225 = vrot.lane.b32.xlu0 %v665, 83
  %v2226 = vpop.permute.xlu0 %2225
  %2227 = vrot.lane.b32.xlu0 %v667, 83
  %v2228 = vpop.permute.xlu0 %2227
  %vm2229 = vcmp.lt.s32.totalorder %v717, 83
  %v2230 = vsel %vm2229, %v2214, %v2222
  %v2231 = vsel %vm2229, %v2216, %v2224
  %v2232 = vsel %vm2229, %v2218, %v2226
  %v2233 = vsel %vm2229, %v2220, %v2228
  %v2234 = vsel %vm2229, %v2222, %v2214
  %v2235 = vsel %vm2229, %v2224, %v2216
  %v2236 = vsel %vm2229, %v2226, %v2218
  %v2237 = vsel %vm2229, %v2228, %v2220
  %2238 = vset.pattern.permute.xlu0 22
  %2239 = vperm.xlu0 %2238, %v668
  %v2240 = vpop.permute.xlu0 %2239
  %2242 = vset.pattern.permute.xlu0 22
  %2243 = vperm.xlu0 %2242, %v669
  %v2244 = vpop.permute.xlu0 %2243
  %2246 = vset.pattern.permute.xlu0 22
  %2247 = vperm.xlu0 %2246, %v670
  %v2248 = vpop.permute.xlu0 %2247
  %2250 = vset.pattern.permute.xlu0 22
  %2251 = vperm.xlu0 %2250, %v671
  %v2252 = vpop.permute.xlu0 %2251
  %v2254 = vmul.f32 %v2230, %v2240
  %v2255 = vmul.f32 %v2234, %v2240
  %v2256 = vmul.f32 %v2231, %v2244
  %v2257 = vmul.f32 %v2235, %v2244
  %v2258 = vmul.f32 %v2232, %v2248
  %v2259 = vmul.f32 %v2236, %v2248
  %v2260 = vmul.f32 %v2233, %v2252
  %v2261 = vmul.f32 %v2237, %v2252
  %s2262 = scalar_lea.vmem %s4, 37
  %v2263 = vld [vmem:[%s2262] ss:$8 sm:$0x3]
  %v2265 = vperm.slane %v2263, 0
  %v2266 = vperm.slane %v2263, 1
  %v2269 = vmul.f32 %v2254, %v2265
  %v2270 = vmul.f32 %v2255, %v2266
  %v2271 = vmul.f32 %v2256, %v2265
  %v2272 = vmul.f32 %v2257, %v2266
  %v2273 = vmul.f32 %v2258, %v2265
  %v2274 = vmul.f32 %v2259, %v2266
  %v2275 = vmul.f32 %v2260, %v2265
  %v2276 = vmul.f32 %v2261, %v2266
  %v2277 = vadd.f32 %v2205, %v2269
  %v2278 = vadd.f32 %v2206, %v2270
  %v2279 = vadd.f32 %v2207, %v2271
  %v2280 = vadd.f32 %v2208, %v2272
  %v2281 = vadd.f32 %v2209, %v2273
  %v2282 = vadd.f32 %v2210, %v2274
  %v2283 = vadd.f32 %v2211, %v2275
  %v2284 = vadd.f32 %v2212, %v2276
  %2285 = vrot.lane.b32.xlu0 %v660, 80
  %v2286 = vpop.permute.xlu0 %2285
  %2287 = vrot.lane.b32.xlu0 %v662, 80
  %v2288 = vpop.permute.xlu0 %2287
  %2289 = vrot.lane.b32.xlu0 %v664, 80
  %v2290 = vpop.permute.xlu0 %2289
  %2291 = vrot.lane.b32.xlu0 %v666, 80
  %v2292 = vpop.permute.xlu0 %2291
  %2293 = vrot.lane.b32.xlu0 %v661, 80
  %v2294 = vpop.permute.xlu0 %2293
  %2295 = vrot.lane.b32.xlu0 %v663, 80
  %v2296 = vpop.permute.xlu0 %2295
  %2297 = vrot.lane.b32.xlu0 %v665, 80
  %v2298 = vpop.permute.xlu0 %2297
  %2299 = vrot.lane.b32.xlu0 %v667, 80
  %v2300 = vpop.permute.xlu0 %2299
  %vm2301 = vcmp.lt.s32.totalorder %v717, 80
  %v2302 = vsel %vm2301, %v2286, %v2294
  %v2303 = vsel %vm2301, %v2288, %v2296
  %v2304 = vsel %vm2301, %v2290, %v2298
  %v2305 = vsel %vm2301, %v2292, %v2300
  %v2306 = vsel %vm2301, %v2294, %v2286
  %v2307 = vsel %vm2301, %v2296, %v2288
  %v2308 = vsel %vm2301, %v2298, %v2290
  %v2309 = vsel %vm2301, %v2300, %v2292
  %2310 = vset.pattern.permute.xlu0 23
  %2311 = vperm.xlu0 %2310, %v668
  %v2312 = vpop.permute.xlu0 %2311
  %2314 = vset.pattern.permute.xlu0 23
  %2315 = vperm.xlu0 %2314, %v669
  %v2316 = vpop.permute.xlu0 %2315
  %2318 = vset.pattern.permute.xlu0 23
  %2319 = vperm.xlu0 %2318, %v670
  %v2320 = vpop.permute.xlu0 %2319
  %2322 = vset.pattern.permute.xlu0 23
  %2323 = vperm.xlu0 %2322, %v671
  %v2324 = vpop.permute.xlu0 %2323
  %v2326 = vmul.f32 %v2302, %v2312
  %v2327 = vmul.f32 %v2306, %v2312
  %v2328 = vmul.f32 %v2303, %v2316
  %v2329 = vmul.f32 %v2307, %v2316
  %v2330 = vmul.f32 %v2304, %v2320
  %v2331 = vmul.f32 %v2308, %v2320
  %v2332 = vmul.f32 %v2305, %v2324
  %v2333 = vmul.f32 %v2309, %v2324
  %s2334 = scalar_lea.vmem %s4, 38
  %v2335 = vld [vmem:[%s2334] ss:$8 sm:$0x3]
  %v2337 = vperm.slane %v2335, 0
  %v2338 = vperm.slane %v2335, 1
  %v2341 = vmul.f32 %v2326, %v2337
  %v2342 = vmul.f32 %v2327, %v2338
  %v2343 = vmul.f32 %v2328, %v2337
  %v2344 = vmul.f32 %v2329, %v2338
  %v2345 = vmul.f32 %v2330, %v2337
  %v2346 = vmul.f32 %v2331, %v2338
  %v2347 = vmul.f32 %v2332, %v2337
  %v2348 = vmul.f32 %v2333, %v2338
  %v2349 = vadd.f32 %v2277, %v2341
  %v2350 = vadd.f32 %v2278, %v2342
  %v2351 = vadd.f32 %v2279, %v2343
  %v2352 = vadd.f32 %v2280, %v2344
  %v2353 = vadd.f32 %v2281, %v2345
  %v2354 = vadd.f32 %v2282, %v2346
  %v2355 = vadd.f32 %v2283, %v2347
  %v2356 = vadd.f32 %v2284, %v2348
  %2357 = vrot.lane.b32.xlu0 %v660, 77
  %v2358 = vpop.permute.xlu0 %2357
  %2359 = vrot.lane.b32.xlu0 %v662, 77
  %v2360 = vpop.permute.xlu0 %2359
  %2361 = vrot.lane.b32.xlu0 %v664, 77
  %v2362 = vpop.permute.xlu0 %2361
  %2363 = vrot.lane.b32.xlu0 %v666, 77
  %v2364 = vpop.permute.xlu0 %2363
  %2365 = vrot.lane.b32.xlu0 %v661, 77
  %v2366 = vpop.permute.xlu0 %2365
  %2367 = vrot.lane.b32.xlu0 %v663, 77
  %v2368 = vpop.permute.xlu0 %2367
  %2369 = vrot.lane.b32.xlu0 %v665, 77
  %v2370 = vpop.permute.xlu0 %2369
  %2371 = vrot.lane.b32.xlu0 %v667, 77
  %v2372 = vpop.permute.xlu0 %2371
  %vm2373 = vcmp.lt.s32.totalorder %v717, 77
  %v2374 = vsel %vm2373, %v2358, %v2366
  %v2375 = vsel %vm2373, %v2360, %v2368
  %v2376 = vsel %vm2373, %v2362, %v2370
  %v2377 = vsel %vm2373, %v2364, %v2372
  %v2378 = vsel %vm2373, %v2366, %v2358
  %v2379 = vsel %vm2373, %v2368, %v2360
  %v2380 = vsel %vm2373, %v2370, %v2362
  %v2381 = vsel %vm2373, %v2372, %v2364
  %2382 = vset.pattern.permute.xlu0 24
  %2383 = vperm.xlu0 %2382, %v668
  %v2384 = vpop.permute.xlu0 %2383
  %2386 = vset.pattern.permute.xlu0 24
  %2387 = vperm.xlu0 %2386, %v669
  %v2388 = vpop.permute.xlu0 %2387
  %2390 = vset.pattern.permute.xlu0 24
  %2391 = vperm.xlu0 %2390, %v670
  %v2392 = vpop.permute.xlu0 %2391
  %2394 = vset.pattern.permute.xlu0 24
  %2395 = vperm.xlu0 %2394, %v671
  %v2396 = vpop.permute.xlu0 %2395
  %v2398 = vmul.f32 %v2374, %v2384
  %v2399 = vmul.f32 %v2378, %v2384
  %v2400 = vmul.f32 %v2375, %v2388
  %v2401 = vmul.f32 %v2379, %v2388
  %v2402 = vmul.f32 %v2376, %v2392
  %v2403 = vmul.f32 %v2380, %v2392
  %v2404 = vmul.f32 %v2377, %v2396
  %v2405 = vmul.f32 %v2381, %v2396
  %s2406 = scalar_lea.vmem %s4, 39
  %v2407 = vld [vmem:[%s2406] ss:$8 sm:$0x3]
  %v2409 = vperm.slane %v2407, 0
  %v2410 = vperm.slane %v2407, 1
  %v2413 = vmul.f32 %v2398, %v2409
  %v2414 = vmul.f32 %v2399, %v2410
  %v2415 = vmul.f32 %v2400, %v2409
  %v2416 = vmul.f32 %v2401, %v2410
  %v2417 = vmul.f32 %v2402, %v2409
  %v2418 = vmul.f32 %v2403, %v2410
  %v2419 = vmul.f32 %v2404, %v2409
  %v2420 = vmul.f32 %v2405, %v2410
  %v2421 = vadd.f32 %v2349, %v2413
  %v2422 = vadd.f32 %v2350, %v2414
  %v2423 = vadd.f32 %v2351, %v2415
  %v2424 = vadd.f32 %v2352, %v2416
  %v2425 = vadd.f32 %v2353, %v2417
  %v2426 = vadd.f32 %v2354, %v2418
  %v2427 = vadd.f32 %v2355, %v2419
  %v2428 = vadd.f32 %v2356, %v2420
  %2429 = vset.pattern.permute.xlu0 2
  %2430 = vperm.xlu0 %2429, %v35
  %v2431 = vpop.permute.xlu0 %2430
  %2433 = vset.pattern.permute.xlu0 2
  %2434 = vperm.xlu0 %2433, %v36
  %v2435 = vpop.permute.xlu0 %2434
  %2437 = vset.pattern.permute.xlu0 2
  %2438 = vperm.xlu0 %2437, %v37
  %v2439 = vpop.permute.xlu0 %2438
  %2441 = vset.pattern.permute.xlu0 2
  %2442 = vperm.xlu0 %2441, %v38
  %v2443 = vpop.permute.xlu0 %2442
  %v2445 = vadd.f32 %v2421, %v2431
  %v2446 = vadd.f32 %v2422, %v2431
  %v2447 = vadd.f32 %v2423, %v2435
  %v2448 = vadd.f32 %v2424, %v2435
  %v2449 = vadd.f32 %v2425, %v2439
  %v2450 = vadd.f32 %v2426, %v2439
  %v2451 = vadd.f32 %v2427, %v2443
  %v2452 = vadd.f32 %v2428, %v2443
  %vm2453 = vcmp.ge.f32.partialorder %v2445, 0.0
  %vm2454 = vcmp.ge.f32.partialorder %v2446, 0.0
  %vm2455 = vcmp.ge.f32.partialorder %v2447, 0.0
  %vm2456 = vcmp.ge.f32.partialorder %v2448, 0.0
  %vm2457 = vcmp.ge.f32.partialorder %v2449, 0.0
  %vm2458 = vcmp.ge.f32.partialorder %v2450, 0.0
  %vm2459 = vcmp.ge.f32.partialorder %v2451, 0.0
  %vm2460 = vcmp.ge.f32.partialorder %v2452, 0.0
  %2461 = vset.pattern.permute.xlu0 3
  %2462 = vperm.xlu0 %2461, %v35
  %v2463 = vpop.permute.xlu0 %2462
  %2465 = vset.pattern.permute.xlu0 3
  %2466 = vperm.xlu0 %2465, %v36
  %v2467 = vpop.permute.xlu0 %2466
  %2469 = vset.pattern.permute.xlu0 3
  %2470 = vperm.xlu0 %2469, %v37
  %v2471 = vpop.permute.xlu0 %2470
  %2473 = vset.pattern.permute.xlu0 3
  %2474 = vperm.xlu0 %2473, %v38
  %v2475 = vpop.permute.xlu0 %2474
  %v2477 = vmul.f32 %v2463, %v2445
  %v2478 = vmul.f32 %v2463, %v2446
  %v2479 = vmul.f32 %v2467, %v2447
  %v2480 = vmul.f32 %v2467, %v2448
  %v2481 = vmul.f32 %v2471, %v2449
  %v2482 = vmul.f32 %v2471, %v2450
  %v2483 = vmul.f32 %v2475, %v2451
  %v2484 = vmul.f32 %v2475, %v2452
  %v2485 = vsel %vm2453, %v2445, %v2477
  %v2486 = vsel %vm2454, %v2446, %v2478
  %v2487 = vsel %vm2455, %v2447, %v2479
  %v2488 = vsel %vm2456, %v2448, %v2480
  %v2489 = vsel %vm2457, %v2449, %v2481
  %v2490 = vsel %vm2458, %v2450, %v2482
  %v2491 = vsel %vm2459, %v2451, %v2483
  %v2492 = vsel %vm2460, %v2452, %v2484
  %v2493 = vld [vmem:[%s2] sm:$0xff]
  %v2494 = vld [vmem:[%s2 + $0x8] sm:$0xff]
  %v2495 = vld [vmem:[%s2 + $0x10] sm:$0xff]
  %v2496 = vld [vmem:[%s2 + $0x18] sm:$0xff]
  %2497 = vset.pattern.permute.xlu0 4
  %2498 = vperm.xlu0 %2497, %v35
  %v2499 = vpop.permute.xlu0 %2498
  %2501 = vset.pattern.permute.xlu0 4
  %2502 = vperm.xlu0 %2501, %v36
  %v2503 = vpop.permute.xlu0 %2502
  %2505 = vset.pattern.permute.xlu0 4
  %2506 = vperm.xlu0 %2505, %v37
  %v2507 = vpop.permute.xlu0 %2506
  %2509 = vset.pattern.permute.xlu0 4
  %2510 = vperm.xlu0 %2509, %v38
  %v2511 = vpop.permute.xlu0 %2510
  %v2514 = vsel %vm59, %v2493, 0
  %v2517 = vsel %vm59, %v2494, 0
  %v2520 = vsel %vm59, %v2495, 0
  %v2523 = vsel %vm59, %v2496, 0
  %2525 = vmatpush.msra.mxu0 0.0
  %2526 = vmatpush.msra.mxu0 0.0
  %2527 = vmatpush.msra.mxu0 0.0
  %2528 = vmatpush.msra.mxu0 0.0
  %2529 = vmatpush.msra.mxu0 0.0
  %2530 = vmatpush.msra.mxu0 0.0
  %2531 = vmatpush.msra.mxu0 0.0
  %2532 = vmatpush.msra.mxu0 0.0
  %2533 = vmatpush.msra.mxu0 0.0
  %2534 = vmatpush.msra.mxu0 0.0
  %2535 = vmatpush.msra.mxu0 0.0
  %2536 = vmatpush.msra.mxu0 0.0
  %v2537 = vand.u32 %v2491, 4294901760
  %2538 = vmatpush.msra.mxu0 %v2537
  %v2539 = vand.u32 %v2489, 4294901760
  %2540 = vmatpush.msra.mxu0 %v2539
  %v2541 = vand.u32 %v2487, 4294901760
  %2542 = vmatpush.msra.mxu0 %v2541
  %v2543 = vand.u32 %v2485, 4294901760
  %2544 = vmatpush.msra.mxu0 %v2543
  %v2545 = vand.u32 %v2514, 4294901760
  %v2546 = vsub.f32 %v2514, %v2545
  %v2547 = vand.u32 %v2546, 4294901760
  %v2548 = vsub.f32 %v2546, %v2547
  %v2549 = vand.u32 %v2548, 4294901760
  %2550 = vmatmul.f32.gmra.mxu0 %v2549
  %v2551 = vpop.f32.mrf.mxu0
  %v2552 = vadd.f32 %v2499, %v2551
  %v2553 = vand.u32 %v2517, 4294901760
  %v2554 = vsub.f32 %v2517, %v2553
  %v2555 = vand.u32 %v2554, 4294901760
  %v2556 = vsub.f32 %v2554, %v2555
  %v2557 = vand.u32 %v2556, 4294901760
  %2558 = vmatmul.f32.gmra.mxu0 %v2557
  %v2559 = vpop.f32.mrf.mxu0
  %v2560 = vadd.f32 %v2503, %v2559
  %v2561 = vand.u32 %v2520, 4294901760
  %v2562 = vsub.f32 %v2520, %v2561
  %v2563 = vand.u32 %v2562, 4294901760
  %v2564 = vsub.f32 %v2562, %v2563
  %v2565 = vand.u32 %v2564, 4294901760
  %2566 = vmatmul.f32.gmra.mxu0 %v2565
  %v2567 = vpop.f32.mrf.mxu0
  %v2568 = vadd.f32 %v2507, %v2567
  %v2569 = vand.u32 %v2523, 4294901760
  %v2570 = vsub.f32 %v2523, %v2569
  %v2571 = vand.u32 %v2570, 4294901760
  %v2572 = vsub.f32 %v2570, %v2571
  %v2573 = vand.u32 %v2572, 4294901760
  %2574 = vmatmul.f32.gmra.mxu0 %v2573
  %v2575 = vpop.f32.mrf.mxu0
  %v2576 = vadd.f32 %v2511, %v2575
  %2577 = vdwg.mxu0
  %2578 = vmatpush.msra.mxu0 0.0
  %2579 = vmatpush.msra.mxu0 0.0
  %2580 = vmatpush.msra.mxu0 0.0
  %2581 = vmatpush.msra.mxu0 0.0
  %2582 = vmatpush.msra.mxu0 0.0
  %2583 = vmatpush.msra.mxu0 0.0
  %2584 = vmatpush.msra.mxu0 0.0
  %2585 = vmatpush.msra.mxu0 0.0
  %2586 = vmatpush.msra.mxu0 0.0
  %2587 = vmatpush.msra.mxu0 0.0
  %2588 = vmatpush.msra.mxu0 0.0
  %2589 = vmatpush.msra.mxu0 0.0
  %v2590 = vand.u32 %v2491, 4294901760
  %v2591 = vsub.f32 %v2491, %v2590
  %v2592 = vand.u32 %v2591, 4294901760
  %v2593 = vsub.f32 %v2591, %v2592
  %v2594 = vand.u32 %v2593, 4294901760
  %2595 = vmatpush.msra.mxu0 %v2594
  %v2596 = vand.u32 %v2489, 4294901760
  %v2597 = vsub.f32 %v2489, %v2596
  %v2598 = vand.u32 %v2597, 4294901760
  %v2599 = vsub.f32 %v2597, %v2598
  %v2600 = vand.u32 %v2599, 4294901760
  %2601 = vmatpush.msra.mxu0 %v2600
  %v2602 = vand.u32 %v2487, 4294901760
  %v2603 = vsub.f32 %v2487, %v2602
  %v2604 = vand.u32 %v2603, 4294901760
  %v2605 = vsub.f32 %v2603, %v2604
  %v2606 = vand.u32 %v2605, 4294901760
  %2607 = vmatpush.msra.mxu0 %v2606
  %v2608 = vand.u32 %v2485, 4294901760
  %v2609 = vsub.f32 %v2485, %v2608
  %v2610 = vand.u32 %v2609, 4294901760
  %v2611 = vsub.f32 %v2609, %v2610
  %v2612 = vand.u32 %v2611, 4294901760
  %2613 = vmatpush.msra.mxu0 %v2612
  %v2614 = vand.u32 %v2514, 4294901760
  %2615 = vmatmul.f32.gmra.mxu0 %v2614
  %v2616 = vpop.f32.mrf.mxu0
  %v2617 = vadd.f32 %v2552, %v2616
  %v2618 = vand.u32 %v2517, 4294901760
  %2619 = vmatmul.f32.gmra.mxu0 %v2618
  %v2620 = vpop.f32.mrf.mxu0
  %v2621 = vadd.f32 %v2560, %v2620
  %v2622 = vand.u32 %v2520, 4294901760
  %2623 = vmatmul.f32.gmra.mxu0 %v2622
  %v2624 = vpop.f32.mrf.mxu0
  %v2625 = vadd.f32 %v2568, %v2624
  %v2626 = vand.u32 %v2523, 4294901760
  %2627 = vmatmul.f32.gmra.mxu0 %v2626
  %v2628 = vpop.f32.mrf.mxu0
  %v2629 = vadd.f32 %v2576, %v2628
  %2630 = vdwg.mxu0
  %2631 = vmatpush.msra.mxu0 0.0
  %2632 = vmatpush.msra.mxu0 0.0
  %2633 = vmatpush.msra.mxu0 0.0
  %2634 = vmatpush.msra.mxu0 0.0
  %2635 = vmatpush.msra.mxu0 0.0
  %2636 = vmatpush.msra.mxu0 0.0
  %2637 = vmatpush.msra.mxu0 0.0
  %2638 = vmatpush.msra.mxu0 0.0
  %2639 = vmatpush.msra.mxu0 0.0
  %2640 = vmatpush.msra.mxu0 0.0
  %2641 = vmatpush.msra.mxu0 0.0
  %2642 = vmatpush.msra.mxu0 0.0
  %v2643 = vand.u32 %v2491, 4294901760
  %v2644 = vsub.f32 %v2491, %v2643
  %2645 = vmatpush.msra.mxu0 %v2644
  %v2646 = vand.u32 %v2489, 4294901760
  %v2647 = vsub.f32 %v2489, %v2646
  %2648 = vmatpush.msra.mxu0 %v2647
  %v2649 = vand.u32 %v2487, 4294901760
  %v2650 = vsub.f32 %v2487, %v2649
  %2651 = vmatpush.msra.mxu0 %v2650
  %v2652 = vand.u32 %v2485, 4294901760
  %v2653 = vsub.f32 %v2485, %v2652
  %2654 = vmatpush.msra.mxu0 %v2653
  %v2655 = vand.u32 %v2514, 4294901760
  %v2656 = vsub.f32 %v2514, %v2655
  %2657 = vmatmul.f32.gmra.mxu0 %v2656
  %v2658 = vpop.f32.mrf.mxu0
  %v2659 = vadd.f32 %v2617, %v2658
  %v2660 = vand.u32 %v2517, 4294901760
  %v2661 = vsub.f32 %v2517, %v2660
  %2662 = vmatmul.f32.gmra.mxu0 %v2661
  %v2663 = vpop.f32.mrf.mxu0
  %v2664 = vadd.f32 %v2621, %v2663
  %v2665 = vand.u32 %v2520, 4294901760
  %v2666 = vsub.f32 %v2520, %v2665
  %2667 = vmatmul.f32.gmra.mxu0 %v2666
  %v2668 = vpop.f32.mrf.mxu0
  %v2669 = vadd.f32 %v2625, %v2668
  %v2670 = vand.u32 %v2523, 4294901760
  %v2671 = vsub.f32 %v2523, %v2670
  %2672 = vmatmul.f32.gmra.mxu0 %v2671
  %v2673 = vpop.f32.mrf.mxu0
  %v2674 = vadd.f32 %v2629, %v2673
  %2675 = vdwg.mxu0
  %2676 = vmatpush.msra.mxu0 0.0
  %2677 = vmatpush.msra.mxu0 0.0
  %2678 = vmatpush.msra.mxu0 0.0
  %2679 = vmatpush.msra.mxu0 0.0
  %2680 = vmatpush.msra.mxu0 0.0
  %2681 = vmatpush.msra.mxu0 0.0
  %2682 = vmatpush.msra.mxu0 0.0
  %2683 = vmatpush.msra.mxu0 0.0
  %2684 = vmatpush.msra.mxu0 0.0
  %2685 = vmatpush.msra.mxu0 0.0
  %2686 = vmatpush.msra.mxu0 0.0
  %2687 = vmatpush.msra.mxu0 0.0
  %v2688 = vand.u32 %v2491, 4294901760
  %2689 = vmatpush.msra.mxu0 %v2688
  %v2690 = vand.u32 %v2489, 4294901760
  %2691 = vmatpush.msra.mxu0 %v2690
  %v2692 = vand.u32 %v2487, 4294901760
  %2693 = vmatpush.msra.mxu0 %v2692
  %v2694 = vand.u32 %v2485, 4294901760
  %2695 = vmatpush.msra.mxu0 %v2694
  %v2696 = vand.u32 %v2514, 4294901760
  %v2697 = vsub.f32 %v2514, %v2696
  %v2698 = vand.u32 %v2697, 4294901760
  %2699 = vmatmul.f32.gmra.mxu0 %v2698
  %v2700 = vpop.f32.mrf.mxu0
  %v2701 = vadd.f32 %v2659, %v2700
  %v2702 = vand.u32 %v2517, 4294901760
  %v2703 = vsub.f32 %v2517, %v2702
  %v2704 = vand.u32 %v2703, 4294901760
  %2705 = vmatmul.f32.gmra.mxu0 %v2704
  %v2706 = vpop.f32.mrf.mxu0
  %v2707 = vadd.f32 %v2664, %v2706
  %v2708 = vand.u32 %v2520, 4294901760
  %v2709 = vsub.f32 %v2520, %v2708
  %v2710 = vand.u32 %v2709, 4294901760
  %2711 = vmatmul.f32.gmra.mxu0 %v2710
  %v2712 = vpop.f32.mrf.mxu0
  %v2713 = vadd.f32 %v2669, %v2712
  %v2714 = vand.u32 %v2523, 4294901760
  %v2715 = vsub.f32 %v2523, %v2714
  %v2716 = vand.u32 %v2715, 4294901760
  %2717 = vmatmul.f32.gmra.mxu0 %v2716
  %v2718 = vpop.f32.mrf.mxu0
  %v2719 = vadd.f32 %v2674, %v2718
  %2720 = vdwg.mxu0
  %2721 = vmatpush.msra.mxu0 0.0
  %2722 = vmatpush.msra.mxu0 0.0
  %2723 = vmatpush.msra.mxu0 0.0
  %2724 = vmatpush.msra.mxu0 0.0
  %2725 = vmatpush.msra.mxu0 0.0
  %2726 = vmatpush.msra.mxu0 0.0
  %2727 = vmatpush.msra.mxu0 0.0
  %2728 = vmatpush.msra.mxu0 0.0
  %2729 = vmatpush.msra.mxu0 0.0
  %2730 = vmatpush.msra.mxu0 0.0
  %2731 = vmatpush.msra.mxu0 0.0
  %2732 = vmatpush.msra.mxu0 0.0
  %v2733 = vand.u32 %v2491, 4294901760
  %v2734 = vsub.f32 %v2491, %v2733
  %v2735 = vand.u32 %v2734, 4294901760
  %2736 = vmatpush.msra.mxu0 %v2735
  %v2737 = vand.u32 %v2489, 4294901760
  %v2738 = vsub.f32 %v2489, %v2737
  %v2739 = vand.u32 %v2738, 4294901760
  %2740 = vmatpush.msra.mxu0 %v2739
  %v2741 = vand.u32 %v2487, 4294901760
  %v2742 = vsub.f32 %v2487, %v2741
  %v2743 = vand.u32 %v2742, 4294901760
  %2744 = vmatpush.msra.mxu0 %v2743
  %v2745 = vand.u32 %v2485, 4294901760
  %v2746 = vsub.f32 %v2485, %v2745
  %v2747 = vand.u32 %v2746, 4294901760
  %2748 = vmatpush.msra.mxu0 %v2747
  %v2749 = vand.u32 %v2514, 4294901760
  %2750 = vmatmul.f32.gmra.mxu0 %v2749
  %v2751 = vpop.f32.mrf.mxu0
  %v2752 = vadd.f32 %v2701, %v2751
  %v2753 = vand.u32 %v2517, 4294901760
  %2754 = vmatmul.f32.gmra.mxu0 %v2753
  %v2755 = vpop.f32.mrf.mxu0
  %v2756 = vadd.f32 %v2707, %v2755
  %v2757 = vand.u32 %v2520, 4294901760
  %2758 = vmatmul.f32.gmra.mxu0 %v2757
  %v2759 = vpop.f32.mrf.mxu0
  %v2760 = vadd.f32 %v2713, %v2759
  %v2761 = vand.u32 %v2523, 4294901760
  %2762 = vmatmul.f32.gmra.mxu0 %v2761
  %v2763 = vpop.f32.mrf.mxu0
  %v2764 = vadd.f32 %v2719, %v2763
  %2765 = vdwg.mxu0
  %2766 = vmatpush.msra.mxu0 0.0
  %2767 = vmatpush.msra.mxu0 0.0
  %2768 = vmatpush.msra.mxu0 0.0
  %2769 = vmatpush.msra.mxu0 0.0
  %2770 = vmatpush.msra.mxu0 0.0
  %2771 = vmatpush.msra.mxu0 0.0
  %2772 = vmatpush.msra.mxu0 0.0
  %2773 = vmatpush.msra.mxu0 0.0
  %2774 = vmatpush.msra.mxu0 0.0
  %2775 = vmatpush.msra.mxu0 0.0
  %2776 = vmatpush.msra.mxu0 0.0
  %2777 = vmatpush.msra.mxu0 0.0
  %v2778 = vand.u32 %v2491, 4294901760
  %2779 = vmatpush.msra.mxu0 %v2778
  %v2780 = vand.u32 %v2489, 4294901760
  %2781 = vmatpush.msra.mxu0 %v2780
  %v2782 = vand.u32 %v2487, 4294901760
  %2783 = vmatpush.msra.mxu0 %v2782
  %v2784 = vand.u32 %v2485, 4294901760
  %2785 = vmatpush.msra.mxu0 %v2784
  %v2786 = vand.u32 %v2514, 4294901760
  %2787 = vmatmul.f32.gmra.mxu0 %v2786
  %v2788 = vpop.f32.mrf.mxu0
  %v2789 = vadd.f32 %v2752, %v2788
  %v2790 = vand.u32 %v2517, 4294901760
  %2791 = vmatmul.f32.gmra.mxu0 %v2790
  %v2792 = vpop.f32.mrf.mxu0
  %v2793 = vadd.f32 %v2756, %v2792
  %v2794 = vand.u32 %v2520, 4294901760
  %2795 = vmatmul.f32.gmra.mxu0 %v2794
  %v2796 = vpop.f32.mrf.mxu0
  %v2797 = vadd.f32 %v2760, %v2796
  %v2798 = vand.u32 %v2523, 4294901760
  %2799 = vmatmul.f32.gmra.mxu0 %v2798
  %v2800 = vpop.f32.mrf.mxu0
  %v2801 = vadd.f32 %v2764, %v2800
  %2802 = vdwg.mxu0
  %2803 = vmatpush.msra.mxu0 0.0
  %2804 = vmatpush.msra.mxu0 0.0
  %2805 = vmatpush.msra.mxu0 0.0
  %2806 = vmatpush.msra.mxu0 0.0
  %2807 = vmatpush.msra.mxu0 0.0
  %2808 = vmatpush.msra.mxu0 0.0
  %2809 = vmatpush.msra.mxu0 0.0
  %2810 = vmatpush.msra.mxu0 0.0
  %2811 = vmatpush.msra.mxu0 0.0
  %2812 = vmatpush.msra.mxu0 0.0
  %2813 = vmatpush.msra.mxu0 0.0
  %2814 = vmatpush.msra.mxu0 0.0
  %v2815 = vand.u32 %v2492, 4294901760
  %2816 = vmatpush.msra.mxu0 %v2815
  %v2817 = vand.u32 %v2490, 4294901760
  %2818 = vmatpush.msra.mxu0 %v2817
  %v2819 = vand.u32 %v2488, 4294901760
  %2820 = vmatpush.msra.mxu0 %v2819
  %v2821 = vand.u32 %v2486, 4294901760
  %2822 = vmatpush.msra.mxu0 %v2821
  %v2823 = vand.u32 %v2514, 4294901760
  %v2824 = vsub.f32 %v2514, %v2823
  %v2825 = vand.u32 %v2824, 4294901760
  %v2826 = vsub.f32 %v2824, %v2825
  %v2827 = vand.u32 %v2826, 4294901760
  %2828 = vmatmul.f32.gmra.mxu0 %v2827
  %v2829 = vpop.f32.mrf.mxu0
  %v2830 = vadd.f32 %v2499, %v2829
  %v2831 = vand.u32 %v2517, 4294901760
  %v2832 = vsub.f32 %v2517, %v2831
  %v2833 = vand.u32 %v2832, 4294901760
  %v2834 = vsub.f32 %v2832, %v2833
  %v2835 = vand.u32 %v2834, 4294901760
  %2836 = vmatmul.f32.gmra.mxu0 %v2835
  %v2837 = vpop.f32.mrf.mxu0
  %v2838 = vadd.f32 %v2503, %v2837
  %v2839 = vand.u32 %v2520, 4294901760
  %v2840 = vsub.f32 %v2520, %v2839
  %v2841 = vand.u32 %v2840, 4294901760
  %v2842 = vsub.f32 %v2840, %v2841
  %v2843 = vand.u32 %v2842, 4294901760
  %2844 = vmatmul.f32.gmra.mxu0 %v2843
  %v2845 = vpop.f32.mrf.mxu0
  %v2846 = vadd.f32 %v2507, %v2845
  %v2847 = vand.u32 %v2523, 4294901760
  %v2848 = vsub.f32 %v2523, %v2847
  %v2849 = vand.u32 %v2848, 4294901760
  %v2850 = vsub.f32 %v2848, %v2849
  %v2851 = vand.u32 %v2850, 4294901760
  %2852 = vmatmul.f32.gmra.mxu0 %v2851
  %v2853 = vpop.f32.mrf.mxu0
  %v2854 = vadd.f32 %v2511, %v2853
  %2855 = vdwg.mxu0
  %2856 = vmatpush.msra.mxu0 0.0
  %2857 = vmatpush.msra.mxu0 0.0
  %2858 = vmatpush.msra.mxu0 0.0
  %2859 = vmatpush.msra.mxu0 0.0
  %2860 = vmatpush.msra.mxu0 0.0
  %2861 = vmatpush.msra.mxu0 0.0
  %2862 = vmatpush.msra.mxu0 0.0
  %2863 = vmatpush.msra.mxu0 0.0
  %2864 = vmatpush.msra.mxu0 0.0
  %2865 = vmatpush.msra.mxu0 0.0
  %2866 = vmatpush.msra.mxu0 0.0
  %2867 = vmatpush.msra.mxu0 0.0
  %v2868 = vand.u32 %v2492, 4294901760
  %v2869 = vsub.f32 %v2492, %v2868
  %v2870 = vand.u32 %v2869, 4294901760
  %v2871 = vsub.f32 %v2869, %v2870
  %v2872 = vand.u32 %v2871, 4294901760
  %2873 = vmatpush.msra.mxu0 %v2872
  %v2874 = vand.u32 %v2490, 4294901760
  %v2875 = vsub.f32 %v2490, %v2874
  %v2876 = vand.u32 %v2875, 4294901760
  %v2877 = vsub.f32 %v2875, %v2876
  %v2878 = vand.u32 %v2877, 4294901760
  %2879 = vmatpush.msra.mxu0 %v2878
  %v2880 = vand.u32 %v2488, 4294901760
  %v2881 = vsub.f32 %v2488, %v2880
  %v2882 = vand.u32 %v2881, 4294901760
  %v2883 = vsub.f32 %v2881, %v2882
  %v2884 = vand.u32 %v2883, 4294901760
  %2885 = vmatpush.msra.mxu0 %v2884
  %v2886 = vand.u32 %v2486, 4294901760
  %v2887 = vsub.f32 %v2486, %v2886
  %v2888 = vand.u32 %v2887, 4294901760
  %v2889 = vsub.f32 %v2887, %v2888
  %v2890 = vand.u32 %v2889, 4294901760
  %2891 = vmatpush.msra.mxu0 %v2890
  %v2892 = vand.u32 %v2514, 4294901760
  %2893 = vmatmul.f32.gmra.mxu0 %v2892
  %v2894 = vpop.f32.mrf.mxu0
  %v2895 = vadd.f32 %v2830, %v2894
  %v2896 = vand.u32 %v2517, 4294901760
  %2897 = vmatmul.f32.gmra.mxu0 %v2896
  %v2898 = vpop.f32.mrf.mxu0
  %v2899 = vadd.f32 %v2838, %v2898
  %v2900 = vand.u32 %v2520, 4294901760
  %2901 = vmatmul.f32.gmra.mxu0 %v2900
  %v2902 = vpop.f32.mrf.mxu0
  %v2903 = vadd.f32 %v2846, %v2902
  %v2904 = vand.u32 %v2523, 4294901760
  %2905 = vmatmul.f32.gmra.mxu0 %v2904
  %v2906 = vpop.f32.mrf.mxu0
  %v2907 = vadd.f32 %v2854, %v2906
  %2908 = vdwg.mxu0
  %2909 = vmatpush.msra.mxu0 0.0
  %2910 = vmatpush.msra.mxu0 0.0
  %2911 = vmatpush.msra.mxu0 0.0
  %2912 = vmatpush.msra.mxu0 0.0
  %2913 = vmatpush.msra.mxu0 0.0
  %2914 = vmatpush.msra.mxu0 0.0
  %2915 = vmatpush.msra.mxu0 0.0
  %2916 = vmatpush.msra.mxu0 0.0
  %2917 = vmatpush.msra.mxu0 0.0
  %2918 = vmatpush.msra.mxu0 0.0
  %2919 = vmatpush.msra.mxu0 0.0
  %2920 = vmatpush.msra.mxu0 0.0
  %v2921 = vand.u32 %v2492, 4294901760
  %v2922 = vsub.f32 %v2492, %v2921
  %2923 = vmatpush.msra.mxu0 %v2922
  %v2924 = vand.u32 %v2490, 4294901760
  %v2925 = vsub.f32 %v2490, %v2924
  %2926 = vmatpush.msra.mxu0 %v2925
  %v2927 = vand.u32 %v2488, 4294901760
  %v2928 = vsub.f32 %v2488, %v2927
  %2929 = vmatpush.msra.mxu0 %v2928
  %v2930 = vand.u32 %v2486, 4294901760
  %v2931 = vsub.f32 %v2486, %v2930
  %2932 = vmatpush.msra.mxu0 %v2931
  %v2933 = vand.u32 %v2514, 4294901760
  %v2934 = vsub.f32 %v2514, %v2933
  %2935 = vmatmul.f32.gmra.mxu0 %v2934
  %v2936 = vpop.f32.mrf.mxu0
  %v2937 = vadd.f32 %v2895, %v2936
  %v2938 = vand.u32 %v2517, 4294901760
  %v2939 = vsub.f32 %v2517, %v2938
  %2940 = vmatmul.f32.gmra.mxu0 %v2939
  %v2941 = vpop.f32.mrf.mxu0
  %v2942 = vadd.f32 %v2899, %v2941
  %v2943 = vand.u32 %v2520, 4294901760
  %v2944 = vsub.f32 %v2520, %v2943
  %2945 = vmatmul.f32.gmra.mxu0 %v2944
  %v2946 = vpop.f32.mrf.mxu0
  %v2947 = vadd.f32 %v2903, %v2946
  %v2948 = vand.u32 %v2523, 4294901760
  %v2949 = vsub.f32 %v2523, %v2948
  %2950 = vmatmul.f32.gmra.mxu0 %v2949
  %v2951 = vpop.f32.mrf.mxu0
  %v2952 = vadd.f32 %v2907, %v2951
  %2953 = vdwg.mxu0
  %2954 = vmatpush.msra.mxu0 0.0
  %2955 = vmatpush.msra.mxu0 0.0
  %2956 = vmatpush.msra.mxu0 0.0
  %2957 = vmatpush.msra.mxu0 0.0
  %2958 = vmatpush.msra.mxu0 0.0
  %2959 = vmatpush.msra.mxu0 0.0
  %2960 = vmatpush.msra.mxu0 0.0
  %2961 = vmatpush.msra.mxu0 0.0
  %2962 = vmatpush.msra.mxu0 0.0
  %2963 = vmatpush.msra.mxu0 0.0
  %2964 = vmatpush.msra.mxu0 0.0
  %2965 = vmatpush.msra.mxu0 0.0
  %v2966 = vand.u32 %v2492, 4294901760
  %2967 = vmatpush.msra.mxu0 %v2966
  %v2968 = vand.u32 %v2490, 4294901760
  %2969 = vmatpush.msra.mxu0 %v2968
  %v2970 = vand.u32 %v2488, 4294901760
  %2971 = vmatpush.msra.mxu0 %v2970
  %v2972 = vand.u32 %v2486, 4294901760
  %2973 = vmatpush.msra.mxu0 %v2972
  %v2974 = vand.u32 %v2514, 4294901760
  %v2975 = vsub.f32 %v2514, %v2974
  %v2976 = vand.u32 %v2975, 4294901760
  %2977 = vmatmul.f32.gmra.mxu0 %v2976
  %v2978 = vpop.f32.mrf.mxu0
  %v2979 = vadd.f32 %v2937, %v2978
  %v2980 = vand.u32 %v2517, 4294901760
  %v2981 = vsub.f32 %v2517, %v2980
  %v2982 = vand.u32 %v2981, 4294901760
  %2983 = vmatmul.f32.gmra.mxu0 %v2982
  %v2984 = vpop.f32.mrf.mxu0
  %v2985 = vadd.f32 %v2942, %v2984
  %v2986 = vand.u32 %v2520, 4294901760
  %v2987 = vsub.f32 %v2520, %v2986
  %v2988 = vand.u32 %v2987, 4294901760
  %2989 = vmatmul.f32.gmra.mxu0 %v2988
  %v2990 = vpop.f32.mrf.mxu0
  %v2991 = vadd.f32 %v2947, %v2990
  %v2992 = vand.u32 %v2523, 4294901760
  %v2993 = vsub.f32 %v2523, %v2992
  %v2994 = vand.u32 %v2993, 4294901760
  %2995 = vmatmul.f32.gmra.mxu0 %v2994
  %v2996 = vpop.f32.mrf.mxu0
  %v2997 = vadd.f32 %v2952, %v2996
  %2998 = vdwg.mxu0
  %2999 = vmatpush.msra.mxu0 0.0
  %3000 = vmatpush.msra.mxu0 0.0
  %3001 = vmatpush.msra.mxu0 0.0
  %3002 = vmatpush.msra.mxu0 0.0
  %3003 = vmatpush.msra.mxu0 0.0
  %3004 = vmatpush.msra.mxu0 0.0
  %3005 = vmatpush.msra.mxu0 0.0
  %3006 = vmatpush.msra.mxu0 0.0
  %3007 = vmatpush.msra.mxu0 0.0
  %3008 = vmatpush.msra.mxu0 0.0
  %3009 = vmatpush.msra.mxu0 0.0
  %3010 = vmatpush.msra.mxu0 0.0
  %v3011 = vand.u32 %v2492, 4294901760
  %v3012 = vsub.f32 %v2492, %v3011
  %v3013 = vand.u32 %v3012, 4294901760
  %3014 = vmatpush.msra.mxu0 %v3013
  %v3015 = vand.u32 %v2490, 4294901760
  %v3016 = vsub.f32 %v2490, %v3015
  %v3017 = vand.u32 %v3016, 4294901760
  %3018 = vmatpush.msra.mxu0 %v3017
  %v3019 = vand.u32 %v2488, 4294901760
  %v3020 = vsub.f32 %v2488, %v3019
  %v3021 = vand.u32 %v3020, 4294901760
  %3022 = vmatpush.msra.mxu0 %v3021
  %v3023 = vand.u32 %v2486, 4294901760
  %v3024 = vsub.f32 %v2486, %v3023
  %v3025 = vand.u32 %v3024, 4294901760
  %3026 = vmatpush.msra.mxu0 %v3025
  %v3027 = vand.u32 %v2514, 4294901760
  %3028 = vmatmul.f32.gmra.mxu0 %v3027
  %v3029 = vpop.f32.mrf.mxu0
  %v3030 = vadd.f32 %v2979, %v3029
  %v3031 = vand.u32 %v2517, 4294901760
  %3032 = vmatmul.f32.gmra.mxu0 %v3031
  %v3033 = vpop.f32.mrf.mxu0
  %v3034 = vadd.f32 %v2985, %v3033
  %v3035 = vand.u32 %v2520, 4294901760
  %3036 = vmatmul.f32.gmra.mxu0 %v3035
  %v3037 = vpop.f32.mrf.mxu0
  %v3038 = vadd.f32 %v2991, %v3037
  %v3039 = vand.u32 %v2523, 4294901760
  %3040 = vmatmul.f32.gmra.mxu0 %v3039
  %v3041 = vpop.f32.mrf.mxu0
  %v3042 = vadd.f32 %v2997, %v3041
  %3043 = vdwg.mxu0
  %3044 = vmatpush.msra.mxu0 0.0
  %3045 = vmatpush.msra.mxu0 0.0
  %3046 = vmatpush.msra.mxu0 0.0
  %3047 = vmatpush.msra.mxu0 0.0
  %3048 = vmatpush.msra.mxu0 0.0
  %3049 = vmatpush.msra.mxu0 0.0
  %3050 = vmatpush.msra.mxu0 0.0
  %3051 = vmatpush.msra.mxu0 0.0
  %3052 = vmatpush.msra.mxu0 0.0
  %3053 = vmatpush.msra.mxu0 0.0
  %3054 = vmatpush.msra.mxu0 0.0
  %3055 = vmatpush.msra.mxu0 0.0
  %v3056 = vand.u32 %v2492, 4294901760
  %3057 = vmatpush.msra.mxu0 %v3056
  %v3058 = vand.u32 %v2490, 4294901760
  %3059 = vmatpush.msra.mxu0 %v3058
  %v3060 = vand.u32 %v2488, 4294901760
  %3061 = vmatpush.msra.mxu0 %v3060
  %v3062 = vand.u32 %v2486, 4294901760
  %3063 = vmatpush.msra.mxu0 %v3062
  %v3064 = vand.u32 %v2514, 4294901760
  %3065 = vmatmul.f32.gmra.mxu0 %v3064
  %v3066 = vpop.f32.mrf.mxu0
  %v3067 = vadd.f32 %v3030, %v3066
  %v3068 = vand.u32 %v2517, 4294901760
  %3069 = vmatmul.f32.gmra.mxu0 %v3068
  %v3070 = vpop.f32.mrf.mxu0
  %v3071 = vadd.f32 %v3034, %v3070
  %v3072 = vand.u32 %v2520, 4294901760
  %3073 = vmatmul.f32.gmra.mxu0 %v3072
  %v3074 = vpop.f32.mrf.mxu0
  %v3075 = vadd.f32 %v3038, %v3074
  %v3076 = vand.u32 %v2523, 4294901760
  %3077 = vmatmul.f32.gmra.mxu0 %v3076
  %v3078 = vpop.f32.mrf.mxu0
  %v3079 = vadd.f32 %v3042, %v3078
  %3080 = vdwg.mxu0
  %v3081 = vadd.f32 %v2789, %v23
  %v3082 = vadd.f32 %v3067, %v24
  %v3083 = vadd.f32 %v2793, %v25
  %v3084 = vadd.f32 %v3071, %v26
  %v3085 = vadd.f32 %v2797, %v27
  %v3086 = vadd.f32 %v3075, %v28
  %v3087 = vadd.f32 %v2801, %v29
  %v3088 = vadd.f32 %v3079, %v30
  %vm3089 = vcmp.ge.f32.partialorder %v3081, 0.0
  %vm3090 = vcmp.ge.f32.partialorder %v3082, 0.0
  %vm3091 = vcmp.ge.f32.partialorder %v3083, 0.0
  %vm3092 = vcmp.ge.f32.partialorder %v3084, 0.0
  %vm3093 = vcmp.ge.f32.partialorder %v3085, 0.0
  %vm3094 = vcmp.ge.f32.partialorder %v3086, 0.0
  %vm3095 = vcmp.ge.f32.partialorder %v3087, 0.0
  %vm3096 = vcmp.ge.f32.partialorder %v3088, 0.0
  %3097 = vset.pattern.permute.xlu0 5
  %3098 = vperm.xlu0 %3097, %v35
  %v3099 = vpop.permute.xlu0 %3098
  %3101 = vset.pattern.permute.xlu0 5
  %3102 = vperm.xlu0 %3101, %v36
  %v3103 = vpop.permute.xlu0 %3102
  %3105 = vset.pattern.permute.xlu0 5
  %3106 = vperm.xlu0 %3105, %v37
  %v3107 = vpop.permute.xlu0 %3106
  %3109 = vset.pattern.permute.xlu0 5
  %3110 = vperm.xlu0 %3109, %v38
  %v3111 = vpop.permute.xlu0 %3110
  %v3113 = vmul.f32 %v3099, %v3081
  %v3114 = vmul.f32 %v3099, %v3082
  %v3115 = vmul.f32 %v3103, %v3083
  %v3116 = vmul.f32 %v3103, %v3084
  %v3117 = vmul.f32 %v3107, %v3085
  %v3118 = vmul.f32 %v3107, %v3086
  %v3119 = vmul.f32 %v3111, %v3087
  %v3120 = vmul.f32 %v3111, %v3088
  %v3121 = vsel %vm3089, %v3081, %v3113
  %v3122 = vsel %vm3090, %v3082, %v3114
  %v3123 = vsel %vm3091, %v3083, %v3115
  %v3124 = vsel %vm3092, %v3084, %v3116
  %v3125 = vsel %vm3093, %v3085, %v3117
  %v3126 = vsel %vm3094, %v3086, %v3118
  %v3127 = vsel %vm3095, %v3087, %v3119
  %v3128 = vsel %vm3096, %v3088, %v3120
  %3129 = vst [vmem:[%s6] sm:$0xff] %v3121
  %3130 = vst [vmem:[%s6 + $0x8] sm:$0xff] %v3122
  %3131 = vst [vmem:[%s6 + $0x10] sm:$0xff] %v3123
  %3132 = vst [vmem:[%s6 + $0x18] sm:$0xff] %v3124
  %3133 = vst [vmem:[%s6 + $0x20] sm:$0xff] %v3125
  %3134 = vst [vmem:[%s6 + $0x28] sm:$0xff] %v3126
  %3135 = vst [vmem:[%s6 + $0x30] sm:$0xff] %v3127
  %3136 = vst [vmem:[%s6 + $0x38] sm:$0xff] %v3128
  // Predicated region
  $region26: #{eesp_forward.1} parent=0 // pred_check
    _
  $region27: #{eesp_forward.1} parent=0 // pred_check_branch
    %3138 = sbr.rel (0) target = $region29
  $region28: #{eesp_forward.1} parent=0 // pred_region
    _
  $region29: #{eesp_forward.1} parent=0 // pred_fallthru
    _
  // Predicated region
  $region30: #{eesp_forward.1} parent=0 // pred_check
    _
  $region31: #{eesp_forward.1} parent=0 // pred_check_branch
    %3140 = sbr.rel (0) target = $region33
  $region32: #{eesp_forward.1} parent=0 // pred_region
    _
  $region33: #{eesp_forward.1} parent=0 // pred_fallthru
    _

</llo_original>
